<compile_context>
chip_gen: v7x
topology: tpu7x:2x2x1
jax: 0.10.0
libtpu: 0.0.40
codegen_flags: <defaults>
</compile_context>

<pallas_src>
import functools

import jax
import jax.numpy as jnp
from jax import lax
from jax.experimental import pallas as pl
from jax.experimental.pallas import tpu as pltpu

BF = jnp.bfloat16
F32 = jnp.float32

_VMEM = functools.partial(pl.BlockSpec, memory_space=pltpu.MemorySpace.VMEM)
# 48 MiB: above the 32 MiB default (v5e/v6e have 128 MiB physical VMEM) while leaving
# double-buffer headroom under v7x's 64 MiB.
_COMPILER_PARAMS = pltpu.CompilerParams(vmem_limit_bytes=48 * 1024 * 1024)


# --------------------------------------------------------------------------- in-kernel helpers
def _dot(a, b):
    # f32 x f32 -> f32 accumulation (portable; bf16 operand dots are not universally supported).
    return jnp.dot(a, b, preferred_element_type=F32)


def _dot_t(a, b):
    # a^T @ b without materialising the transpose: contract axis 0 of both operands.
    return lax.dot_general(a, b, (((0,), (0,)), ((), ())), preferred_element_type=F32)


def _leaky(x):  # nn.LeakyReLU default negative_slope = 0.01
    return jnp.where(x > 0.0, x, 0.01 * x)


def _elu(x):  # alpha = 1
    return jnp.where(x > 0.0, x, jnp.exp(jnp.minimum(x, 0.0)) - 1.0)


def _gru(x, h, w, b, H, relu):
    """PyTorch nn.GRUCell (gate order r, z, n); optional trailing ReLU (AttentiveFP GNN only).

    w : (2H, 3H)  rows [:H] = W_ih^T, rows [H:] = W_hh^T
    b : (2, 3H)   row 0 = b_ih, row 1 = b_hh
    """
    gi = _dot(x, w[:H]) + b[0:1, :]
    gh = _dot(h, w[H:]) + b[1:2, :]
    r = jax.nn.sigmoid(gi[:, 0:H] + gh[:, 0:H])
    z = jax.nn.sigmoid(gi[:, H:2 * H] + gh[:, H:2 * H])
    n = jnp.tanh(gi[:, 2 * H:3 * H] + r * gh[:, 2 * H:3 * H])
    out = (1.0 - z) * n + z * h
    return jnp.maximum(out, 0.0) if relu else out


def _seg_softmax_ctx(gather_oh, logits, values):
    """elu( segment-softmax(logits)-weighted scatter-sum of values ), per segment.

    gather_oh : (I, S) f32 one-hot  item -> segment (each row sums to 1)
    logits    : (I, 1) f32,  values : (I, D) f32   ->   (S, D) f32

    Global-max stabilisation (logits come from LeakyReLU of small activations, so the
    dynamic range is modest) avoids any (I, S) temporary; numerator and denominator share a
    single width-(D+1) scatter matmul, and the scatter itself is a dot_general contracting
    axis 0 so no transposed one-hot copy is needed.
    TODO(synk): switch back to per-segment max if the logit dynamic range ever grows large.
    """
    D = values.shape[1]
    m = jnp.max(logits, axis=0, keepdims=True)                              # (1, 1)
    e = jnp.exp(logits - m)                                                 # (I, 1)
    numden = _dot_t(gather_oh, jnp.concatenate([values * e, e], axis=1))    # (S, D+1)
    den = numden[:, D:]
    ctx = numden[:, :D] / jnp.where(den == 0.0, 1.0, den)   # den==0: segment w/o items -> 0
    return _elu(ctx)


# --------------------------------------------------------------------------- fused model kernel
def _fused_kernel(node_ref, edge_ref, src_oh_ref, dst_oh_ref, gg_ref, fp_ref,
                  w_nd_ref, w_e1_ref, w_he1_ref, w_col_ref, w_gl_ref, w_ro_ref, w_gru_ref,
                  w_cfc1_ref, w_cfc2_ref, w_pfc1_ref, w_pfc2_ref,
                  b_d_ref, b_1_ref, b_gru_ref, b_pfc1_ref, b_pfc2_ref,
                  out_ref, *, hidden):
    D = hidden
    hv = node_ref[...]                        # (N, Fn)
    he = edge_ref[...]                        # (E, Fe)
    src_oh = src_oh_ref[...].astype(F32)      # (E, N)  edge -> src node
    dst_oh = dst_oh_ref[...].astype(F32)      # (E, N)  edge -> dst node
    gg = gg_ref[...].astype(F32)              # (N, B)  node -> graph
    b_d = b_d_ref[...]                        # (8, D)  packed width-D biases
    b_1 = b_1_ref[...]                        # (1, 4)  packed width-1 biases
    w_col = w_col_ref[...]                    # (D, 4)  packed width-1 logit weights

    # ---------------- stage 1: AttentiveFPGNN.init_context (GetContext) ----------------
    t0 = _dot(hv, w_nd_ref[...])                                            # (N, 2D) [pn_w | pe1_wn]
    hv_new = _leaky(t0[:, :D] + b_d[0:1, :])                                # project_node
    he1 = _leaky(_dot(src_oh, t0[:, D:]) + _dot(he, w_e1_ref[...])
                 + b_d[1:2, :])                                             # project_edge1 (E, D)
    t1 = _dot(he1, w_he1_ref[...])                                          # (E, D+1) [et_w | pe2_we]
    logit_dst = _dot(dst_oh, _dot(hv_new, w_col[:, 0:1]))                   # hv_new[dst] @ pe2_wn
    logits = _leaky(logit_dst + t1[:, D:] + b_1[:, 0:1])                    # project_edge2 (E, 1)
    edge_vals = t1[:, :D] + b_d[2:3, :]                                     # AttentiveGRU1.edge_transform
    ctx = _seg_softmax_ctx(dst_oh, logits, edge_vals)                       # (N, D)
    h1 = _gru(ctx, hv_new, w_gru_ref[0], b_gru_ref[0], D, relu=True)

    # ---------------- stage 2: GNNLayer (num_layers - 1 = 1) ----------------
    t2 = _dot(h1, w_gl_ref[...])                                            # (N, D+1) [gl_pn_w | gl_pe_ws]
    g_src = _dot(src_oh, t2)                                                # one fused src gather (E, D+1)
    logit_dst = _dot(dst_oh, _dot(h1, w_col[:, 1:2]))                       # h1[dst] @ gl_pe_wd
    logits = _leaky(logit_dst + g_src[:, D:] + b_1[:, 1:2])                 # project_edge (E, 1)
    edge_vals = g_src[:, :D] + b_d[3:4, :]                                  # AttentiveGRU2 src values
    ctx = _seg_softmax_ctx(dst_oh, logits, edge_vals)                       # (N, D)
    h2 = _gru(ctx, h1, w_gru_ref[1], b_gru_ref[1], D, relu=True)

    # ---------------- stage 3: AttentiveFPReadout (sum_nodes + 2 GlobalPool steps) ------
    g_feats = _dot_t(gg, h2)                                                # sum_nodes (B, D)
    for t in range(2):
        gf_relu = jnp.maximum(g_feats, 0.0)
        t3 = _dot(h2, w_ro_ref[t])                                          # (N, D+1) [ro_pn_w | cl_wn]
        z = _leaky(_dot(gg, _dot(gf_relu, w_col[:, 2 + t:3 + t]))
                   + t3[:, D:] + b_1[:, 2 + t:3 + t])                       # compute_logits (N, 1)
        hv_r = t3[:, :D] + b_d[4 + t:5 + t, :]                              # project_nodes (N, D)
        ctx = _seg_softmax_ctx(gg, z, hv_r)                                 # (B, D)
        g_feats = _gru(ctx, g_feats, w_gru_ref[2 + t], b_gru_ref[2 + t], D,
                       relu=False)                                          # GlobalPool GRU (no ReLU)

    # ---------------- stage 4: compound_fc + concat + pred_fc ----------------
    c = jnp.maximum(_dot(fp_ref[...], w_cfc1_ref[...]) + b_d[6:7, :], 0.0)
    c = jnp.maximum(_dot(c, w_cfc2_ref[...]) + b_d[7:8, :], 0.0)
    w_pfc1 = w_pfc1_ref[...]
    hmid = jnp.maximum(_dot(g_feats, w_pfc1[:D]) + _dot(c, w_pfc1[D:])
                       + b_pfc1_ref[...], 0.0)
    out_ref[...] = _dot(hmid, w_pfc2_ref[...]) + b_pfc2_ref[...]


# --------------------------------------------------------------------------- params
def init_params(key, node_feat_size, edge_feat_size, fp_size, latent_dim=128, n_tasks=11):
    D = latent_dim
    keys = iter(jax.random.split(key, 96))

    def w(shape, scale=0.1):
        return (scale * jax.random.normal(next(keys), shape)).astype(jnp.float32)

    def bias(n):
        return w((1, n), 0.01)

    p = {}
    # --- AttentiveFP GNN: GetContext ---
    p["pn_w"] = w((node_feat_size, D)); p["pn_b"] = bias(D)                       # project_node
    p["pe1_w"] = w((node_feat_size + edge_feat_size, D)); p["pe1_b"] = bias(D)    # project_edge1
    p["pe2_w"] = w((2 * D, 1)); p["pe2_b"] = bias(1)                              # project_edge2
    p["ag1_et_w"] = w((D, D)); p["ag1_et_b"] = bias(D)                            # AttentiveGRU1.edge_transform
    # --- GNNLayer (num_layers=2 -> one extra layer) ---
    p["gl_pe_w"] = w((2 * D, 1)); p["gl_pe_b"] = bias(1)                          # project_edge
    p["gl_pn_w"] = w((D, D)); p["gl_pn_b"] = bias(D)                              # AttentiveGRU2.project_node
    # --- Readout (num_timesteps=2 GlobalPool) ---
    for t in range(2):
        p[f"ro{t}_cl_w"] = w((2 * D, 1)); p[f"ro{t}_cl_b"] = bias(1)              # compute_logits
        p[f"ro{t}_pn_w"] = w((D, D)); p[f"ro{t}_pn_b"] = bias(D)                  # project_nodes
    # --- GRU cells (stored transposed: (D, 3D) / (D, 3D); gate order r,z,n) ---
    for name in ("ag1", "gl", "ro0", "ro1"):
        p[f"{name}_gru_wih"] = w((D, 3 * D))
        p[f"{name}_gru_whh"] = w((D, 3 * D))
        p[f"{name}_gru_bih"] = bias(3 * D)
        p[f"{name}_gru_bhh"] = bias(3 * D)

    # --- eval-mode BatchNorm folded into the preceding Linear ---
    def linear_bn_folded(in_dim, out_dim):
        W = w((in_dim, out_dim))
        b = 0.01 * jax.random.normal(next(keys), (out_dim,))
        gamma = 1.0 + 0.1 * jax.random.normal(next(keys), (out_dim,))
        beta = 0.1 * jax.random.normal(next(keys), (out_dim,))
        mean = 0.1 * jax.random.normal(next(keys), (out_dim,))
        var = jnp.abs(1.0 + 0.1 * jax.random.normal(next(keys), (out_dim,)))
        scale = gamma / jnp.sqrt(var + 1e-5)
        Wf = (W * scale[None, :]).astype(jnp.float32)
        bf_ = (((b - mean) * scale + beta)[None, :]).astype(jnp.float32)
        return Wf, bf_

    p["cfc1_w"], p["cfc1_b"] = linear_bn_folded(fp_size, D)       # compound_fc
    p["cfc2_w"], p["cfc2_b"] = linear_bn_folded(D, D)
    p["pfc1_w"], p["pfc1_b"] = linear_bn_folded(2 * D, 64)        # pred_fc
    p["pfc2_w"] = w((64, n_tasks)); p["pfc2_b"] = bias(n_tasks)
    return p


def _pack_params(p, node_feat_size):
    """Consolidate ~64 tiny weight/bias tensors into 16 packed operands (one DMA each).

    Packing keeps all weight-split concat orders consistent with DGL's torch.cat layouts:
      project_edge1: [src-node | edge],  project_edge2 / GNN project_edge: [dst | src],
      readout compute_logits: [broadcast relu(g_feats) | node],  pred_fc: [graph | compound].
    """
    Fn = node_feat_size
    D = p["pn_w"].shape[1]
    w_nd = jnp.concatenate([p["pn_w"], p["pe1_w"][:Fn]], axis=1)                 # (Fn, 2D)
    w_e1 = p["pe1_w"][Fn:]                                                       # (Fe, D)
    w_he1 = jnp.concatenate([p["ag1_et_w"], p["pe2_w"][D:]], axis=1)             # (D, D+1)
    w_col = jnp.concatenate([p["pe2_w"][:D], p["gl_pe_w"][:D],
                             p["ro0_cl_w"][:D], p["ro1_cl_w"][:D]], axis=1)      # (D, 4)
    w_gl = jnp.concatenate([p["gl_pn_w"], p["gl_pe_w"][D:]], axis=1)             # (D, D+1)
    w_ro = jnp.stack(
        [jnp.concatenate([p[f"ro{t}_pn_w"], p[f"ro{t}_cl_w"][D:]], axis=1)
         for t in range(2)])                                                     # (2, D, D+1)
    w_gru = jnp.stack(
        [jnp.concatenate([p[f"{n}_gru_wih"], p[f"{n}_gru_whh"]], axis=0)
         for n in ("ag1", "gl", "ro0", "ro1")])                                  # (4, 2D, 3D)
    b_gru = jnp.stack(
        [jnp.concatenate([p[f"{n}_gru_bih"], p[f"{n}_gru_bhh"]], axis=0)
         for n in ("ag1", "gl", "ro0", "ro1")])                                  # (4, 2, 3D)
    b_d = jnp.concatenate([p["pn_b"], p["pe1_b"], p["ag1_et_b"], p["gl_pn_b"],
                           p["ro0_pn_b"], p["ro1_pn_b"], p["cfc1_b"], p["cfc2_b"]],
                          axis=0)                                                # (8, D)
    b_1 = jnp.concatenate([p["pe2_b"], p["gl_pe_b"], p["ro0_cl_b"], p["ro1_cl_b"]],
                          axis=1)                                                # (1, 4)
    return (w_nd, w_e1, w_he1, w_col, w_gl, w_ro, w_gru,
            p["cfc1_w"], p["cfc2_w"], p["pfc1_w"], p["pfc2_w"],
            b_d, b_1, b_gru, p["pfc1_b"], p["pfc2_b"])


# --------------------------------------------------------------------------- forward
def bioact_forward(params, node_feats, edge_feats, compound_fp, src, dst, node_graph,
                   num_graphs):
    p = params
    D = p["pn_w"].shape[1]
    Fn = node_feats.shape[1]
    N = node_feats.shape[0]
    B = num_graphs
    n_tasks = p["pfc2_w"].shape[1]

    # Dense incidence one-hots: bf16 in HBM (half DMA bytes), cast to f32 inside the kernel.
    # Only the gather-orientation matrices are built; the scatter side reuses them via
    # dot_general contracting axis 0 (no transposed copies in HBM/VMEM).
    node_ids = jnp.arange(N, dtype=src.dtype)
    src_oh = (src[:, None] == node_ids[None, :]).astype(BF)        # (E, N)
    dst_oh = (dst[:, None] == node_ids[None, :]).astype(BF)        # (E, N)
    g_ids = jnp.arange(B, dtype=node_graph.dtype)
    gg = (node_graph[:, None] == g_ids[None, :]).astype(BF)        # (N, B)

    packed = _pack_params(p, Fn)

    # Single fused kernel: GetContext + GNNLayer + Readout(2) + MLP heads.
    out = pl.pallas_call(
        functools.partial(_fused_kernel, hidden=D),
        out_shape=jax.ShapeDtypeStruct((B, n_tasks), F32),
        in_specs=[_VMEM()] * 22,
        out_specs=_VMEM(),
        compiler_params=_COMPILER_PARAMS,
    )(node_feats, edge_feats, src_oh, dst_oh, gg, compound_fp, *packed)
    return out


# --------------------------------------------------------------------------- main
if __name__ == "__main__":
    key = jax.random.PRNGKey(0)
    k_param, k_node, k_edge, k_fp = jax.random.split(key, 4)

    NODE_F, EDGE_F, FP_SIZE, LATENT, N_TASKS = 16, 8, 32, 128, 11
    B, N, E = 2, 10, 16  # 2 graphs, 5 nodes each, 8 directed edges each

    src = jnp.array([0, 1, 1, 2, 3, 4, 0, 2, 5, 6, 6, 7, 8, 9, 5, 7], dtype=jnp.int32)
    dst = jnp.array([1, 0, 2, 1, 4, 3, 2, 0, 6, 5, 7, 6, 9, 8, 7, 5], dtype=jnp.int32)
    node_graph = jnp.array([0] * 5 + [1] * 5, dtype=jnp.int32)

    node_feats = jax.random.normal(k_node, (N, NODE_F), dtype=jnp.float32)
    edge_feats = jax.random.normal(k_edge, (E, EDGE_F), dtype=jnp.float32)
    compound_fp = jax.random.normal(k_fp, (B, FP_SIZE), dtype=jnp.float32)

    params = init_params(k_param, NODE_F, EDGE_F, FP_SIZE, LATENT, N_TASKS)

    fwd = jax.jit(bioact_forward, static_argnums=(7,))
    out = fwd(params, node_feats, edge_feats, compound_fp, src, dst, node_graph, B)
    out = jax.block_until_ready(out)
    assert out.shape == (B, N_TASKS), out.shape
    assert bool(jnp.all(jnp.isfinite(out)))
    print("KERNEL_OK")
</pallas_src>

<mosaic_0001>
module attributes {stable_mosaic.version = 11 : i64} {
  func.func @_fused_kernel(%arg0: memref<10x16xf32, #tpu.memory_space<vmem>>, %arg1: memref<16x8xf32, #tpu.memory_space<vmem>>, %arg2: memref<16x10xbf16, #tpu.memory_space<vmem>>, %arg3: memref<16x10xbf16, #tpu.memory_space<vmem>>, %arg4: memref<10x2xbf16, #tpu.memory_space<vmem>>, %arg5: memref<2x32xf32, #tpu.memory_space<vmem>>, %arg6: memref<16x256xf32, #tpu.memory_space<vmem>>, %arg7: memref<8x128xf32, #tpu.memory_space<vmem>>, %arg8: memref<128x129xf32, #tpu.memory_space<vmem>>, %arg9: memref<128x4xf32, #tpu.memory_space<vmem>>, %arg10: memref<128x129xf32, #tpu.memory_space<vmem>>, %arg11: memref<2x128x129xf32, #tpu.memory_space<vmem>>, %arg12: memref<4x256x384xf32, #tpu.memory_space<vmem>>, %arg13: memref<32x128xf32, #tpu.memory_space<vmem>>, %arg14: memref<128x128xf32, #tpu.memory_space<vmem>>, %arg15: memref<256x64xf32, #tpu.memory_space<vmem>>, %arg16: memref<64x11xf32, #tpu.memory_space<vmem>>, %arg17: memref<8x128xf32, #tpu.memory_space<vmem>>, %arg18: memref<1x4xf32, #tpu.memory_space<vmem>>, %arg19: memref<4x2x384xf32, #tpu.memory_space<vmem>>, %arg20: memref<1x64xf32, #tpu.memory_space<vmem>>, %arg21: memref<1x11xf32, #tpu.memory_space<vmem>>, %arg22: memref<2x11xf32, #tpu.memory_space<vmem>>) attributes {dimension_semantics = [], scalar_prefetch = 0 : i64, scratch_operands = 0 : i64, tpu.core_type = #tpu.core_type<tc>} {
    %c0 = arith.constant 0 : index
    %c0_0 = arith.constant 0 : index
    %0 = vector.load %arg0[%c0, %c0_0] : memref<10x16xf32, #tpu.memory_space<vmem>>, vector<10x16xf32>
    %c0_1 = arith.constant 0 : index
    %c0_2 = arith.constant 0 : index
    %1 = vector.load %arg1[%c0_1, %c0_2] : memref<16x8xf32, #tpu.memory_space<vmem>>, vector<16x8xf32>
    %c0_3 = arith.constant 0 : index
    %c0_4 = arith.constant 0 : index
    %2 = vector.load %arg2[%c0_3, %c0_4] : memref<16x10xbf16, #tpu.memory_space<vmem>>, vector<16x10xbf16>
    %3 = arith.extf %2 : vector<16x10xbf16> to vector<16x10xf32>
    %c0_5 = arith.constant 0 : index
    %c0_6 = arith.constant 0 : index
    %4 = vector.load %arg3[%c0_5, %c0_6] : memref<16x10xbf16, #tpu.memory_space<vmem>>, vector<16x10xbf16>
    %5 = arith.extf %4 : vector<16x10xbf16> to vector<16x10xf32>
    %c0_7 = arith.constant 0 : index
    %c0_8 = arith.constant 0 : index
    %6 = vector.load %arg4[%c0_7, %c0_8] : memref<10x2xbf16, #tpu.memory_space<vmem>>, vector<10x2xbf16>
    %7 = arith.extf %6 : vector<10x2xbf16> to vector<10x2xf32>
    %c0_9 = arith.constant 0 : index
    %c0_10 = arith.constant 0 : index
    %8 = vector.load %arg17[%c0_9, %c0_10] : memref<8x128xf32, #tpu.memory_space<vmem>>, vector<8x128xf32>
    %c0_11 = arith.constant 0 : index
    %c0_12 = arith.constant 0 : index
    %9 = vector.load %arg18[%c0_11, %c0_12] : memref<1x4xf32, #tpu.memory_space<vmem>>, vector<1x4xf32>
    %c0_13 = arith.constant 0 : index
    %c0_14 = arith.constant 0 : index
    %10 = vector.load %arg9[%c0_13, %c0_14] : memref<128x4xf32, #tpu.memory_space<vmem>>, vector<128x4xf32>
    %c0_15 = arith.constant 0 : index
    %c0_16 = arith.constant 0 : index
    %11 = vector.load %arg6[%c0_15, %c0_16] : memref<16x256xf32, #tpu.memory_space<vmem>>, vector<16x256xf32>
    %cst = arith.constant dense<0.000000e+00> : vector<10x256xf32>
    %12 = tpu.matmul %0, %11, %cst {dimension_numbers = #tpu.dot_dimension_numbers<[1], [0], [0], [1], [0, 0, 1, 1], [], []>} : vector<10x16xf32>, vector<16x256xf32>, vector<10x256xf32> -> vector<10x256xf32>
    %13 = vector.extract_strided_slice %12 {offsets = [0, 0], sizes = [10, 128], strides = [1, 1]} : vector<10x256xf32> to vector<10x128xf32>
    %14 = vector.extract_strided_slice %8 {offsets = [0, 0], sizes = [1, 128], strides = [1, 1]} : vector<8x128xf32> to vector<1x128xf32>
    %15 = vector.broadcast %14 : vector<1x128xf32> to vector<10x128xf32>
    %16 = arith.addf %13, %15 : vector<10x128xf32>
    %cst_17 = arith.constant 0.000000e+00 : f32
    %17 = vector.broadcast %cst_17 : f32 to vector<10x128xf32>
    %18 = arith.cmpf ogt, %16, %17 : vector<10x128xf32>
    %cst_18 = arith.constant 0.00999999977 : f32
    %19 = vector.broadcast %cst_18 : f32 to vector<10x128xf32>
    %20 = arith.mulf %19, %16 : vector<10x128xf32>
    %21 = arith.select %18, %16, %20 : vector<10x128xi1>, vector<10x128xf32>
    %22 = vector.extract_strided_slice %12 {offsets = [0, 128], sizes = [10, 128], strides = [1, 1]} : vector<10x256xf32> to vector<10x128xf32>
    %cst_19 = arith.constant dense<0.000000e+00> : vector<16x128xf32>
    %23 = tpu.matmul %3, %22, %cst_19 {dimension_numbers = #tpu.dot_dimension_numbers<[1], [0], [0], [1], [0, 0, 1, 1], [], []>} : vector<16x10xf32>, vector<10x128xf32>, vector<16x128xf32> -> vector<16x128xf32>
    %c0_20 = arith.constant 0 : index
    %c0_21 = arith.constant 0 : index
    %24 = vector.load %arg7[%c0_20, %c0_21] : memref<8x128xf32, #tpu.memory_space<vmem>>, vector<8x128xf32>
    %cst_22 = arith.constant dense<0.000000e+00> : vector<16x128xf32>
    %25 = tpu.matmul %1, %24, %cst_22 {dimension_numbers = #tpu.dot_dimension_numbers<[1], [0], [0], [1], [0, 0, 1, 1], [], []>} : vector<16x8xf32>, vector<8x128xf32>, vector<16x128xf32> -> vector<16x128xf32>
    %26 = arith.addf %23, %25 : vector<16x128xf32>
    %27 = vector.extract_strided_slice %8 {offsets = [1, 0], sizes = [1, 128], strides = [1, 1]} : vector<8x128xf32> to vector<1x128xf32>
    %28 = vector.broadcast %27 : vector<1x128xf32> to vector<16x128xf32>
    %29 = arith.addf %26, %28 : vector<16x128xf32>
    %cst_23 = arith.constant 0.000000e+00 : f32
    %30 = vector.broadcast %cst_23 : f32 to vector<16x128xf32>
    %31 = arith.cmpf ogt, %29, %30 : vector<16x128xf32>
    %cst_24 = arith.constant 0.00999999977 : f32
    %32 = vector.broadcast %cst_24 : f32 to vector<16x128xf32>
    %33 = arith.mulf %32, %29 : vector<16x128xf32>
    %34 = arith.select %31, %29, %33 : vector<16x128xi1>, vector<16x128xf32>
    %c0_25 = arith.constant 0 : index
    %c0_26 = arith.constant 0 : index
    %35 = vector.load %arg8[%c0_25, %c0_26] : memref<128x129xf32, #tpu.memory_space<vmem>>, vector<128x129xf32>
    %cst_27 = arith.constant dense<0.000000e+00> : vector<16x129xf32>
    %36 = tpu.matmul %34, %35, %cst_27 {dimension_numbers = #tpu.dot_dimension_numbers<[1], [0], [0], [1], [0, 0, 1, 1], [], []>} : vector<16x128xf32>, vector<128x129xf32>, vector<16x129xf32> -> vector<16x129xf32>
    %37 = vector.extract_strided_slice %10 {offsets = [0, 0], sizes = [128, 1], strides = [1, 1]} : vector<128x4xf32> to vector<128x1xf32>
    %cst_28 = arith.constant dense<0.000000e+00> : vector<10x1xf32>
    %38 = tpu.matmul %21, %37, %cst_28 {dimension_numbers = #tpu.dot_dimension_numbers<[1], [0], [0], [1], [0, 0, 1, 1], [], []>} : vector<10x128xf32>, vector<128x1xf32>, vector<10x1xf32> -> vector<10x1xf32>
    %cst_29 = arith.constant dense<0.000000e+00> : vector<16x1xf32>
    %39 = tpu.matmul %5, %38, %cst_29 {dimension_numbers = #tpu.dot_dimension_numbers<[1], [0], [0], [1], [0, 0, 1, 1], [], []>} : vector<16x10xf32>, vector<10x1xf32>, vector<16x1xf32> -> vector<16x1xf32>
    %40 = vector.extract_strided_slice %36 {offsets = [0, 128], sizes = [16, 1], strides = [1, 1]} : vector<16x129xf32> to vector<16x1xf32>
    %41 = arith.addf %39, %40 : vector<16x1xf32>
    %42 = vector.extract_strided_slice %9 {offsets = [0, 0], sizes = [1, 1], strides = [1, 1]} : vector<1x4xf32> to vector<1x1xf32>
    %43 = vector.broadcast %42 : vector<1x1xf32> to vector<16x1xf32>
    %44 = arith.addf %41, %43 : vector<16x1xf32>
    %cst_30 = arith.constant 0.000000e+00 : f32
    %45 = vector.broadcast %cst_30 : f32 to vector<16x1xf32>
    %46 = arith.cmpf ogt, %44, %45 : vector<16x1xf32>
    %cst_31 = arith.constant 0.00999999977 : f32
    %47 = vector.broadcast %cst_31 : f32 to vector<16x1xf32>
    %48 = arith.mulf %47, %44 : vector<16x1xf32>
    %49 = arith.select %46, %44, %48 : vector<16x1xi1>, vector<16x1xf32>
    %50 = vector.extract_strided_slice %36 {offsets = [0, 0], sizes = [16, 128], strides = [1, 1]} : vector<16x129xf32> to vector<16x128xf32>
    %51 = vector.extract_strided_slice %8 {offsets = [2, 0], sizes = [1, 128], strides = [1, 1]} : vector<8x128xf32> to vector<1x128xf32>
    %52 = vector.broadcast %51 : vector<1x128xf32> to vector<16x128xf32>
    %53 = arith.addf %50, %52 : vector<16x128xf32>
    %cst_32 = arith.constant dense<0xFF800000> : vector<1xf32>
    %54 = vector.multi_reduction <maximumf>, %49, %cst_32 [0] : vector<16x1xf32> to vector<1xf32>
    %55 = vector.shape_cast %54 : vector<1xf32> to vector<1x1xf32>
    %56 = vector.broadcast %55 : vector<1x1xf32> to vector<16x1xf32>
    %57 = arith.subf %49, %56 : vector<16x1xf32>
    %58 = math.exp %57 : vector<16x1xf32>
    %59 = vector.broadcast %58 : vector<16x1xf32> to vector<16x128xf32>
    %60 = arith.mulf %53, %59 : vector<16x128xf32>
    %61 = tpu.concatenate %60, %58 in 1 : vector<16x128xf32>, vector<16x1xf32> -> vector<16x129xf32>
    %cst_33 = arith.constant dense<0.000000e+00> : vector<10x129xf32>
    %62 = tpu.matmul %5, %61, %cst_33 {dimension_numbers = #tpu.dot_dimension_numbers<[0], [0], [1], [1], [0, 1, 1, 1], [], []>} : vector<16x10xf32>, vector<16x129xf32>, vector<10x129xf32> -> vector<10x129xf32>
    %63 = vector.extract_strided_slice %62 {offsets = [0, 128], sizes = [10, 1], strides = [1, 1]} : vector<10x129xf32> to vector<10x1xf32>
    %64 = vector.extract_strided_slice %62 {offsets = [0, 0], sizes = [10, 128], strides = [1, 1]} : vector<10x129xf32> to vector<10x128xf32>
    %cst_34 = arith.constant 0.000000e+00 : f32
    %65 = vector.broadcast %cst_34 : f32 to vector<10x1xf32>
    %66 = arith.cmpf oeq, %63, %65 : vector<10x1xf32>
    %cst_35 = arith.constant 1.000000e+00 : f32
    %67 = vector.broadcast %cst_35 : f32 to vector<10x1xf32>
    %68 = arith.select %66, %67, %63 : vector<10x1xi1>, vector<10x1xf32>
    %69 = vector.broadcast %68 : vector<10x1xf32> to vector<10x128xf32>
    %70 = arith.divf %64, %69 : vector<10x128xf32>
    %cst_36 = arith.constant 0.000000e+00 : f32
    %71 = vector.broadcast %cst_36 : f32 to vector<10x128xf32>
    %72 = arith.cmpf ogt, %70, %71 : vector<10x128xf32>
    %cst_37 = arith.constant 0.000000e+00 : f32
    %73 = vector.broadcast %cst_37 : f32 to vector<10x128xf32>
    %74 = arith.minimumf %70, %73 : vector<10x128xf32>
    %75 = math.exp %74 : vector<10x128xf32>
    %cst_38 = arith.constant 1.000000e+00 : f32
    %76 = vector.broadcast %cst_38 : f32 to vector<10x128xf32>
    %77 = arith.subf %75, %76 : vector<10x128xf32>
    %78 = arith.select %72, %70, %77 : vector<10x128xi1>, vector<10x128xf32>
    %c0_39 = arith.constant 0 : index
    %c0_40 = arith.constant 0 : index
    %c0_41 = arith.constant 0 : index
    %79 = vector.load %arg12[%c0_39, %c0_40, %c0_41] : memref<4x256x384xf32, #tpu.memory_space<vmem>>, vector<1x256x384xf32>
    %80 = vector.shape_cast %79 : vector<1x256x384xf32> to vector<256x384xf32>
    %c0_42 = arith.constant 0 : index
    %c0_43 = arith.constant 0 : index
    %c0_44 = arith.constant 0 : index
    %81 = vector.load %arg19[%c0_42, %c0_43, %c0_44] : memref<4x2x384xf32, #tpu.memory_space<vmem>>, vector<1x2x384xf32>
    %82 = vector.shape_cast %81 : vector<1x2x384xf32> to vector<2x384xf32>
    %83 = vector.extract_strided_slice %80 {offsets = [0, 0], sizes = [128, 384], strides = [1, 1]} : vector<256x384xf32> to vector<128x384xf32>
    %cst_45 = arith.constant dense<0.000000e+00> : vector<10x384xf32>
    %84 = tpu.matmul %78, %83, %cst_45 {dimension_numbers = #tpu.dot_dimension_numbers<[1], [0], [0], [1], [0, 0, 1, 1], [], []>} : vector<10x128xf32>, vector<128x384xf32>, vector<10x384xf32> -> vector<10x384xf32>
    %85 = vector.extract_strided_slice %82 {offsets = [0, 0], sizes = [1, 384], strides = [1, 1]} : vector<2x384xf32> to vector<1x384xf32>
    %86 = vector.broadcast %85 : vector<1x384xf32> to vector<10x384xf32>
    %87 = arith.addf %84, %86 : vector<10x384xf32>
    %88 = vector.extract_strided_slice %80 {offsets = [128, 0], sizes = [128, 384], strides = [1, 1]} : vector<256x384xf32> to vector<128x384xf32>
    %cst_46 = arith.constant dense<0.000000e+00> : vector<10x384xf32>
    %89 = tpu.matmul %21, %88, %cst_46 {dimension_numbers = #tpu.dot_dimension_numbers<[1], [0], [0], [1], [0, 0, 1, 1], [], []>} : vector<10x128xf32>, vector<128x384xf32>, vector<10x384xf32> -> vector<10x384xf32>
    %90 = vector.extract_strided_slice %82 {offsets = [1, 0], sizes = [1, 384], strides = [1, 1]} : vector<2x384xf32> to vector<1x384xf32>
    %91 = vector.broadcast %90 : vector<1x384xf32> to vector<10x384xf32>
    %92 = arith.addf %89, %91 : vector<10x384xf32>
    %93 = vector.extract_strided_slice %87 {offsets = [0, 0], sizes = [10, 128], strides = [1, 1]} : vector<10x384xf32> to vector<10x128xf32>
    %94 = vector.extract_strided_slice %92 {offsets = [0, 0], sizes = [10, 128], strides = [1, 1]} : vector<10x384xf32> to vector<10x128xf32>
    %95 = arith.addf %93, %94 : vector<10x128xf32>
    %96 = arith.negf %95 : vector<10x128xf32>
    %97 = math.exp %96 : vector<10x128xf32>
    %cst_47 = arith.constant 1.000000e+00 : f32
    %98 = vector.broadcast %cst_47 : f32 to vector<10x128xf32>
    %99 = arith.addf %98, %97 : vector<10x128xf32>
    %100 = arith.divf %98, %99 : vector<10x128xf32>
    %101 = vector.extract_strided_slice %87 {offsets = [0, 128], sizes = [10, 128], strides = [1, 1]} : vector<10x384xf32> to vector<10x128xf32>
    %102 = vector.extract_strided_slice %92 {offsets = [0, 128], sizes = [10, 128], strides = [1, 1]} : vector<10x384xf32> to vector<10x128xf32>
    %103 = arith.addf %101, %102 : vector<10x128xf32>
    %104 = arith.negf %103 : vector<10x128xf32>
    %105 = math.exp %104 : vector<10x128xf32>
    %cst_48 = arith.constant 1.000000e+00 : f32
    %106 = vector.broadcast %cst_48 : f32 to vector<10x128xf32>
    %107 = arith.addf %106, %105 : vector<10x128xf32>
    %108 = arith.divf %106, %107 : vector<10x128xf32>
    %109 = vector.extract_strided_slice %87 {offsets = [0, 256], sizes = [10, 128], strides = [1, 1]} : vector<10x384xf32> to vector<10x128xf32>
    %110 = vector.extract_strided_slice %92 {offsets = [0, 256], sizes = [10, 128], strides = [1, 1]} : vector<10x384xf32> to vector<10x128xf32>
    %111 = arith.mulf %100, %110 : vector<10x128xf32>
    %112 = arith.addf %109, %111 : vector<10x128xf32>
    %113 = math.tanh %112 : vector<10x128xf32>
    %cst_49 = arith.constant 1.000000e+00 : f32
    %114 = vector.broadcast %cst_49 : f32 to vector<10x128xf32>
    %115 = arith.subf %114, %108 : vector<10x128xf32>
    %116 = arith.mulf %115, %113 : vector<10x128xf32>
    %117 = arith.mulf %108, %21 : vector<10x128xf32>
    %118 = arith.addf %116, %117 : vector<10x128xf32>
    %cst_50 = arith.constant 0.000000e+00 : f32
    %119 = vector.broadcast %cst_50 : f32 to vector<10x128xf32>
    %120 = arith.maximumf %118, %119 : vector<10x128xf32>
    %c0_51 = arith.constant 0 : index
    %c0_52 = arith.constant 0 : index
    %121 = vector.load %arg10[%c0_51, %c0_52] : memref<128x129xf32, #tpu.memory_space<vmem>>, vector<128x129xf32>
    %cst_53 = arith.constant dense<0.000000e+00> : vector<10x129xf32>
    %122 = tpu.matmul %120, %121, %cst_53 {dimension_numbers = #tpu.dot_dimension_numbers<[1], [0], [0], [1], [0, 0, 1, 1], [], []>} : vector<10x128xf32>, vector<128x129xf32>, vector<10x129xf32> -> vector<10x129xf32>
    %cst_54 = arith.constant dense<0.000000e+00> : vector<16x129xf32>
    %123 = tpu.matmul %3, %122, %cst_54 {dimension_numbers = #tpu.dot_dimension_numbers<[1], [0], [0], [1], [0, 0, 1, 1], [], []>} : vector<16x10xf32>, vector<10x129xf32>, vector<16x129xf32> -> vector<16x129xf32>
    %124 = vector.extract_strided_slice %10 {offsets = [0, 1], sizes = [128, 1], strides = [1, 1]} : vector<128x4xf32> to vector<128x1xf32>
    %cst_55 = arith.constant dense<0.000000e+00> : vector<10x1xf32>
    %125 = tpu.matmul %120, %124, %cst_55 {dimension_numbers = #tpu.dot_dimension_numbers<[1], [0], [0], [1], [0, 0, 1, 1], [], []>} : vector<10x128xf32>, vector<128x1xf32>, vector<10x1xf32> -> vector<10x1xf32>
    %cst_56 = arith.constant dense<0.000000e+00> : vector<16x1xf32>
    %126 = tpu.matmul %5, %125, %cst_56 {dimension_numbers = #tpu.dot_dimension_numbers<[1], [0], [0], [1], [0, 0, 1, 1], [], []>} : vector<16x10xf32>, vector<10x1xf32>, vector<16x1xf32> -> vector<16x1xf32>
    %127 = vector.extract_strided_slice %123 {offsets = [0, 128], sizes = [16, 1], strides = [1, 1]} : vector<16x129xf32> to vector<16x1xf32>
    %128 = arith.addf %126, %127 : vector<16x1xf32>
    %129 = vector.extract_strided_slice %9 {offsets = [0, 1], sizes = [1, 1], strides = [1, 1]} : vector<1x4xf32> to vector<1x1xf32>
    %130 = vector.broadcast %129 : vector<1x1xf32> to vector<16x1xf32>
    %131 = arith.addf %128, %130 : vector<16x1xf32>
    %cst_57 = arith.constant 0.000000e+00 : f32
    %132 = vector.broadcast %cst_57 : f32 to vector<16x1xf32>
    %133 = arith.cmpf ogt, %131, %132 : vector<16x1xf32>
    %cst_58 = arith.constant 0.00999999977 : f32
    %134 = vector.broadcast %cst_58 : f32 to vector<16x1xf32>
    %135 = arith.mulf %134, %131 : vector<16x1xf32>
    %136 = arith.select %133, %131, %135 : vector<16x1xi1>, vector<16x1xf32>
    %137 = vector.extract_strided_slice %123 {offsets = [0, 0], sizes = [16, 128], strides = [1, 1]} : vector<16x129xf32> to vector<16x128xf32>
    %138 = vector.extract_strided_slice %8 {offsets = [3, 0], sizes = [1, 128], strides = [1, 1]} : vector<8x128xf32> to vector<1x128xf32>
    %139 = vector.broadcast %138 : vector<1x128xf32> to vector<16x128xf32>
    %140 = arith.addf %137, %139 : vector<16x128xf32>
    %cst_59 = arith.constant dense<0xFF800000> : vector<1xf32>
    %141 = vector.multi_reduction <maximumf>, %136, %cst_59 [0] : vector<16x1xf32> to vector<1xf32>
    %142 = vector.shape_cast %141 : vector<1xf32> to vector<1x1xf32>
    %143 = vector.broadcast %142 : vector<1x1xf32> to vector<16x1xf32>
    %144 = arith.subf %136, %143 : vector<16x1xf32>
    %145 = math.exp %144 : vector<16x1xf32>
    %146 = vector.broadcast %145 : vector<16x1xf32> to vector<16x128xf32>
    %147 = arith.mulf %140, %146 : vector<16x128xf32>
    %148 = tpu.concatenate %147, %145 in 1 : vector<16x128xf32>, vector<16x1xf32> -> vector<16x129xf32>
    %cst_60 = arith.constant dense<0.000000e+00> : vector<10x129xf32>
    %149 = tpu.matmul %5, %148, %cst_60 {dimension_numbers = #tpu.dot_dimension_numbers<[0], [0], [1], [1], [0, 1, 1, 1], [], []>} : vector<16x10xf32>, vector<16x129xf32>, vector<10x129xf32> -> vector<10x129xf32>
    %150 = vector.extract_strided_slice %149 {offsets = [0, 128], sizes = [10, 1], strides = [1, 1]} : vector<10x129xf32> to vector<10x1xf32>
    %151 = vector.extract_strided_slice %149 {offsets = [0, 0], sizes = [10, 128], strides = [1, 1]} : vector<10x129xf32> to vector<10x128xf32>
    %cst_61 = arith.constant 0.000000e+00 : f32
    %152 = vector.broadcast %cst_61 : f32 to vector<10x1xf32>
    %153 = arith.cmpf oeq, %150, %152 : vector<10x1xf32>
    %cst_62 = arith.constant 1.000000e+00 : f32
    %154 = vector.broadcast %cst_62 : f32 to vector<10x1xf32>
    %155 = arith.select %153, %154, %150 : vector<10x1xi1>, vector<10x1xf32>
    %156 = vector.broadcast %155 : vector<10x1xf32> to vector<10x128xf32>
    %157 = arith.divf %151, %156 : vector<10x128xf32>
    %cst_63 = arith.constant 0.000000e+00 : f32
    %158 = vector.broadcast %cst_63 : f32 to vector<10x128xf32>
    %159 = arith.cmpf ogt, %157, %158 : vector<10x128xf32>
    %cst_64 = arith.constant 0.000000e+00 : f32
    %160 = vector.broadcast %cst_64 : f32 to vector<10x128xf32>
    %161 = arith.minimumf %157, %160 : vector<10x128xf32>
    %162 = math.exp %161 : vector<10x128xf32>
    %cst_65 = arith.constant 1.000000e+00 : f32
    %163 = vector.broadcast %cst_65 : f32 to vector<10x128xf32>
    %164 = arith.subf %162, %163 : vector<10x128xf32>
    %165 = arith.select %159, %157, %164 : vector<10x128xi1>, vector<10x128xf32>
    %c1 = arith.constant 1 : index
    %c0_66 = arith.constant 0 : index
    %c0_67 = arith.constant 0 : index
    %166 = vector.load %arg12[%c1, %c0_66, %c0_67] : memref<4x256x384xf32, #tpu.memory_space<vmem>>, vector<1x256x384xf32>
    %167 = vector.shape_cast %166 : vector<1x256x384xf32> to vector<256x384xf32>
    %c1_68 = arith.constant 1 : index
    %c0_69 = arith.constant 0 : index
    %c0_70 = arith.constant 0 : index
    %168 = vector.load %arg19[%c1_68, %c0_69, %c0_70] : memref<4x2x384xf32, #tpu.memory_space<vmem>>, vector<1x2x384xf32>
    %169 = vector.shape_cast %168 : vector<1x2x384xf32> to vector<2x384xf32>
    %170 = vector.extract_strided_slice %167 {offsets = [0, 0], sizes = [128, 384], strides = [1, 1]} : vector<256x384xf32> to vector<128x384xf32>
    %cst_71 = arith.constant dense<0.000000e+00> : vector<10x384xf32>
    %171 = tpu.matmul %165, %170, %cst_71 {dimension_numbers = #tpu.dot_dimension_numbers<[1], [0], [0], [1], [0, 0, 1, 1], [], []>} : vector<10x128xf32>, vector<128x384xf32>, vector<10x384xf32> -> vector<10x384xf32>
    %172 = vector.extract_strided_slice %169 {offsets = [0, 0], sizes = [1, 384], strides = [1, 1]} : vector<2x384xf32> to vector<1x384xf32>
    %173 = vector.broadcast %172 : vector<1x384xf32> to vector<10x384xf32>
    %174 = arith.addf %171, %173 : vector<10x384xf32>
    %175 = vector.extract_strided_slice %167 {offsets = [128, 0], sizes = [128, 384], strides = [1, 1]} : vector<256x384xf32> to vector<128x384xf32>
    %cst_72 = arith.constant dense<0.000000e+00> : vector<10x384xf32>
    %176 = tpu.matmul %120, %175, %cst_72 {dimension_numbers = #tpu.dot_dimension_numbers<[1], [0], [0], [1], [0, 0, 1, 1], [], []>} : vector<10x128xf32>, vector<128x384xf32>, vector<10x384xf32> -> vector<10x384xf32>
    %177 = vector.extract_strided_slice %169 {offsets = [1, 0], sizes = [1, 384], strides = [1, 1]} : vector<2x384xf32> to vector<1x384xf32>
    %178 = vector.broadcast %177 : vector<1x384xf32> to vector<10x384xf32>
    %179 = arith.addf %176, %178 : vector<10x384xf32>
    %180 = vector.extract_strided_slice %174 {offsets = [0, 0], sizes = [10, 128], strides = [1, 1]} : vector<10x384xf32> to vector<10x128xf32>
    %181 = vector.extract_strided_slice %179 {offsets = [0, 0], sizes = [10, 128], strides = [1, 1]} : vector<10x384xf32> to vector<10x128xf32>
    %182 = arith.addf %180, %181 : vector<10x128xf32>
    %183 = arith.negf %182 : vector<10x128xf32>
    %184 = math.exp %183 : vector<10x128xf32>
    %cst_73 = arith.constant 1.000000e+00 : f32
    %185 = vector.broadcast %cst_73 : f32 to vector<10x128xf32>
    %186 = arith.addf %185, %184 : vector<10x128xf32>
    %187 = arith.divf %185, %186 : vector<10x128xf32>
    %188 = vector.extract_strided_slice %174 {offsets = [0, 128], sizes = [10, 128], strides = [1, 1]} : vector<10x384xf32> to vector<10x128xf32>
    %189 = vector.extract_strided_slice %179 {offsets = [0, 128], sizes = [10, 128], strides = [1, 1]} : vector<10x384xf32> to vector<10x128xf32>
    %190 = arith.addf %188, %189 : vector<10x128xf32>
    %191 = arith.negf %190 : vector<10x128xf32>
    %192 = math.exp %191 : vector<10x128xf32>
    %cst_74 = arith.constant 1.000000e+00 : f32
    %193 = vector.broadcast %cst_74 : f32 to vector<10x128xf32>
    %194 = arith.addf %193, %192 : vector<10x128xf32>
    %195 = arith.divf %193, %194 : vector<10x128xf32>
    %196 = vector.extract_strided_slice %174 {offsets = [0, 256], sizes = [10, 128], strides = [1, 1]} : vector<10x384xf32> to vector<10x128xf32>
    %197 = vector.extract_strided_slice %179 {offsets = [0, 256], sizes = [10, 128], strides = [1, 1]} : vector<10x384xf32> to vector<10x128xf32>
    %198 = arith.mulf %187, %197 : vector<10x128xf32>
    %199 = arith.addf %196, %198 : vector<10x128xf32>
    %200 = math.tanh %199 : vector<10x128xf32>
    %cst_75 = arith.constant 1.000000e+00 : f32
    %201 = vector.broadcast %cst_75 : f32 to vector<10x128xf32>
    %202 = arith.subf %201, %195 : vector<10x128xf32>
    %203 = arith.mulf %202, %200 : vector<10x128xf32>
    %204 = arith.mulf %195, %120 : vector<10x128xf32>
    %205 = arith.addf %203, %204 : vector<10x128xf32>
    %cst_76 = arith.constant 0.000000e+00 : f32
    %206 = vector.broadcast %cst_76 : f32 to vector<10x128xf32>
    %207 = arith.maximumf %205, %206 : vector<10x128xf32>
    %cst_77 = arith.constant dense<0.000000e+00> : vector<2x128xf32>
    %208 = tpu.matmul %7, %207, %cst_77 {dimension_numbers = #tpu.dot_dimension_numbers<[0], [0], [1], [1], [0, 1, 1, 1], [], []>} : vector<10x2xf32>, vector<10x128xf32>, vector<2x128xf32> -> vector<2x128xf32>
    %cst_78 = arith.constant 0.000000e+00 : f32
    %209 = vector.broadcast %cst_78 : f32 to vector<2x128xf32>
    %210 = arith.maximumf %208, %209 : vector<2x128xf32>
    %c0_79 = arith.constant 0 : index
    %c0_80 = arith.constant 0 : index
    %c0_81 = arith.constant 0 : index
    %211 = vector.load %arg11[%c0_79, %c0_80, %c0_81] : memref<2x128x129xf32, #tpu.memory_space<vmem>>, vector<1x128x129xf32>
    %212 = vector.shape_cast %211 : vector<1x128x129xf32> to vector<128x129xf32>
    %cst_82 = arith.constant dense<0.000000e+00> : vector<10x129xf32>
    %213 = tpu.matmul %207, %212, %cst_82 {dimension_numbers = #tpu.dot_dimension_numbers<[1], [0], [0], [1], [0, 0, 1, 1], [], []>} : vector<10x128xf32>, vector<128x129xf32>, vector<10x129xf32> -> vector<10x129xf32>
    %214 = vector.extract_strided_slice %10 {offsets = [0, 2], sizes = [128, 1], strides = [1, 1]} : vector<128x4xf32> to vector<128x1xf32>
    %cst_83 = arith.constant dense<0.000000e+00> : vector<2x1xf32>
    %215 = tpu.matmul %210, %214, %cst_83 {dimension_numbers = #tpu.dot_dimension_numbers<[1], [0], [0], [1], [0, 0, 1, 1], [], []>} : vector<2x128xf32>, vector<128x1xf32>, vector<2x1xf32> -> vector<2x1xf32>
    %cst_84 = arith.constant dense<0.000000e+00> : vector<10x1xf32>
    %216 = tpu.matmul %7, %215, %cst_84 {dimension_numbers = #tpu.dot_dimension_numbers<[1], [0], [0], [1], [0, 0, 1, 1], [], []>} : vector<10x2xf32>, vector<2x1xf32>, vector<10x1xf32> -> vector<10x1xf32>
    %217 = vector.extract_strided_slice %213 {offsets = [0, 128], sizes = [10, 1], strides = [1, 1]} : vector<10x129xf32> to vector<10x1xf32>
    %218 = arith.addf %216, %217 : vector<10x1xf32>
    %219 = vector.extract_strided_slice %9 {offsets = [0, 2], sizes = [1, 1], strides = [1, 1]} : vector<1x4xf32> to vector<1x1xf32>
    %220 = vector.broadcast %219 : vector<1x1xf32> to vector<10x1xf32>
    %221 = arith.addf %218, %220 : vector<10x1xf32>
    %cst_85 = arith.constant 0.000000e+00 : f32
    %222 = vector.broadcast %cst_85 : f32 to vector<10x1xf32>
    %223 = arith.cmpf ogt, %221, %222 : vector<10x1xf32>
    %cst_86 = arith.constant 0.00999999977 : f32
    %224 = vector.broadcast %cst_86 : f32 to vector<10x1xf32>
    %225 = arith.mulf %224, %221 : vector<10x1xf32>
    %226 = arith.select %223, %221, %225 : vector<10x1xi1>, vector<10x1xf32>
    %227 = vector.extract_strided_slice %213 {offsets = [0, 0], sizes = [10, 128], strides = [1, 1]} : vector<10x129xf32> to vector<10x128xf32>
    %228 = vector.extract_strided_slice %8 {offsets = [4, 0], sizes = [1, 128], strides = [1, 1]} : vector<8x128xf32> to vector<1x128xf32>
    %229 = vector.broadcast %228 : vector<1x128xf32> to vector<10x128xf32>
    %230 = arith.addf %227, %229 : vector<10x128xf32>
    %cst_87 = arith.constant dense<0xFF800000> : vector<1xf32>
    %231 = vector.multi_reduction <maximumf>, %226, %cst_87 [0] : vector<10x1xf32> to vector<1xf32>
    %232 = vector.shape_cast %231 : vector<1xf32> to vector<1x1xf32>
    %233 = vector.broadcast %232 : vector<1x1xf32> to vector<10x1xf32>
    %234 = arith.subf %226, %233 : vector<10x1xf32>
    %235 = math.exp %234 : vector<10x1xf32>
    %236 = vector.broadcast %235 : vector<10x1xf32> to vector<10x128xf32>
    %237 = arith.mulf %230, %236 : vector<10x128xf32>
    %238 = tpu.concatenate %237, %235 in 1 : vector<10x128xf32>, vector<10x1xf32> -> vector<10x129xf32>
    %cst_88 = arith.constant dense<0.000000e+00> : vector<2x129xf32>
    %239 = tpu.matmul %7, %238, %cst_88 {dimension_numbers = #tpu.dot_dimension_numbers<[0], [0], [1], [1], [0, 1, 1, 1], [], []>} : vector<10x2xf32>, vector<10x129xf32>, vector<2x129xf32> -> vector<2x129xf32>
    %240 = vector.extract_strided_slice %239 {offsets = [0, 128], sizes = [2, 1], strides = [1, 1]} : vector<2x129xf32> to vector<2x1xf32>
    %241 = vector.extract_strided_slice %239 {offsets = [0, 0], sizes = [2, 128], strides = [1, 1]} : vector<2x129xf32> to vector<2x128xf32>
    %cst_89 = arith.constant 0.000000e+00 : f32
    %242 = vector.broadcast %cst_89 : f32 to vector<2x1xf32>
    %243 = arith.cmpf oeq, %240, %242 : vector<2x1xf32>
    %cst_90 = arith.constant 1.000000e+00 : f32
    %244 = vector.broadcast %cst_90 : f32 to vector<2x1xf32>
    %245 = arith.select %243, %244, %240 : vector<2x1xi1>, vector<2x1xf32>
    %246 = vector.broadcast %245 : vector<2x1xf32> to vector<2x128xf32>
    %247 = arith.divf %241, %246 : vector<2x128xf32>
    %cst_91 = arith.constant 0.000000e+00 : f32
    %248 = vector.broadcast %cst_91 : f32 to vector<2x128xf32>
    %249 = arith.cmpf ogt, %247, %248 : vector<2x128xf32>
    %cst_92 = arith.constant 0.000000e+00 : f32
    %250 = vector.broadcast %cst_92 : f32 to vector<2x128xf32>
    %251 = arith.minimumf %247, %250 : vector<2x128xf32>
    %252 = math.exp %251 : vector<2x128xf32>
    %cst_93 = arith.constant 1.000000e+00 : f32
    %253 = vector.broadcast %cst_93 : f32 to vector<2x128xf32>
    %254 = arith.subf %252, %253 : vector<2x128xf32>
    %255 = arith.select %249, %247, %254 : vector<2x128xi1>, vector<2x128xf32>
    %c2 = arith.constant 2 : index
    %c0_94 = arith.constant 0 : index
    %c0_95 = arith.constant 0 : index
    %256 = vector.load %arg12[%c2, %c0_94, %c0_95] : memref<4x256x384xf32, #tpu.memory_space<vmem>>, vector<1x256x384xf32>
    %257 = vector.shape_cast %256 : vector<1x256x384xf32> to vector<256x384xf32>
    %c2_96 = arith.constant 2 : index
    %c0_97 = arith.constant 0 : index
    %c0_98 = arith.constant 0 : index
    %258 = vector.load %arg19[%c2_96, %c0_97, %c0_98] : memref<4x2x384xf32, #tpu.memory_space<vmem>>, vector<1x2x384xf32>
    %259 = vector.shape_cast %258 : vector<1x2x384xf32> to vector<2x384xf32>
    %260 = vector.extract_strided_slice %257 {offsets = [0, 0], sizes = [128, 384], strides = [1, 1]} : vector<256x384xf32> to vector<128x384xf32>
    %cst_99 = arith.constant dense<0.000000e+00> : vector<2x384xf32>
    %261 = tpu.matmul %255, %260, %cst_99 {dimension_numbers = #tpu.dot_dimension_numbers<[1], [0], [0], [1], [0, 0, 1, 1], [], []>} : vector<2x128xf32>, vector<128x384xf32>, vector<2x384xf32> -> vector<2x384xf32>
    %262 = vector.extract_strided_slice %259 {offsets = [0, 0], sizes = [1, 384], strides = [1, 1]} : vector<2x384xf32> to vector<1x384xf32>
    %263 = vector.broadcast %262 : vector<1x384xf32> to vector<2x384xf32>
    %264 = arith.addf %261, %263 : vector<2x384xf32>
    %265 = vector.extract_strided_slice %257 {offsets = [128, 0], sizes = [128, 384], strides = [1, 1]} : vector<256x384xf32> to vector<128x384xf32>
    %cst_100 = arith.constant dense<0.000000e+00> : vector<2x384xf32>
    %266 = tpu.matmul %208, %265, %cst_100 {dimension_numbers = #tpu.dot_dimension_numbers<[1], [0], [0], [1], [0, 0, 1, 1], [], []>} : vector<2x128xf32>, vector<128x384xf32>, vector<2x384xf32> -> vector<2x384xf32>
    %267 = vector.extract_strided_slice %259 {offsets = [1, 0], sizes = [1, 384], strides = [1, 1]} : vector<2x384xf32> to vector<1x384xf32>
    %268 = vector.broadcast %267 : vector<1x384xf32> to vector<2x384xf32>
    %269 = arith.addf %266, %268 : vector<2x384xf32>
    %270 = vector.extract_strided_slice %264 {offsets = [0, 0], sizes = [2, 128], strides = [1, 1]} : vector<2x384xf32> to vector<2x128xf32>
    %271 = vector.extract_strided_slice %269 {offsets = [0, 0], sizes = [2, 128], strides = [1, 1]} : vector<2x384xf32> to vector<2x128xf32>
    %272 = arith.addf %270, %271 : vector<2x128xf32>
    %273 = arith.negf %272 : vector<2x128xf32>
    %274 = math.exp %273 : vector<2x128xf32>
    %cst_101 = arith.constant 1.000000e+00 : f32
    %275 = vector.broadcast %cst_101 : f32 to vector<2x128xf32>
    %276 = arith.addf %275, %274 : vector<2x128xf32>
    %277 = arith.divf %275, %276 : vector<2x128xf32>
    %278 = vector.extract_strided_slice %264 {offsets = [0, 128], sizes = [2, 128], strides = [1, 1]} : vector<2x384xf32> to vector<2x128xf32>
    %279 = vector.extract_strided_slice %269 {offsets = [0, 128], sizes = [2, 128], strides = [1, 1]} : vector<2x384xf32> to vector<2x128xf32>
    %280 = arith.addf %278, %279 : vector<2x128xf32>
    %281 = arith.negf %280 : vector<2x128xf32>
    %282 = math.exp %281 : vector<2x128xf32>
    %cst_102 = arith.constant 1.000000e+00 : f32
    %283 = vector.broadcast %cst_102 : f32 to vector<2x128xf32>
    %284 = arith.addf %283, %282 : vector<2x128xf32>
    %285 = arith.divf %283, %284 : vector<2x128xf32>
    %286 = vector.extract_strided_slice %264 {offsets = [0, 256], sizes = [2, 128], strides = [1, 1]} : vector<2x384xf32> to vector<2x128xf32>
    %287 = vector.extract_strided_slice %269 {offsets = [0, 256], sizes = [2, 128], strides = [1, 1]} : vector<2x384xf32> to vector<2x128xf32>
    %288 = arith.mulf %277, %287 : vector<2x128xf32>
    %289 = arith.addf %286, %288 : vector<2x128xf32>
    %290 = math.tanh %289 : vector<2x128xf32>
    %cst_103 = arith.constant 1.000000e+00 : f32
    %291 = vector.broadcast %cst_103 : f32 to vector<2x128xf32>
    %292 = arith.subf %291, %285 : vector<2x128xf32>
    %293 = arith.mulf %292, %290 : vector<2x128xf32>
    %294 = arith.mulf %285, %208 : vector<2x128xf32>
    %295 = arith.addf %293, %294 : vector<2x128xf32>
    %cst_104 = arith.constant 0.000000e+00 : f32
    %296 = vector.broadcast %cst_104 : f32 to vector<2x128xf32>
    %297 = arith.maximumf %295, %296 : vector<2x128xf32>
    %c1_105 = arith.constant 1 : index
    %c0_106 = arith.constant 0 : index
    %c0_107 = arith.constant 0 : index
    %298 = vector.load %arg11[%c1_105, %c0_106, %c0_107] : memref<2x128x129xf32, #tpu.memory_space<vmem>>, vector<1x128x129xf32>
    %299 = vector.shape_cast %298 : vector<1x128x129xf32> to vector<128x129xf32>
    %cst_108 = arith.constant dense<0.000000e+00> : vector<10x129xf32>
    %300 = tpu.matmul %207, %299, %cst_108 {dimension_numbers = #tpu.dot_dimension_numbers<[1], [0], [0], [1], [0, 0, 1, 1], [], []>} : vector<10x128xf32>, vector<128x129xf32>, vector<10x129xf32> -> vector<10x129xf32>
    %301 = vector.extract_strided_slice %10 {offsets = [0, 3], sizes = [128, 1], strides = [1, 1]} : vector<128x4xf32> to vector<128x1xf32>
    %cst_109 = arith.constant dense<0.000000e+00> : vector<2x1xf32>
    %302 = tpu.matmul %297, %301, %cst_109 {dimension_numbers = #tpu.dot_dimension_numbers<[1], [0], [0], [1], [0, 0, 1, 1], [], []>} : vector<2x128xf32>, vector<128x1xf32>, vector<2x1xf32> -> vector<2x1xf32>
    %cst_110 = arith.constant dense<0.000000e+00> : vector<10x1xf32>
    %303 = tpu.matmul %7, %302, %cst_110 {dimension_numbers = #tpu.dot_dimension_numbers<[1], [0], [0], [1], [0, 0, 1, 1], [], []>} : vector<10x2xf32>, vector<2x1xf32>, vector<10x1xf32> -> vector<10x1xf32>
    %304 = vector.extract_strided_slice %300 {offsets = [0, 128], sizes = [10, 1], strides = [1, 1]} : vector<10x129xf32> to vector<10x1xf32>
    %305 = arith.addf %303, %304 : vector<10x1xf32>
    %306 = vector.extract_strided_slice %9 {offsets = [0, 3], sizes = [1, 1], strides = [1, 1]} : vector<1x4xf32> to vector<1x1xf32>
    %307 = vector.broadcast %306 : vector<1x1xf32> to vector<10x1xf32>
    %308 = arith.addf %305, %307 : vector<10x1xf32>
    %cst_111 = arith.constant 0.000000e+00 : f32
    %309 = vector.broadcast %cst_111 : f32 to vector<10x1xf32>
    %310 = arith.cmpf ogt, %308, %309 : vector<10x1xf32>
    %cst_112 = arith.constant 0.00999999977 : f32
    %311 = vector.broadcast %cst_112 : f32 to vector<10x1xf32>
    %312 = arith.mulf %311, %308 : vector<10x1xf32>
    %313 = arith.select %310, %308, %312 : vector<10x1xi1>, vector<10x1xf32>
    %314 = vector.extract_strided_slice %300 {offsets = [0, 0], sizes = [10, 128], strides = [1, 1]} : vector<10x129xf32> to vector<10x128xf32>
    %315 = vector.extract_strided_slice %8 {offsets = [5, 0], sizes = [1, 128], strides = [1, 1]} : vector<8x128xf32> to vector<1x128xf32>
    %316 = vector.broadcast %315 : vector<1x128xf32> to vector<10x128xf32>
    %317 = arith.addf %314, %316 : vector<10x128xf32>
    %cst_113 = arith.constant dense<0xFF800000> : vector<1xf32>
    %318 = vector.multi_reduction <maximumf>, %313, %cst_113 [0] : vector<10x1xf32> to vector<1xf32>
    %319 = vector.shape_cast %318 : vector<1xf32> to vector<1x1xf32>
    %320 = vector.broadcast %319 : vector<1x1xf32> to vector<10x1xf32>
    %321 = arith.subf %313, %320 : vector<10x1xf32>
    %322 = math.exp %321 : vector<10x1xf32>
    %323 = vector.broadcast %322 : vector<10x1xf32> to vector<10x128xf32>
    %324 = arith.mulf %317, %323 : vector<10x128xf32>
    %325 = tpu.concatenate %324, %322 in 1 : vector<10x128xf32>, vector<10x1xf32> -> vector<10x129xf32>
    %cst_114 = arith.constant dense<0.000000e+00> : vector<2x129xf32>
    %326 = tpu.matmul %7, %325, %cst_114 {dimension_numbers = #tpu.dot_dimension_numbers<[0], [0], [1], [1], [0, 1, 1, 1], [], []>} : vector<10x2xf32>, vector<10x129xf32>, vector<2x129xf32> -> vector<2x129xf32>
    %327 = vector.extract_strided_slice %326 {offsets = [0, 128], sizes = [2, 1], strides = [1, 1]} : vector<2x129xf32> to vector<2x1xf32>
    %328 = vector.extract_strided_slice %326 {offsets = [0, 0], sizes = [2, 128], strides = [1, 1]} : vector<2x129xf32> to vector<2x128xf32>
    %cst_115 = arith.constant 0.000000e+00 : f32
    %329 = vector.broadcast %cst_115 : f32 to vector<2x1xf32>
    %330 = arith.cmpf oeq, %327, %329 : vector<2x1xf32>
    %cst_116 = arith.constant 1.000000e+00 : f32
    %331 = vector.broadcast %cst_116 : f32 to vector<2x1xf32>
    %332 = arith.select %330, %331, %327 : vector<2x1xi1>, vector<2x1xf32>
    %333 = vector.broadcast %332 : vector<2x1xf32> to vector<2x128xf32>
    %334 = arith.divf %328, %333 : vector<2x128xf32>
    %cst_117 = arith.constant 0.000000e+00 : f32
    %335 = vector.broadcast %cst_117 : f32 to vector<2x128xf32>
    %336 = arith.cmpf ogt, %334, %335 : vector<2x128xf32>
    %cst_118 = arith.constant 0.000000e+00 : f32
    %337 = vector.broadcast %cst_118 : f32 to vector<2x128xf32>
    %338 = arith.minimumf %334, %337 : vector<2x128xf32>
    %339 = math.exp %338 : vector<2x128xf32>
    %cst_119 = arith.constant 1.000000e+00 : f32
    %340 = vector.broadcast %cst_119 : f32 to vector<2x128xf32>
    %341 = arith.subf %339, %340 : vector<2x128xf32>
    %342 = arith.select %336, %334, %341 : vector<2x128xi1>, vector<2x128xf32>
    %c3 = arith.constant 3 : index
    %c0_120 = arith.constant 0 : index
    %c0_121 = arith.constant 0 : index
    %343 = vector.load %arg12[%c3, %c0_120, %c0_121] : memref<4x256x384xf32, #tpu.memory_space<vmem>>, vector<1x256x384xf32>
    %344 = vector.shape_cast %343 : vector<1x256x384xf32> to vector<256x384xf32>
    %c3_122 = arith.constant 3 : index
    %c0_123 = arith.constant 0 : index
    %c0_124 = arith.constant 0 : index
    %345 = vector.load %arg19[%c3_122, %c0_123, %c0_124] : memref<4x2x384xf32, #tpu.memory_space<vmem>>, vector<1x2x384xf32>
    %346 = vector.shape_cast %345 : vector<1x2x384xf32> to vector<2x384xf32>
    %347 = vector.extract_strided_slice %344 {offsets = [0, 0], sizes = [128, 384], strides = [1, 1]} : vector<256x384xf32> to vector<128x384xf32>
    %cst_125 = arith.constant dense<0.000000e+00> : vector<2x384xf32>
    %348 = tpu.matmul %342, %347, %cst_125 {dimension_numbers = #tpu.dot_dimension_numbers<[1], [0], [0], [1], [0, 0, 1, 1], [], []>} : vector<2x128xf32>, vector<128x384xf32>, vector<2x384xf32> -> vector<2x384xf32>
    %349 = vector.extract_strided_slice %346 {offsets = [0, 0], sizes = [1, 384], strides = [1, 1]} : vector<2x384xf32> to vector<1x384xf32>
    %350 = vector.broadcast %349 : vector<1x384xf32> to vector<2x384xf32>
    %351 = arith.addf %348, %350 : vector<2x384xf32>
    %352 = vector.extract_strided_slice %344 {offsets = [128, 0], sizes = [128, 384], strides = [1, 1]} : vector<256x384xf32> to vector<128x384xf32>
    %cst_126 = arith.constant dense<0.000000e+00> : vector<2x384xf32>
    %353 = tpu.matmul %295, %352, %cst_126 {dimension_numbers = #tpu.dot_dimension_numbers<[1], [0], [0], [1], [0, 0, 1, 1], [], []>} : vector<2x128xf32>, vector<128x384xf32>, vector<2x384xf32> -> vector<2x384xf32>
    %354 = vector.extract_strided_slice %346 {offsets = [1, 0], sizes = [1, 384], strides = [1, 1]} : vector<2x384xf32> to vector<1x384xf32>
    %355 = vector.broadcast %354 : vector<1x384xf32> to vector<2x384xf32>
    %356 = arith.addf %353, %355 : vector<2x384xf32>
    %357 = vector.extract_strided_slice %351 {offsets = [0, 0], sizes = [2, 128], strides = [1, 1]} : vector<2x384xf32> to vector<2x128xf32>
    %358 = vector.extract_strided_slice %356 {offsets = [0, 0], sizes = [2, 128], strides = [1, 1]} : vector<2x384xf32> to vector<2x128xf32>
    %359 = arith.addf %357, %358 : vector<2x128xf32>
    %360 = arith.negf %359 : vector<2x128xf32>
    %361 = math.exp %360 : vector<2x128xf32>
    %cst_127 = arith.constant 1.000000e+00 : f32
    %362 = vector.broadcast %cst_127 : f32 to vector<2x128xf32>
    %363 = arith.addf %362, %361 : vector<2x128xf32>
    %364 = arith.divf %362, %363 : vector<2x128xf32>
    %365 = vector.extract_strided_slice %351 {offsets = [0, 128], sizes = [2, 128], strides = [1, 1]} : vector<2x384xf32> to vector<2x128xf32>
    %366 = vector.extract_strided_slice %356 {offsets = [0, 128], sizes = [2, 128], strides = [1, 1]} : vector<2x384xf32> to vector<2x128xf32>
    %367 = arith.addf %365, %366 : vector<2x128xf32>
    %368 = arith.negf %367 : vector<2x128xf32>
    %369 = math.exp %368 : vector<2x128xf32>
    %cst_128 = arith.constant 1.000000e+00 : f32
    %370 = vector.broadcast %cst_128 : f32 to vector<2x128xf32>
    %371 = arith.addf %370, %369 : vector<2x128xf32>
    %372 = arith.divf %370, %371 : vector<2x128xf32>
    %373 = vector.extract_strided_slice %351 {offsets = [0, 256], sizes = [2, 128], strides = [1, 1]} : vector<2x384xf32> to vector<2x128xf32>
    %374 = vector.extract_strided_slice %356 {offsets = [0, 256], sizes = [2, 128], strides = [1, 1]} : vector<2x384xf32> to vector<2x128xf32>
    %375 = arith.mulf %364, %374 : vector<2x128xf32>
    %376 = arith.addf %373, %375 : vector<2x128xf32>
    %377 = math.tanh %376 : vector<2x128xf32>
    %cst_129 = arith.constant 1.000000e+00 : f32
    %378 = vector.broadcast %cst_129 : f32 to vector<2x128xf32>
    %379 = arith.subf %378, %372 : vector<2x128xf32>
    %380 = arith.mulf %379, %377 : vector<2x128xf32>
    %381 = arith.mulf %372, %295 : vector<2x128xf32>
    %382 = arith.addf %380, %381 : vector<2x128xf32>
    %c0_130 = arith.constant 0 : index
    %c0_131 = arith.constant 0 : index
    %383 = vector.load %arg5[%c0_130, %c0_131] : memref<2x32xf32, #tpu.memory_space<vmem>>, vector<2x32xf32>
    %c0_132 = arith.constant 0 : index
    %c0_133 = arith.constant 0 : index
    %384 = vector.load %arg13[%c0_132, %c0_133] : memref<32x128xf32, #tpu.memory_space<vmem>>, vector<32x128xf32>
    %cst_134 = arith.constant dense<0.000000e+00> : vector<2x128xf32>
    %385 = tpu.matmul %383, %384, %cst_134 {dimension_numbers = #tpu.dot_dimension_numbers<[1], [0], [0], [1], [0, 0, 1, 1], [], []>} : vector<2x32xf32>, vector<32x128xf32>, vector<2x128xf32> -> vector<2x128xf32>
    %386 = vector.extract_strided_slice %8 {offsets = [6, 0], sizes = [1, 128], strides = [1, 1]} : vector<8x128xf32> to vector<1x128xf32>
    %387 = vector.broadcast %386 : vector<1x128xf32> to vector<2x128xf32>
    %388 = arith.addf %385, %387 : vector<2x128xf32>
    %cst_135 = arith.constant 0.000000e+00 : f32
    %389 = vector.broadcast %cst_135 : f32 to vector<2x128xf32>
    %390 = arith.maximumf %388, %389 : vector<2x128xf32>
    %c0_136 = arith.constant 0 : index
    %c0_137 = arith.constant 0 : index
    %391 = vector.load %arg14[%c0_136, %c0_137] : memref<128x128xf32, #tpu.memory_space<vmem>>, vector<128x128xf32>
    %cst_138 = arith.constant dense<0.000000e+00> : vector<2x128xf32>
    %392 = tpu.matmul %390, %391, %cst_138 {dimension_numbers = #tpu.dot_dimension_numbers<[1], [0], [0], [1], [0, 0, 1, 1], [], []>} : vector<2x128xf32>, vector<128x128xf32>, vector<2x128xf32> -> vector<2x128xf32>
    %393 = vector.extract_strided_slice %8 {offsets = [7, 0], sizes = [1, 128], strides = [1, 1]} : vector<8x128xf32> to vector<1x128xf32>
    %394 = vector.broadcast %393 : vector<1x128xf32> to vector<2x128xf32>
    %395 = arith.addf %392, %394 : vector<2x128xf32>
    %cst_139 = arith.constant 0.000000e+00 : f32
    %396 = vector.broadcast %cst_139 : f32 to vector<2x128xf32>
    %397 = arith.maximumf %395, %396 : vector<2x128xf32>
    %c0_140 = arith.constant 0 : index
    %c0_141 = arith.constant 0 : index
    %398 = vector.load %arg15[%c0_140, %c0_141] : memref<256x64xf32, #tpu.memory_space<vmem>>, vector<256x64xf32>
    %399 = vector.extract_strided_slice %398 {offsets = [0, 0], sizes = [128, 64], strides = [1, 1]} : vector<256x64xf32> to vector<128x64xf32>
    %cst_142 = arith.constant dense<0.000000e+00> : vector<2x64xf32>
    %400 = tpu.matmul %382, %399, %cst_142 {dimension_numbers = #tpu.dot_dimension_numbers<[1], [0], [0], [1], [0, 0, 1, 1], [], []>} : vector<2x128xf32>, vector<128x64xf32>, vector<2x64xf32> -> vector<2x64xf32>
    %401 = vector.extract_strided_slice %398 {offsets = [128, 0], sizes = [128, 64], strides = [1, 1]} : vector<256x64xf32> to vector<128x64xf32>
    %cst_143 = arith.constant dense<0.000000e+00> : vector<2x64xf32>
    %402 = tpu.matmul %397, %401, %cst_143 {dimension_numbers = #tpu.dot_dimension_numbers<[1], [0], [0], [1], [0, 0, 1, 1], [], []>} : vector<2x128xf32>, vector<128x64xf32>, vector<2x64xf32> -> vector<2x64xf32>
    %403 = arith.addf %400, %402 : vector<2x64xf32>
    %c0_144 = arith.constant 0 : index
    %c0_145 = arith.constant 0 : index
    %404 = vector.load %arg20[%c0_144, %c0_145] : memref<1x64xf32, #tpu.memory_space<vmem>>, vector<1x64xf32>
    %405 = vector.broadcast %404 : vector<1x64xf32> to vector<2x64xf32>
    %406 = arith.addf %403, %405 : vector<2x64xf32>
    %cst_146 = arith.constant 0.000000e+00 : f32
    %407 = vector.broadcast %cst_146 : f32 to vector<2x64xf32>
    %408 = arith.maximumf %406, %407 : vector<2x64xf32>
    %c0_147 = arith.constant 0 : index
    %c0_148 = arith.constant 0 : index
    %409 = vector.load %arg16[%c0_147, %c0_148] : memref<64x11xf32, #tpu.memory_space<vmem>>, vector<64x11xf32>
    %cst_149 = arith.constant dense<0.000000e+00> : vector<2x11xf32>
    %410 = tpu.matmul %408, %409, %cst_149 {dimension_numbers = #tpu.dot_dimension_numbers<[1], [0], [0], [1], [0, 0, 1, 1], [], []>} : vector<2x64xf32>, vector<64x11xf32>, vector<2x11xf32> -> vector<2x11xf32>
    %c0_150 = arith.constant 0 : index
    %c0_151 = arith.constant 0 : index
    %411 = vector.load %arg21[%c0_150, %c0_151] : memref<1x11xf32, #tpu.memory_space<vmem>>, vector<1x11xf32>
    %412 = vector.broadcast %411 : vector<1x11xf32> to vector<2x11xf32>
    %413 = arith.addf %410, %412 : vector<2x11xf32>
    %c0_152 = arith.constant 0 : index
    %c0_153 = arith.constant 0 : index
    %414 = vector.load %arg22[%c0_152, %c0_153] : memref<2x11xf32, #tpu.memory_space<vmem>>, vector<2x11xf32>
    tpu.vector_store %arg22[%c0_152, %c0_153], %413 {strides = array<i32>} : memref<2x11xf32, #tpu.memory_space<vmem>>, vector<2x11xf32>,
    return
  }
}

</mosaic_0001>

<llo_original>
// kernel: bioact_forward.1
$region0: #{bioact_forward.1}
  #allocation0 [shape = 'u32[]', space=smem, size = 0x4, offset = 0x4, fixed_abs, tag = 'smem constant byte address 0x4 - core index']
  #allocation1 [shape = 'u32[144,128]{1,0:T(1,128)}', space=vmem, size = 0x12000, scoped, tag = 'internal scratch']
  %s0 = inlined_call_operand.vmem [shape: f32[10,16], index: 0, kind: input, shape index: {}]
  %s1 = inlined_call_operand.vmem [shape: f32[16,8], index: 1, kind: input, shape index: {}]
  %s2 = inlined_call_operand.vmem [shape: bf16[16,10], index: 2, kind: input, shape index: {}]
  %s3 = inlined_call_operand.vmem [shape: bf16[16,10], index: 3, kind: input, shape index: {}]
  %s4 = inlined_call_operand.vmem [shape: bf16[10,2], index: 4, kind: input, shape index: {}]
  %s5 = inlined_call_operand.vmem [shape: f32[2,32], index: 5, kind: input, shape index: {}]
  %s6 = inlined_call_operand.vmem [shape: f32[16,256], index: 6, kind: input, shape index: {}]
  %s7 = inlined_call_operand.vmem [shape: f32[8,128], index: 7, kind: input, shape index: {}]
  %s8 = inlined_call_operand.vmem [shape: f32[128,129], index: 8, kind: input, shape index: {}]
  %s9 = inlined_call_operand.vmem [shape: f32[128,4], index: 9, kind: input, shape index: {}]
  %s10 = inlined_call_operand.vmem [shape: f32[128,129], index: 10, kind: input, shape index: {}]
  %s11 = inlined_call_operand.vmem [shape: f32[2,128,129], index: 11, kind: input, shape index: {}]
  %s12 = inlined_call_operand.vmem [shape: f32[4,256,384], index: 12, kind: input, shape index: {}]
  %s13 = inlined_call_operand.vmem [shape: f32[32,128], index: 13, kind: input, shape index: {}]
  %s14 = inlined_call_operand.vmem [shape: f32[128,128], index: 14, kind: input, shape index: {}]
  %s15 = inlined_call_operand.vmem [shape: f32[256,64], index: 15, kind: input, shape index: {}]
  %s16 = inlined_call_operand.vmem [shape: f32[64,11], index: 16, kind: input, shape index: {}]
  %s17 = inlined_call_operand.vmem [shape: f32[8,128], index: 17, kind: input, shape index: {}]
  %s18 = inlined_call_operand.vmem [shape: f32[1,4], index: 18, kind: input, shape index: {}]
  %s19 = inlined_call_operand.vmem [shape: f32[4,2,384], index: 19, kind: input, shape index: {}]
  %s20 = inlined_call_operand.vmem [shape: f32[1,64], index: 20, kind: input, shape index: {}]
  %s21 = inlined_call_operand.vmem [shape: f32[1,11], index: 21, kind: input, shape index: {}]
  %s22 = inlined_call_operand.hbm [shape: f32[2,11], index: 22, kind: output, shape index: {}]
  %s23 = sld [smem:[#allocation0]]
  $region98: #{bioact_forward.1} parent=0
    _
  %s25 = ssub.s32 1, %s23
  %s26 = scalar_select 0, %s25, %s23
  $region1: #{bioact_forward.1} parent=0
    #allocation2 [shape = 'u8[1024]{0}', space=vmem, size = 0x400, scoped, tag = 'output window, operand 0, single buffered']
    #allocation3 [shape = 's32[1]{0}', space=sflag, size = 0x4, scoped, tag = 'scoped memory for bioact_forward.1']
    %27 = vsyncpa [#allocation3], 0
    // Predicated region
    $region2: #{bioact_forward.1} parent=1 // pred_check
      _
    $region3: #{bioact_forward.1} parent=1 // pred_check_branch
      %29 = sbr.rel (0) target = $region5
    $region4: #{bioact_forward.1} parent=1 // pred_region
      _
    $region5: #{bioact_forward.1} parent=1 // pred_fallthru
      _
    // Predicated region
    $region6: #{bioact_forward.1} parent=1 // pred_check
      _
    $region7: #{bioact_forward.1} parent=1 // pred_check_branch
      %31 = sbr.rel (0) target = $region9
    $region8: #{bioact_forward.1} parent=1 // pred_region
      _
    $region9: #{bioact_forward.1} parent=1 // pred_fallthru
      _
    // Predicated region
    $region10: #{bioact_forward.1} parent=1 // pred_check
      _
    $region11: #{bioact_forward.1} parent=1 // pred_check_branch
      %33 = sbr.rel (0) target = $region13
    $region12: #{bioact_forward.1} parent=1 // pred_region
      _
    $region13: #{bioact_forward.1} parent=1 // pred_fallthru
      _
    // Predicated region
    $region14: #{bioact_forward.1} parent=1 // pred_check
      _
    $region15: #{bioact_forward.1} parent=1 // pred_check_branch
      %35 = sbr.rel (0) target = $region17
    $region16: #{bioact_forward.1} parent=1 // pred_region
      _
    $region17: #{bioact_forward.1} parent=1 // pred_fallthru
      _
    // Predicated region
    $region18: #{bioact_forward.1} parent=1 // pred_check
      _
    $region19: #{bioact_forward.1} parent=1 // pred_check_branch
      %37 = sbr.rel (0) target = $region21
    $region20: #{bioact_forward.1} parent=1 // pred_region
      _
    $region21: #{bioact_forward.1} parent=1 // pred_fallthru
      _
    // Predicated region
    $region22: #{bioact_forward.1} parent=1 // pred_check
      _
    $region23: #{bioact_forward.1} parent=1 // pred_check_branch
      %39 = sbr.rel (0) target = $region25
    $region24: #{bioact_forward.1} parent=1 // pred_region
      _
    $region25: #{bioact_forward.1} parent=1 // pred_fallthru
      _
    // Predicated region
    $region26: #{bioact_forward.1} parent=1 // pred_check
      _
    $region27: #{bioact_forward.1} parent=1 // pred_check_branch
      %41 = sbr.rel (0) target = $region29
    $region28: #{bioact_forward.1} parent=1 // pred_region
      _
    $region29: #{bioact_forward.1} parent=1 // pred_fallthru
      _
    // Predicated region
    $region30: #{bioact_forward.1} parent=1 // pred_check
      _
    $region31: #{bioact_forward.1} parent=1 // pred_check_branch
      %43 = sbr.rel (0) target = $region33
    $region32: #{bioact_forward.1} parent=1 // pred_region
      _
    $region33: #{bioact_forward.1} parent=1 // pred_fallthru
      _
    // Predicated region
    $region34: #{bioact_forward.1} parent=1 // pred_check
      _
    $region35: #{bioact_forward.1} parent=1 // pred_check_branch
      %45 = sbr.rel (0) target = $region37
    $region36: #{bioact_forward.1} parent=1 // pred_region
      _
    $region37: #{bioact_forward.1} parent=1 // pred_fallthru
      _
    // Predicated region
    $region38: #{bioact_forward.1} parent=1 // pred_check
      _
    $region39: #{bioact_forward.1} parent=1 // pred_check_branch
      %47 = sbr.rel (0) target = $region41
    $region40: #{bioact_forward.1} parent=1 // pred_region
      _
    $region41: #{bioact_forward.1} parent=1 // pred_fallthru
      _
    // Predicated region
    $region42: #{bioact_forward.1} parent=1 // pred_check
      _
    $region43: #{bioact_forward.1} parent=1 // pred_check_branch
      %49 = sbr.rel (0) target = $region45
    $region44: #{bioact_forward.1} parent=1 // pred_region
      _
    $region45: #{bioact_forward.1} parent=1 // pred_fallthru
      _
    // Predicated region
    $region46: #{bioact_forward.1} parent=1 // pred_check
      _
    $region47: #{bioact_forward.1} parent=1 // pred_check_branch
      %51 = sbr.rel (0) target = $region49
    $region48: #{bioact_forward.1} parent=1 // pred_region
      _
    $region49: #{bioact_forward.1} parent=1 // pred_fallthru
      _
    // Predicated region
    $region50: #{bioact_forward.1} parent=1 // pred_check
      _
    $region51: #{bioact_forward.1} parent=1 // pred_check_branch
      %53 = sbr.rel (0) target = $region53
    $region52: #{bioact_forward.1} parent=1 // pred_region
      _
    $region53: #{bioact_forward.1} parent=1 // pred_fallthru
      _
    // Predicated region
    $region54: #{bioact_forward.1} parent=1 // pred_check
      _
    $region55: #{bioact_forward.1} parent=1 // pred_check_branch
      %55 = sbr.rel (0) target = $region57
    $region56: #{bioact_forward.1} parent=1 // pred_region
      _
    $region57: #{bioact_forward.1} parent=1 // pred_fallthru
      _
    // Predicated region
    $region58: #{bioact_forward.1} parent=1 // pred_check
      _
    $region59: #{bioact_forward.1} parent=1 // pred_check_branch
      %57 = sbr.rel (0) target = $region61
    $region60: #{bioact_forward.1} parent=1 // pred_region
      _
    $region61: #{bioact_forward.1} parent=1 // pred_fallthru
      _
    // Predicated region
    $region62: #{bioact_forward.1} parent=1 // pred_check
      _
    $region63: #{bioact_forward.1} parent=1 // pred_check_branch
      %59 = sbr.rel (0) target = $region65
    $region64: #{bioact_forward.1} parent=1 // pred_region
      _
    $region65: #{bioact_forward.1} parent=1 // pred_fallthru
      _
    // Predicated region
    $region66: #{bioact_forward.1} parent=1 // pred_check
      _
    $region67: #{bioact_forward.1} parent=1 // pred_check_branch
      %61 = sbr.rel (0) target = $region69
    $region68: #{bioact_forward.1} parent=1 // pred_region
      _
    $region69: #{bioact_forward.1} parent=1 // pred_fallthru
      _
    // Predicated region
    $region70: #{bioact_forward.1} parent=1 // pred_check
      _
    $region71: #{bioact_forward.1} parent=1 // pred_check_branch
      %63 = sbr.rel (0) target = $region73
    $region72: #{bioact_forward.1} parent=1 // pred_region
      _
    $region73: #{bioact_forward.1} parent=1 // pred_fallthru
      _
    // Predicated region
    $region74: #{bioact_forward.1} parent=1 // pred_check
      _
    $region75: #{bioact_forward.1} parent=1 // pred_check_branch
      %65 = sbr.rel (0) target = $region77
    $region76: #{bioact_forward.1} parent=1 // pred_region
      _
    $region77: #{bioact_forward.1} parent=1 // pred_fallthru
      _
    // Predicated region
    $region78: #{bioact_forward.1} parent=1 // pred_check
      _
    $region79: #{bioact_forward.1} parent=1 // pred_check_branch
      %67 = sbr.rel (0) target = $region81
    $region80: #{bioact_forward.1} parent=1 // pred_region
      _
    $region81: #{bioact_forward.1} parent=1 // pred_fallthru
      _
    // Predicated region
    $region82: #{bioact_forward.1} parent=1 // pred_check
      _
    $region83: #{bioact_forward.1} parent=1 // pred_check_branch
      %69 = sbr.rel (0) target = $region85
    $region84: #{bioact_forward.1} parent=1 // pred_region
      _
    $region85: #{bioact_forward.1} parent=1 // pred_fallthru
      _
    // Predicated region
    $region86: #{bioact_forward.1} parent=1 // pred_check
      _
    $region87: #{bioact_forward.1} parent=1 // pred_check_branch
      %71 = sbr.rel (0) target = $region89
    $region88: #{bioact_forward.1} parent=1 // pred_region
      _
    $region89: #{bioact_forward.1} parent=1 // pred_fallthru
      _
    %v72 = vld [vmem:[%s0] sm:$0xff]
    %v73 = vld [vmem:[%s0 + $0x8] sm:$0x3]
    %v74 = vld [vmem:[%s1] sm:$0xff]
    %v75 = vld [vmem:[%s1 + $0x8] sm:$0xff]
    %v76 = vld [vmem:[%s2] sm:$0xf]
    %v77 = vld [vmem:[%s2 + $0x4] sm:$0xf]
    %v78 = vunpack.c.l.bf16 %v76
    %v79 = vunpack.c.l.bf16 %v77
    %v80 = vld [vmem:[%s3] sm:$0xf]
    %v81 = vld [vmem:[%s3 + $0x4] sm:$0xf]
    %v82 = vunpack.c.l.bf16 %v80
    %v83 = vunpack.c.l.bf16 %v81
    %v84 = vld [vmem:[%s4] sm:$0xf]
    %v85 = vld [vmem:[%s4 + $0x4] sm:$0x1]
    %v86 = vunpack.c.l.bf16 %v84
    %v87 = vunpack.c.l.bf16 %v85
    %v88 = vld [vmem:[%s17] sm:$0xff]
    %v89 = vld [vmem:[%s18] sm:$0x1]
    %v90 = vld [vmem:[%s9] sm:$0xff]
    %v91 = vld [vmem:[%s9 + $0x8] sm:$0xff]
    %v92 = vld [vmem:[%s9 + $0x10] sm:$0xff]
    %v93 = vld [vmem:[%s9 + $0x18] sm:$0xff]
    %v94 = vld [vmem:[%s9 + $0x20] sm:$0xff]
    %v95 = vld [vmem:[%s9 + $0x28] sm:$0xff]
    %v96 = vld [vmem:[%s9 + $0x30] sm:$0xff]
    %v97 = vld [vmem:[%s9 + $0x38] sm:$0xff]
    %v98 = vld [vmem:[%s9 + $0x40] sm:$0xff]
    %v99 = vld [vmem:[%s9 + $0x48] sm:$0xff]
    %v100 = vld [vmem:[%s9 + $0x50] sm:$0xff]
    %v101 = vld [vmem:[%s9 + $0x58] sm:$0xff]
    %v102 = vld [vmem:[%s9 + $0x60] sm:$0xff]
    %v103 = vld [vmem:[%s9 + $0x68] sm:$0xff]
    %v104 = vld [vmem:[%s9 + $0x70] sm:$0xff]
    %v105 = vld [vmem:[%s9 + $0x78] sm:$0xff]
    %v106 = vld [vmem:[%s6] sm:$0xff]
    %v107 = vld [vmem:[%s6 + $0x8] sm:$0xff]
    %v108 = vld [vmem:[%s6 + $0x10] sm:$0xff]
    %v109 = vld [vmem:[%s6 + $0x18] sm:$0xff]
    %vm110 = vcmask 130048
    %v112 = vsel %vm110, %v72, 0
    %v115 = vsel %vm110, %v73, 0
    %117 = vmatprep.subr.mxu0 %v107
    %118 = vmatpush1.msra.mxu0 %v106
    %119 = vmatprep.subr.mxu0 %v109
    %120 = vmatpush1.msra.mxu0 %v108
    %121 = vmatprep.subr.mxu0 0.0
    %122 = vmatpush1.msra.mxu0 0.0
    %123 = vmatprep.subr.mxu0 0.0
    %124 = vmatpush1.msra.mxu0 0.0
    %125 = vmatprep.subr.mxu0 0.0
    %126 = vmatpush1.msra.mxu0 0.0
    %127 = vmatprep.subr.mxu0 0.0
    %128 = vmatpush1.msra.mxu0 0.0
    %129 = vmatprep.subr.mxu0 0.0
    %130 = vmatpush1.msra.mxu0 0.0
    %131 = vmatprep.subr.mxu0 0.0
    %132 = vmatpush1.msra.mxu0 0.0
    %133 = vmatprep.subr.mxu0 0.0
    %134 = vmatpush1.msra.mxu0 0.0
    %135 = vmatprep.subr.mxu0 0.0
    %136 = vmatpush1.msra.mxu0 0.0
    %137 = vmatprep.subr.mxu0 0.0
    %138 = vmatpush1.msra.mxu0 0.0
    %139 = vmatprep.subr.mxu0 0.0
    %140 = vmatpush1.msra.mxu0 0.0
    %141 = vmatprep.subr.mxu0 0.0
    %142 = vmatpush1.msra.mxu0 0.0
    %143 = vmatprep.subr.mxu0 0.0
    %144 = vmatpush1.msra.mxu0 0.0
    %145 = vmatprep.subr.mxu0 0.0
    %146 = vmatpush1.msra.mxu0 0.0
    %147 = vmatprep.subr.mxu0 0.0
    %148 = vmatpush1.msra.mxu0 0.0
    %149 = vmatprep.subr.mxu0 0.0
    %150 = vmatpush1.msra.mxu0 0.0
    %151 = vmatprep.subr.mxu0 0.0
    %152 = vmatpush1.msra.mxu0 0.0
    %153 = vmatprep.subr.mxu0 0.0
    %154 = vmatpush1.msra.mxu0 0.0
    %155 = vmatprep.subr.mxu0 0.0
    %156 = vmatpush1.msra.mxu0 0.0
    %157 = vmatprep.subr.mxu0 0.0
    %158 = vmatpush1.msra.mxu0 0.0
    %159 = vmatprep.subr.mxu0 0.0
    %160 = vmatpush1.msra.mxu0 0.0
    %161 = vmatprep.subr.mxu0 0.0
    %162 = vmatpush1.msra.mxu0 0.0
    %163 = vmatprep.subr.mxu0 0.0
    %164 = vmatpush1.msra.mxu0 0.0
    %165 = vmatprep.subr.mxu0 0.0
    %166 = vmatpush1.msra.mxu0 0.0
    %167 = vmatprep.subr.mxu0 0.0
    %168 = vmatpush1.msra.mxu0 0.0
    %169 = vmatprep.subr.mxu0 0.0
    %170 = vmatpush1.msra.mxu0 0.0
    %171 = vmatprep.subr.mxu0 0.0
    %172 = vmatpush1.msra.mxu0 0.0
    %173 = vmatprep.subr.mxu0 0.0
    %174 = vmatpush1.msra.mxu0 0.0
    %175 = vmatprep.subr.mxu0 0.0
    %176 = vmatpush1.msra.mxu0 0.0
    %177 = vmatprep.subr.mxu0 0.0
    %178 = vmatpush1.msra.mxu0 0.0
    %179 = vmatprep.subr.mxu0 0.0
    %180 = vmatpush1.msra.mxu0 0.0
    %181 = vmatprep.mubr.f32.mxu0 0.0
    %182 = vmatmul.mubr.f32.gmra.mrb[0].mxu0 %v112
    %v183 = vpop.f32.mrb[0].mxu0
    %v184 = vadd.f32 0.0, %v183
    %v185 = vpop.f32.mrb[0].mxu0
    %v186 = vadd.f32 0.0, %v185
    %187 = vmatprep.mubr.f32.mxu0 0.0
    %188 = vmatmul.mubr.f32.gmra.mrb[0].mxu0 %v115
    %v189 = vpop.f32.mrb[0].mxu0
    %v190 = vadd.f32 0.0, %v189
    %v191 = vpop.f32.mrb[0].mxu0
    %v192 = vadd.f32 0.0, %v191
    %193 = vdwg.mxu0
    %v194 = vlaneseq
    %v195 = vshrl.u32 %v194, 7
    %v196 = vsub.s32 0, %v195
    %v197 = vrot.slane %v88, %v196
    %v198 = vadd.f32 %v184, %v197
    %v199 = vadd.f32 %v190, %v197
    %vm200 = vcmp.gt.f32.partialorder %v198, 0.0
    %vm201 = vcmp.gt.f32.partialorder %v199, 0.0
    %v202 = vmul.f32 %v198, 0.01
    %v203 = vmul.f32 %v199, 0.01
    %v204 = vsel %vm200, %v198, %v202
    %v205 = vsel %vm201, %v199, %v203
    %v206 = vld [vmem:[%s7] sm:$0xff]
    %vm207 = vcmask 64512
    %v209 = vsel %vm207, %v74, 0
    %v212 = vsel %vm207, %v75, 0
    %214 = vmatprep.subr.mxu0 0.0
    %215 = vmatpush1.msra.mxu0 %v206
    %216 = vmatprep.subr.mxu0 0.0
    %217 = vmatpush1.msra.mxu0 0.0
    %218 = vmatprep.subr.mxu0 0.0
    %219 = vmatpush1.msra.mxu0 0.0
    %220 = vmatprep.subr.mxu0 0.0
    %221 = vmatpush1.msra.mxu0 0.0
    %222 = vmatprep.subr.mxu0 0.0
    %223 = vmatpush1.msra.mxu0 0.0
    %224 = vmatprep.subr.mxu0 0.0
    %225 = vmatpush1.msra.mxu0 0.0
    %226 = vmatprep.subr.mxu0 0.0
    %227 = vmatpush1.msra.mxu0 0.0
    %228 = vmatprep.subr.mxu0 0.0
    %229 = vmatpush1.msra.mxu0 0.0
    %230 = vmatprep.subr.mxu0 0.0
    %231 = vmatpush1.msra.mxu0 0.0
    %232 = vmatprep.subr.mxu0 0.0
    %233 = vmatpush1.msra.mxu0 0.0
    %234 = vmatprep.subr.mxu0 0.0
    %235 = vmatpush1.msra.mxu0 0.0
    %236 = vmatprep.subr.mxu0 0.0
    %237 = vmatpush1.msra.mxu0 0.0
    %238 = vmatprep.subr.mxu0 0.0
    %239 = vmatpush1.msra.mxu0 0.0
    %240 = vmatprep.subr.mxu0 0.0
    %241 = vmatpush1.msra.mxu0 0.0
    %242 = vmatprep.subr.mxu0 0.0
    %243 = vmatpush1.msra.mxu0 0.0
    %244 = vmatprep.subr.mxu0 0.0
    %245 = vmatpush1.msra.mxu0 0.0
    %246 = vmatprep.subr.mxu0 0.0
    %247 = vmatpush1.msra.mxu0 0.0
    %248 = vmatprep.subr.mxu0 0.0
    %249 = vmatpush1.msra.mxu0 0.0
    %250 = vmatprep.subr.mxu0 0.0
    %251 = vmatpush1.msra.mxu0 0.0
    %252 = vmatprep.subr.mxu0 0.0
    %253 = vmatpush1.msra.mxu0 0.0
    %254 = vmatprep.subr.mxu0 0.0
    %255 = vmatpush1.msra.mxu0 0.0
    %256 = vmatprep.subr.mxu0 0.0
    %257 = vmatpush1.msra.mxu0 0.0
    %258 = vmatprep.subr.mxu0 0.0
    %259 = vmatpush1.msra.mxu0 0.0
    %260 = vmatprep.subr.mxu0 0.0
    %261 = vmatpush1.msra.mxu0 0.0
    %262 = vmatprep.subr.mxu0 0.0
    %263 = vmatpush1.msra.mxu0 0.0
    %264 = vmatprep.subr.mxu0 0.0
    %265 = vmatpush1.msra.mxu0 0.0
    %266 = vmatprep.subr.mxu0 0.0
    %267 = vmatpush1.msra.mxu0 0.0
    %268 = vmatprep.subr.mxu0 0.0
    %269 = vmatpush1.msra.mxu0 0.0
    %270 = vmatprep.subr.mxu0 0.0
    %271 = vmatpush1.msra.mxu0 0.0
    %272 = vmatprep.subr.mxu0 0.0
    %273 = vmatpush1.msra.mxu0 0.0
    %274 = vmatprep.subr.mxu0 0.0
    %275 = vmatpush1.msra.mxu0 0.0
    %276 = vmatprep.subr.mxu0 0.0
    %277 = vmatpush1.msra.mxu0 0.0
    %278 = vmatprep.mubr.f32.mxu0 0.0
    %279 = vmatmul.mubr.f32.gmra.mrb[0].mxu0 %v209
    %v280 = vpop.f32.mrb[0].mxu0
    %v281 = vadd.f32 0.0, %v280
    %v282 = vpop.f32.mrb[0].mxu0
    %283 = vmatprep.mubr.f32.mxu0 0.0
    %284 = vmatmul.mubr.f32.gmra.mrb[0].mxu0 %v212
    %v285 = vpop.f32.mrb[0].mxu0
    %v286 = vadd.f32 0.0, %v285
    %v287 = vpop.f32.mrb[0].mxu0
    %288 = vdwg.mxu0
    %vm289 = vcmask 80896
    %v291 = vsel %vm289, %v78, 0
    %v294 = vsel %vm289, %v79, 0
    %vm296 = vcmask 1041408
    %v298 = vsel %vm296, %v192, 0
    %300 = vmatprep.subr.mxu0 0.0
    %301 = vmatpush1.msra.mxu0 %v186
    %302 = vmatprep.subr.mxu0 0.0
    %303 = vmatpush1.msra.mxu0 %v298
    %304 = vmatprep.subr.mxu0 0.0
    %305 = vmatpush1.msra.mxu0 0.0
    %306 = vmatprep.subr.mxu0 0.0
    %307 = vmatpush1.msra.mxu0 0.0
    %308 = vmatprep.subr.mxu0 0.0
    %309 = vmatpush1.msra.mxu0 0.0
    %310 = vmatprep.subr.mxu0 0.0
    %311 = vmatpush1.msra.mxu0 0.0
    %312 = vmatprep.subr.mxu0 0.0
    %313 = vmatpush1.msra.mxu0 0.0
    %314 = vmatprep.subr.mxu0 0.0
    %315 = vmatpush1.msra.mxu0 0.0
    %316 = vmatprep.subr.mxu0 0.0
    %317 = vmatpush1.msra.mxu0 0.0
    %318 = vmatprep.subr.mxu0 0.0
    %319 = vmatpush1.msra.mxu0 0.0
    %320 = vmatprep.subr.mxu0 0.0
    %321 = vmatpush1.msra.mxu0 0.0
    %322 = vmatprep.subr.mxu0 0.0
    %323 = vmatpush1.msra.mxu0 0.0
    %324 = vmatprep.subr.mxu0 0.0
    %325 = vmatpush1.msra.mxu0 0.0
    %326 = vmatprep.subr.mxu0 0.0
    %327 = vmatpush1.msra.mxu0 0.0
    %328 = vmatprep.subr.mxu0 0.0
    %329 = vmatpush1.msra.mxu0 0.0
    %330 = vmatprep.subr.mxu0 0.0
    %331 = vmatpush1.msra.mxu0 0.0
    %332 = vmatprep.subr.mxu0 0.0
    %333 = vmatpush1.msra.mxu0 0.0
    %334 = vmatprep.subr.mxu0 0.0
    %335 = vmatpush1.msra.mxu0 0.0
    %336 = vmatprep.subr.mxu0 0.0
    %337 = vmatpush1.msra.mxu0 0.0
    %338 = vmatprep.subr.mxu0 0.0
    %339 = vmatpush1.msra.mxu0 0.0
    %340 = vmatprep.subr.mxu0 0.0
    %341 = vmatpush1.msra.mxu0 0.0
    %342 = vmatprep.subr.mxu0 0.0
    %343 = vmatpush1.msra.mxu0 0.0
    %344 = vmatprep.subr.mxu0 0.0
    %345 = vmatpush1.msra.mxu0 0.0
    %346 = vmatprep.subr.mxu0 0.0
    %347 = vmatpush1.msra.mxu0 0.0
    %348 = vmatprep.subr.mxu0 0.0
    %349 = vmatpush1.msra.mxu0 0.0
    %350 = vmatprep.subr.mxu0 0.0
    %351 = vmatpush1.msra.mxu0 0.0
    %352 = vmatprep.subr.mxu0 0.0
    %353 = vmatpush1.msra.mxu0 0.0
    %354 = vmatprep.subr.mxu0 0.0
    %355 = vmatpush1.msra.mxu0 0.0
    %356 = vmatprep.subr.mxu0 0.0
    %357 = vmatpush1.msra.mxu0 0.0
    %358 = vmatprep.subr.mxu0 0.0
    %359 = vmatpush1.msra.mxu0 0.0
    %360 = vmatprep.subr.mxu0 0.0
    %361 = vmatpush1.msra.mxu0 0.0
    %362 = vmatprep.subr.mxu0 0.0
    %363 = vmatpush1.msra.mxu0 0.0
    %364 = vmatprep.mubr.f32.mxu0 0.0
    %365 = vmatmul.mubr.f32.gmra.mrb[0].mxu0 %v291
    %v366 = vpop.f32.mrb[0].mxu0
    %v367 = vadd.f32 %v281, %v366
    %v368 = vpop.f32.mrb[0].mxu0
    %369 = vmatprep.mubr.f32.mxu0 0.0
    %370 = vmatmul.mubr.f32.gmra.mrb[0].mxu0 %v294
    %v371 = vpop.f32.mrb[0].mxu0
    %v372 = vadd.f32 %v286, %v371
    %v373 = vpop.f32.mrb[0].mxu0
    %374 = vdwg.mxu0
    %v375 = vlaneseq
    %v376 = vshrl.u32 %v375, 7
    %v377 = vsub.s32 1, %v376
    %v378 = vrot.slane %v88, %v377
    %v379 = vadd.f32 %v367, %v378
    %v380 = vadd.f32 %v372, %v378
    %vm381 = vcmp.gt.f32.partialorder %v379, 0.0
    %vm382 = vcmp.gt.f32.partialorder %v380, 0.0
    %v383 = vmul.f32 %v379, 0.01
    %v384 = vmul.f32 %v380, 0.01
    %v385 = vsel %vm381, %v379, %v383
    %v386 = vsel %vm382, %v380, %v384
    %v387 = vld [vmem:[%s8] sm:$0xff]
    %v388 = vld [vmem:[%s8 + $0x8] sm:$0xff]
    %v389 = vld [vmem:[%s8 + $0x10] sm:$0xff]
    %v390 = vld [vmem:[%s8 + $0x18] sm:$0xff]
    %v391 = vld [vmem:[%s8 + $0x20] sm:$0xff]
    %v392 = vld [vmem:[%s8 + $0x28] sm:$0xff]
    %v393 = vld [vmem:[%s8 + $0x30] sm:$0xff]
    %v394 = vld [vmem:[%s8 + $0x38] sm:$0xff]
    %v395 = vld [vmem:[%s8 + $0x40] sm:$0xff]
    %v396 = vld [vmem:[%s8 + $0x48] sm:$0xff]
    %v397 = vld [vmem:[%s8 + $0x50] sm:$0xff]
    %v398 = vld [vmem:[%s8 + $0x58] sm:$0xff]
    %v399 = vld [vmem:[%s8 + $0x60] sm:$0xff]
    %v400 = vld [vmem:[%s8 + $0x68] sm:$0xff]
    %v401 = vld [vmem:[%s8 + $0x70] sm:$0xff]
    %v402 = vld [vmem:[%s8 + $0x78] sm:$0xff]
    %v403 = vld [vmem:[%s8 + $0x80] sm:$0xff]
    %v404 = vld [vmem:[%s8 + $0x88] sm:$0xff]
    %v405 = vld [vmem:[%s8 + $0x90] sm:$0xff]
    %v406 = vld [vmem:[%s8 + $0x98] sm:$0xff]
    %v407 = vld [vmem:[%s8 + $0xa0] sm:$0xff]
    %v408 = vld [vmem:[%s8 + $0xa8] sm:$0xff]
    %v409 = vld [vmem:[%s8 + $0xb0] sm:$0xff]
    %v410 = vld [vmem:[%s8 + $0xb8] sm:$0xff]
    %v411 = vld [vmem:[%s8 + $0xc0] sm:$0xff]
    %v412 = vld [vmem:[%s8 + $0xc8] sm:$0xff]
    %v413 = vld [vmem:[%s8 + $0xd0] sm:$0xff]
    %v414 = vld [vmem:[%s8 + $0xd8] sm:$0xff]
    %v415 = vld [vmem:[%s8 + $0xe0] sm:$0xff]
    %v416 = vld [vmem:[%s8 + $0xe8] sm:$0xff]
    %v417 = vld [vmem:[%s8 + $0xf0] sm:$0xff]
    %v418 = vld [vmem:[%s8 + $0xf8] sm:$0xff]
    %419 = vmatprep.subr.mxu0 %v388
    %420 = vmatpush1.msra.mxu0 %v387
    %421 = vmatprep.subr.mxu0 %v390
    %422 = vmatpush1.msra.mxu0 %v389
    %423 = vmatprep.subr.mxu0 %v392
    %424 = vmatpush1.msra.mxu0 %v391
    %425 = vmatprep.subr.mxu0 %v394
    %426 = vmatpush1.msra.mxu0 %v393
    %427 = vmatprep.subr.mxu0 %v396
    %428 = vmatpush1.msra.mxu0 %v395
    %429 = vmatprep.subr.mxu0 %v398
    %430 = vmatpush1.msra.mxu0 %v397
    %431 = vmatprep.subr.mxu0 %v400
    %432 = vmatpush1.msra.mxu0 %v399
    %433 = vmatprep.subr.mxu0 %v402
    %434 = vmatpush1.msra.mxu0 %v401
    %435 = vmatprep.subr.mxu0 %v404
    %436 = vmatpush1.msra.mxu0 %v403
    %437 = vmatprep.subr.mxu0 %v406
    %438 = vmatpush1.msra.mxu0 %v405
    %439 = vmatprep.subr.mxu0 %v408
    %440 = vmatpush1.msra.mxu0 %v407
    %441 = vmatprep.subr.mxu0 %v410
    %442 = vmatpush1.msra.mxu0 %v409
    %443 = vmatprep.subr.mxu0 %v412
    %444 = vmatpush1.msra.mxu0 %v411
    %445 = vmatprep.subr.mxu0 %v414
    %446 = vmatpush1.msra.mxu0 %v413
    %447 = vmatprep.subr.mxu0 %v416
    %448 = vmatpush1.msra.mxu0 %v415
    %449 = vmatprep.subr.mxu0 %v418
    %450 = vmatpush1.msra.mxu0 %v417
    %451 = vmatprep.subr.mxu0 0.0
    %452 = vmatpush1.msra.mxu0 0.0
    %453 = vmatprep.subr.mxu0 0.0
    %454 = vmatpush1.msra.mxu0 0.0
    %455 = vmatprep.subr.mxu0 0.0
    %456 = vmatpush1.msra.mxu0 0.0
    %457 = vmatprep.subr.mxu0 0.0
    %458 = vmatpush1.msra.mxu0 0.0
    %459 = vmatprep.subr.mxu0 0.0
    %460 = vmatpush1.msra.mxu0 0.0
    %461 = vmatprep.subr.mxu0 0.0
    %462 = vmatpush1.msra.mxu0 0.0
    %463 = vmatprep.subr.mxu0 0.0
    %464 = vmatpush1.msra.mxu0 0.0
    %465 = vmatprep.subr.mxu0 0.0
    %466 = vmatpush1.msra.mxu0 0.0
    %467 = vmatprep.subr.mxu0 0.0
    %468 = vmatpush1.msra.mxu0 0.0
    %469 = vmatprep.subr.mxu0 0.0
    %470 = vmatpush1.msra.mxu0 0.0
    %471 = vmatprep.subr.mxu0 0.0
    %472 = vmatpush1.msra.mxu0 0.0
    %473 = vmatprep.subr.mxu0 0.0
    %474 = vmatpush1.msra.mxu0 0.0
    %475 = vmatprep.subr.mxu0 0.0
    %476 = vmatpush1.msra.mxu0 0.0
    %477 = vmatprep.subr.mxu0 0.0
    %478 = vmatpush1.msra.mxu0 0.0
    %479 = vmatprep.subr.mxu0 0.0
    %480 = vmatpush1.msra.mxu0 0.0
    %481 = vmatprep.subr.mxu0 0.0
    %482 = vmatpush1.msra.mxu0 0.0
    %483 = vmatprep.mubr.f32.mxu0 0.0
    %484 = vmatmul.mubr.f32.gmra.mrb[0].mxu0 %v385
    %v485 = vpop.f32.mrb[0].mxu0
    %v486 = vadd.f32 0.0, %v485
    %v487 = vpop.f32.mrb[0].mxu0
    %v488 = vadd.f32 0.0, %v487
    %489 = vmatprep.mubr.f32.mxu0 0.0
    %490 = vmatmul.mubr.f32.gmra.mrb[0].mxu0 %v386
    %v491 = vpop.f32.mrb[0].mxu0
    %v492 = vadd.f32 0.0, %v491
    %v493 = vpop.f32.mrb[0].mxu0
    %v494 = vadd.f32 0.0, %v493
    %495 = vdwg.mxu0
    %496 = vmatprep.subr.mxu0 0.0
    %497 = vmatpush1.msra.mxu0 %v90
    %498 = vmatprep.subr.mxu0 0.0
    %499 = vmatpush1.msra.mxu0 %v91
    %500 = vmatprep.subr.mxu0 0.0
    %501 = vmatpush1.msra.mxu0 %v92
    %502 = vmatprep.subr.mxu0 0.0
    %503 = vmatpush1.msra.mxu0 %v93
    %504 = vmatprep.subr.mxu0 0.0
    %505 = vmatpush1.msra.mxu0 %v94
    %506 = vmatprep.subr.mxu0 0.0
    %507 = vmatpush1.msra.mxu0 %v95
    %508 = vmatprep.subr.mxu0 0.0
    %509 = vmatpush1.msra.mxu0 %v96
    %510 = vmatprep.subr.mxu0 0.0
    %511 = vmatpush1.msra.mxu0 %v97
    %512 = vmatprep.subr.mxu0 0.0
    %513 = vmatpush1.msra.mxu0 %v98
    %514 = vmatprep.subr.mxu0 0.0
    %515 = vmatpush1.msra.mxu0 %v99
    %516 = vmatprep.subr.mxu0 0.0
    %517 = vmatpush1.msra.mxu0 %v100
    %518 = vmatprep.subr.mxu0 0.0
    %519 = vmatpush1.msra.mxu0 %v101
    %520 = vmatprep.subr.mxu0 0.0
    %521 = vmatpush1.msra.mxu0 %v102
    %522 = vmatprep.subr.mxu0 0.0
    %523 = vmatpush1.msra.mxu0 %v103
    %524 = vmatprep.subr.mxu0 0.0
    %525 = vmatpush1.msra.mxu0 %v104
    %526 = vmatprep.subr.mxu0 0.0
    %527 = vmatpush1.msra.mxu0 %v105
    %528 = vmatprep.subr.mxu0 0.0
    %529 = vmatpush1.msra.mxu0 0.0
    %530 = vmatprep.subr.mxu0 0.0
    %531 = vmatpush1.msra.mxu0 0.0
    %532 = vmatprep.subr.mxu0 0.0
    %533 = vmatpush1.msra.mxu0 0.0
    %534 = vmatprep.subr.mxu0 0.0
    %535 = vmatpush1.msra.mxu0 0.0
    %536 = vmatprep.subr.mxu0 0.0
    %537 = vmatpush1.msra.mxu0 0.0
    %538 = vmatprep.subr.mxu0 0.0
    %539 = vmatpush1.msra.mxu0 0.0
    %540 = vmatprep.subr.mxu0 0.0
    %541 = vmatpush1.msra.mxu0 0.0
    %542 = vmatprep.subr.mxu0 0.0
    %543 = vmatpush1.msra.mxu0 0.0
    %544 = vmatprep.subr.mxu0 0.0
    %545 = vmatpush1.msra.mxu0 0.0
    %546 = vmatprep.subr.mxu0 0.0
    %547 = vmatpush1.msra.mxu0 0.0
    %548 = vmatprep.subr.mxu0 0.0
    %549 = vmatpush1.msra.mxu0 0.0
    %550 = vmatprep.subr.mxu0 0.0
    %551 = vmatpush1.msra.mxu0 0.0
    %552 = vmatprep.subr.mxu0 0.0
    %553 = vmatpush1.msra.mxu0 0.0
    %554 = vmatprep.subr.mxu0 0.0
    %555 = vmatpush1.msra.mxu0 0.0
    %556 = vmatprep.subr.mxu0 0.0
    %557 = vmatpush1.msra.mxu0 0.0
    %558 = vmatprep.subr.mxu0 0.0
    %559 = vmatpush1.msra.mxu0 0.0
    %560 = vmatprep.mubr.f32.mxu0 0.0
    %561 = vmatmul.mubr.f32.gmra.mrb[0].mxu0 %v204
    %v562 = vpop.f32.mrb[0].mxu0
    %v563 = vadd.f32 0.0, %v562
    %v564 = vpop.f32.mrb[0].mxu0
    %565 = vmatprep.mubr.f32.mxu0 0.0
    %566 = vmatmul.mubr.f32.gmra.mrb[0].mxu0 %v205
    %v567 = vpop.f32.mrb[0].mxu0
    %v568 = vadd.f32 0.0, %v567
    %v569 = vpop.f32.mrb[0].mxu0
    %570 = vdwg.mxu0
    %v572 = vsel %vm289, %v82, 0
    %v575 = vsel %vm289, %v83, 0
    %v578 = vsel %vm296, %v568, 0
    %580 = vmatprep.subr.mxu0 0.0
    %581 = vmatpush1.msra.mxu0 %v563
    %582 = vmatprep.subr.mxu0 0.0
    %583 = vmatpush1.msra.mxu0 %v578
    %584 = vmatprep.subr.mxu0 0.0
    %585 = vmatpush1.msra.mxu0 0.0
    %586 = vmatprep.subr.mxu0 0.0
    %587 = vmatpush1.msra.mxu0 0.0
    %588 = vmatprep.subr.mxu0 0.0
    %589 = vmatpush1.msra.mxu0 0.0
    %590 = vmatprep.subr.mxu0 0.0
    %591 = vmatpush1.msra.mxu0 0.0
    %592 = vmatprep.subr.mxu0 0.0
    %593 = vmatpush1.msra.mxu0 0.0
    %594 = vmatprep.subr.mxu0 0.0
    %595 = vmatpush1.msra.mxu0 0.0
    %596 = vmatprep.subr.mxu0 0.0
    %597 = vmatpush1.msra.mxu0 0.0
    %598 = vmatprep.subr.mxu0 0.0
    %599 = vmatpush1.msra.mxu0 0.0
    %600 = vmatprep.subr.mxu0 0.0
    %601 = vmatpush1.msra.mxu0 0.0
    %602 = vmatprep.subr.mxu0 0.0
    %603 = vmatpush1.msra.mxu0 0.0
    %604 = vmatprep.subr.mxu0 0.0
    %605 = vmatpush1.msra.mxu0 0.0
    %606 = vmatprep.subr.mxu0 0.0
    %607 = vmatpush1.msra.mxu0 0.0
    %608 = vmatprep.subr.mxu0 0.0
    %609 = vmatpush1.msra.mxu0 0.0
    %610 = vmatprep.subr.mxu0 0.0
    %611 = vmatpush1.msra.mxu0 0.0
    %612 = vmatprep.subr.mxu0 0.0
    %613 = vmatpush1.msra.mxu0 0.0
    %614 = vmatprep.subr.mxu0 0.0
    %615 = vmatpush1.msra.mxu0 0.0
    %616 = vmatprep.subr.mxu0 0.0
    %617 = vmatpush1.msra.mxu0 0.0
    %618 = vmatprep.subr.mxu0 0.0
    %619 = vmatpush1.msra.mxu0 0.0
    %620 = vmatprep.subr.mxu0 0.0
    %621 = vmatpush1.msra.mxu0 0.0
    %622 = vmatprep.subr.mxu0 0.0
    %623 = vmatpush1.msra.mxu0 0.0
    %624 = vmatprep.subr.mxu0 0.0
    %625 = vmatpush1.msra.mxu0 0.0
    %626 = vmatprep.subr.mxu0 0.0
    %627 = vmatpush1.msra.mxu0 0.0
    %628 = vmatprep.subr.mxu0 0.0
    %629 = vmatpush1.msra.mxu0 0.0
    %630 = vmatprep.subr.mxu0 0.0
    %631 = vmatpush1.msra.mxu0 0.0
    %632 = vmatprep.subr.mxu0 0.0
    %633 = vmatpush1.msra.mxu0 0.0
    %634 = vmatprep.subr.mxu0 0.0
    %635 = vmatpush1.msra.mxu0 0.0
    %636 = vmatprep.subr.mxu0 0.0
    %637 = vmatpush1.msra.mxu0 0.0
    %638 = vmatprep.subr.mxu0 0.0
    %639 = vmatpush1.msra.mxu0 0.0
    %640 = vmatprep.subr.mxu0 0.0
    %641 = vmatpush1.msra.mxu0 0.0
    %642 = vmatprep.subr.mxu0 0.0
    %643 = vmatpush1.msra.mxu0 0.0
    %644 = vmatprep.mubr.f32.mxu0 0.0
    %645 = vmatmul.mubr.f32.gmra.mrb[0].mxu0 %v572
    %v646 = vpop.f32.mrb[0].mxu0
    %v647 = vadd.f32 %v488, %v646
    %v648 = vpop.f32.mrb[0].mxu0
    %649 = vmatprep.mubr.f32.mxu0 0.0
    %650 = vmatmul.mubr.f32.gmra.mrb[0].mxu0 %v575
    %v651 = vpop.f32.mrb[0].mxu0
    %v652 = vadd.f32 %v494, %v651
    %v653 = vpop.f32.mrb[0].mxu0
    %654 = vdwg.mxu0
    %v656 = vlaneseq
    %v657 = vshrl.u32 %v656, 7
    %v658 = vsub.s32 0, %v657
    %v659 = vrot.slane %v89, %v658
    %v661 = vadd.f32 %v647, %v659
    %v662 = vadd.f32 %v652, %v659
    %vm663 = vcmp.gt.f32.partialorder %v661, 0.0
    %vm664 = vcmp.gt.f32.partialorder %v662, 0.0
    %v665 = vmul.f32 %v661, 0.01
    %v666 = vmul.f32 %v662, 0.01
    %v667 = vsel %vm663, %v661, %v665
    %v668 = vsel %vm664, %v662, %v666
    %v669 = vlaneseq
    %v670 = vshrl.u32 %v669, 7
    %v671 = vsub.s32 2, %v670
    %v672 = vrot.slane %v88, %v671
    %v673 = vadd.f32 %v486, %v672
    %v674 = vadd.f32 %v492, %v672
    %vm675 = vcmask 7168
    %v676 = vsel %vm675, %v667, -inf
    %v677 = vsel %vm675, %v668, -inf
    %v678 = vmax.f32 %v676, %v677
    %v679 = vrot.slane %v678, 4
    %v680 = vmax.f32 %v678, %v679
    %v681 = vrot.slane %v680, 2
    %v682 = vmax.f32 %v680, %v681
    %v683 = vrot.slane %v682, 1
    %v684 = vmax.f32 %v682, %v683
    %v685 = vsub.f32 %v667, %v684
    %v686 = vsub.f32 %v668, %v684
    %v687 = vmul.f32 %v685, 1.442695
    %v688 = vpow.pop %v687
    %v689 = vmul.f32 %v686, 1.442695
    %v690 = vpow.pop %v689
    %692 = vset.pattern.permute.xlu0 0
    %693 = vperm.xlu0 %692, %v688
    %v694 = vpop.permute.xlu0 %693
    %697 = vset.pattern.permute.xlu0 0
    %698 = vperm.xlu0 %697, %v690
    %v699 = vpop.permute.xlu0 %698
    %v701 = vmul.f32 %v673, %v694
    %v702 = vmul.f32 %v674, %v699
    %703 = vxpose.xlu0.b32.start [1/16] %v82, 128
    %704 = vxpose.xlu0.b32.cont [2/16] %v83, 128
    %705 = vxpose.xlu0.b32.cont [3/16] 0.0, 128
    %706 = vxpose.xlu0.b32.cont [4/16] 0.0, 128
    %707 = vxpose.xlu0.b32.cont [5/16] 0.0, 128
    %708 = vxpose.xlu0.b32.cont [6/16] 0.0, 128
    %709 = vxpose.xlu0.b32.cont [7/16] 0.0, 128
    %710 = vxpose.xlu0.b32.cont [8/16] 0.0, 128
    %711 = vxpose.xlu0.b32.cont [9/16] 0.0, 128
    %712 = vxpose.xlu0.b32.cont [10/16] 0.0, 128
    %713 = vxpose.xlu0.b32.cont [11/16] 0.0, 128
    %714 = vxpose.xlu0.b32.cont [12/16] 0.0, 128
    %715 = vxpose.xlu0.b32.cont [13/16] 0.0, 128
    %716 = vxpose.xlu0.b32.cont [14/16] 0.0, 128
    %717 = vxpose.xlu0.b32.cont [15/16] 0.0, 128
    %718 = vxpose.xlu0.b32.end [16/16] 0.0, 128
    %v719 = vpop.trf.xlu0
    %v720 = vpop.trf.xlu0
    %v721 = vpop.trf.xlu0
    %v722 = vpop.trf.xlu0
    %v723 = vpop.trf.xlu0
    %v724 = vpop.trf.xlu0
    %v725 = vpop.trf.xlu0
    %v726 = vpop.trf.xlu0
    %v727 = vpop.trf.xlu0
    %v728 = vpop.trf.xlu0
    %v729 = vpop.trf.xlu0
    %v730 = vpop.trf.xlu0
    %v731 = vpop.trf.xlu0
    %v732 = vpop.trf.xlu0
    %v733 = vpop.trf.xlu0
    %v734 = vpop.trf.xlu0
    %v736 = vsel %vm110, %v719, 0
    %v739 = vsel %vm110, %v720, 0
    %741 = vmatprep.subr.mxu0 %v688
    %742 = vmatpush1.msra.mxu0 %v701
    %743 = vmatprep.subr.mxu0 %v690
    %744 = vmatpush1.msra.mxu0 %v702
    %745 = vmatprep.subr.mxu0 0.0
    %746 = vmatpush1.msra.mxu0 0.0
    %747 = vmatprep.subr.mxu0 0.0
    %748 = vmatpush1.msra.mxu0 0.0
    %749 = vmatprep.subr.mxu0 0.0
    %750 = vmatpush1.msra.mxu0 0.0
    %751 = vmatprep.subr.mxu0 0.0
    %752 = vmatpush1.msra.mxu0 0.0
    %753 = vmatprep.subr.mxu0 0.0
    %754 = vmatpush1.msra.mxu0 0.0
    %755 = vmatprep.subr.mxu0 0.0
    %756 = vmatpush1.msra.mxu0 0.0
    %757 = vmatprep.subr.mxu0 0.0
    %758 = vmatpush1.msra.mxu0 0.0
    %759 = vmatprep.subr.mxu0 0.0
    %760 = vmatpush1.msra.mxu0 0.0
    %761 = vmatprep.subr.mxu0 0.0
    %762 = vmatpush1.msra.mxu0 0.0
    %763 = vmatprep.subr.mxu0 0.0
    %764 = vmatpush1.msra.mxu0 0.0
    %765 = vmatprep.subr.mxu0 0.0
    %766 = vmatpush1.msra.mxu0 0.0
    %767 = vmatprep.subr.mxu0 0.0
    %768 = vmatpush1.msra.mxu0 0.0
    %769 = vmatprep.subr.mxu0 0.0
    %770 = vmatpush1.msra.mxu0 0.0
    %771 = vmatprep.subr.mxu0 0.0
    %772 = vmatpush1.msra.mxu0 0.0
    %773 = vmatprep.subr.mxu0 0.0
    %774 = vmatpush1.msra.mxu0 0.0
    %775 = vmatprep.subr.mxu0 0.0
    %776 = vmatpush1.msra.mxu0 0.0
    %777 = vmatprep.subr.mxu0 0.0
    %778 = vmatpush1.msra.mxu0 0.0
    %779 = vmatprep.subr.mxu0 0.0
    %780 = vmatpush1.msra.mxu0 0.0
    %781 = vmatprep.subr.mxu0 0.0
    %782 = vmatpush1.msra.mxu0 0.0
    %783 = vmatprep.subr.mxu0 0.0
    %784 = vmatpush1.msra.mxu0 0.0
    %785 = vmatprep.subr.mxu0 0.0
    %786 = vmatpush1.msra.mxu0 0.0
    %787 = vmatprep.subr.mxu0 0.0
    %788 = vmatpush1.msra.mxu0 0.0
    %789 = vmatprep.subr.mxu0 0.0
    %790 = vmatpush1.msra.mxu0 0.0
    %791 = vmatprep.subr.mxu0 0.0
    %792 = vmatpush1.msra.mxu0 0.0
    %793 = vmatprep.subr.mxu0 0.0
    %794 = vmatpush1.msra.mxu0 0.0
    %795 = vmatprep.subr.mxu0 0.0
    %796 = vmatpush1.msra.mxu0 0.0
    %797 = vmatprep.subr.mxu0 0.0
    %798 = vmatpush1.msra.mxu0 0.0
    %799 = vmatprep.subr.mxu0 0.0
    %800 = vmatpush1.msra.mxu0 0.0
    %801 = vmatprep.subr.mxu0 0.0
    %802 = vmatpush1.msra.mxu0 0.0
    %803 = vmatprep.subr.mxu0 0.0
    %804 = vmatpush1.msra.mxu0 0.0
    %805 = vmatprep.mubr.f32.mxu0 0.0
    %806 = vmatmul.mubr.f32.gmra.mrb[0].mxu0 %v736
    %v807 = vpop.f32.mrb[0].mxu0
    %v808 = vadd.f32 0.0, %v807
    %v809 = vpop.f32.mrb[0].mxu0
    %v810 = vadd.f32 0.0, %v809
    %811 = vmatprep.mubr.f32.mxu0 0.0
    %812 = vmatmul.mubr.f32.gmra.mrb[0].mxu0 %v739
    %v813 = vpop.f32.mrb[0].mxu0
    %v814 = vadd.f32 0.0, %v813
    %v815 = vpop.f32.mrb[0].mxu0
    %v816 = vadd.f32 0.0, %v815
    %817 = vdwg.mxu0
    %vm818 = vcmp.eq.f32.partialorder %v810, 0.0
    %vm819 = vcmp.eq.f32.partialorder %v816, 0.0
    %v820 = vsel %vm818, 1.0, %v810
    %v821 = vsel %vm819, 1.0, %v816
    %823 = vset.pattern.permute.xlu0 0
    %824 = vperm.xlu0 %823, %v820
    %v825 = vpop.permute.xlu0 %824
    %828 = vset.pattern.permute.xlu0 0
    %829 = vperm.xlu0 %828, %v821
    %v830 = vpop.permute.xlu0 %829
    %v832 = vrcp.pop %v825
    %v833 = vmul.f32 %v808, %v832
    %v834 = vrcp.pop %v830
    %v835 = vmul.f32 %v814, %v834
    %vm836 = vcmp.gt.f32.partialorder %v833, 0.0
    %vm837 = vcmp.gt.f32.partialorder %v835, 0.0
    %v838 = vmin.f32 %v833, 0.0
    %v839 = vmin.f32 %v835, 0.0
    %v840 = vmul.f32 %v838, 1.442695
    %v841 = vpow.pop %v840
    %v842 = vmul.f32 %v839, 1.442695
    %v843 = vpow.pop %v842
    %v844 = vsub.f32 %v841, 1.0
    %v845 = vsub.f32 %v843, 1.0
    %v846 = vsel %vm836, %v833, %v844
    %v847 = vsel %vm837, %v835, %v845
    %v848 = vld [vmem:[%s12] sm:$0xff]
    %v849 = vld [vmem:[%s12 + $0x8] sm:$0xff]
    %v850 = vld [vmem:[%s12 + $0x10] sm:$0xff]
    %v851 = vld [vmem:[%s12 + $0x18] sm:$0xff]
    %v852 = vld [vmem:[%s12 + $0x20] sm:$0xff]
    %v853 = vld [vmem:[%s12 + $0x28] sm:$0xff]
    %v854 = vld [vmem:[%s12 + $0x30] sm:$0xff]
    %v855 = vld [vmem:[%s12 + $0x38] sm:$0xff]
    %v856 = vld [vmem:[%s12 + $0x40] sm:$0xff]
    %v857 = vld [vmem:[%s12 + $0x48] sm:$0xff]
    %v858 = vld [vmem:[%s12 + $0x50] sm:$0xff]
    %v859 = vld [vmem:[%s12 + $0x58] sm:$0xff]
    %v860 = vld [vmem:[%s12 + $0x60] sm:$0xff]
    %v861 = vld [vmem:[%s12 + $0x68] sm:$0xff]
    %v862 = vld [vmem:[%s12 + $0x70] sm:$0xff]
    %v863 = vld [vmem:[%s12 + $0x78] sm:$0xff]
    %v864 = vld [vmem:[%s12 + $0x80] sm:$0xff]
    %v865 = vld [vmem:[%s12 + $0x88] sm:$0xff]
    %v866 = vld [vmem:[%s12 + $0x90] sm:$0xff]
    %v867 = vld [vmem:[%s12 + $0x98] sm:$0xff]
    %v868 = vld [vmem:[%s12 + $0xa0] sm:$0xff]
    %v869 = vld [vmem:[%s12 + $0xa8] sm:$0xff]
    %v870 = vld [vmem:[%s12 + $0xb0] sm:$0xff]
    %v871 = vld [vmem:[%s12 + $0xb8] sm:$0xff]
    %v872 = vld [vmem:[%s12 + $0xc0] sm:$0xff]
    %v873 = vld [vmem:[%s12 + $0xc8] sm:$0xff]
    %v874 = vld [vmem:[%s12 + $0xd0] sm:$0xff]
    %v875 = vld [vmem:[%s12 + $0xd8] sm:$0xff]
    %v876 = vld [vmem:[%s12 + $0xe0] sm:$0xff]
    %v877 = vld [vmem:[%s12 + $0xe8] sm:$0xff]
    %v878 = vld [vmem:[%s12 + $0xf0] sm:$0xff]
    %v879 = vld [vmem:[%s12 + $0xf8] sm:$0xff]
    %v880 = vld [vmem:[%s12 + $0x100] sm:$0xff]
    %v881 = vld [vmem:[%s12 + $0x108] sm:$0xff]
    %v882 = vld [vmem:[%s12 + $0x110] sm:$0xff]
    %v883 = vld [vmem:[%s12 + $0x118] sm:$0xff]
    %v884 = vld [vmem:[%s12 + $0x120] sm:$0xff]
    %v885 = vld [vmem:[%s12 + $0x128] sm:$0xff]
    %v886 = vld [vmem:[%s12 + $0x130] sm:$0xff]
    %v887 = vld [vmem:[%s12 + $0x138] sm:$0xff]
    %v888 = vld [vmem:[%s12 + $0x140] sm:$0xff]
    %v889 = vld [vmem:[%s12 + $0x148] sm:$0xff]
    %v890 = vld [vmem:[%s12 + $0x150] sm:$0xff]
    %v891 = vld [vmem:[%s12 + $0x158] sm:$0xff]
    %v892 = vld [vmem:[%s12 + $0x160] sm:$0xff]
    %v893 = vld [vmem:[%s12 + $0x168] sm:$0xff]
    %v894 = vld [vmem:[%s12 + $0x170] sm:$0xff]
    %v895 = vld [vmem:[%s12 + $0x178] sm:$0xff]
    %v896 = vld [vmem:[%s12 + $0x180] sm:$0xff]
    %v897 = vld [vmem:[%s12 + $0x188] sm:$0xff]
    %v898 = vld [vmem:[%s12 + $0x190] sm:$0xff]
    %v899 = vld [vmem:[%s12 + $0x198] sm:$0xff]
    %v900 = vld [vmem:[%s12 + $0x1a0] sm:$0xff]
    %v901 = vld [vmem:[%s12 + $0x1a8] sm:$0xff]
    %v902 = vld [vmem:[%s12 + $0x1b0] sm:$0xff]
    %v903 = vld [vmem:[%s12 + $0x1b8] sm:$0xff]
    %v904 = vld [vmem:[%s12 + $0x1c0] sm:$0xff]
    %v905 = vld [vmem:[%s12 + $0x1c8] sm:$0xff]
    %v906 = vld [vmem:[%s12 + $0x1d0] sm:$0xff]
    %v907 = vld [vmem:[%s12 + $0x1d8] sm:$0xff]
    %v908 = vld [vmem:[%s12 + $0x1e0] sm:$0xff]
    %v909 = vld [vmem:[%s12 + $0x1e8] sm:$0xff]
    %v910 = vld [vmem:[%s12 + $0x1f0] sm:$0xff]
    %v911 = vld [vmem:[%s12 + $0x1f8] sm:$0xff]
    %v912 = vld [vmem:[%s12 + $0x200] sm:$0xff]
    %v913 = vld [vmem:[%s12 + $0x208] sm:$0xff]
    %v914 = vld [vmem:[%s12 + $0x210] sm:$0xff]
    %v915 = vld [vmem:[%s12 + $0x218] sm:$0xff]
    %v916 = vld [vmem:[%s12 + $0x220] sm:$0xff]
    %v917 = vld [vmem:[%s12 + $0x228] sm:$0xff]
    %v918 = vld [vmem:[%s12 + $0x230] sm:$0xff]
    %v919 = vld [vmem:[%s12 + $0x238] sm:$0xff]
    %v920 = vld [vmem:[%s12 + $0x240] sm:$0xff]
    %v921 = vld [vmem:[%s12 + $0x248] sm:$0xff]
    %v922 = vld [vmem:[%s12 + $0x250] sm:$0xff]
    %v923 = vld [vmem:[%s12 + $0x258] sm:$0xff]
    %v924 = vld [vmem:[%s12 + $0x260] sm:$0xff]
    %v925 = vld [vmem:[%s12 + $0x268] sm:$0xff]
    %v926 = vld [vmem:[%s12 + $0x270] sm:$0xff]
    %v927 = vld [vmem:[%s12 + $0x278] sm:$0xff]
    %v928 = vld [vmem:[%s12 + $0x280] sm:$0xff]
    %v929 = vld [vmem:[%s12 + $0x288] sm:$0xff]
    %v930 = vld [vmem:[%s12 + $0x290] sm:$0xff]
    %v931 = vld [vmem:[%s12 + $0x298] sm:$0xff]
    %v932 = vld [vmem:[%s12 + $0x2a0] sm:$0xff]
    %v933 = vld [vmem:[%s12 + $0x2a8] sm:$0xff]
    %v934 = vld [vmem:[%s12 + $0x2b0] sm:$0xff]
    %v935 = vld [vmem:[%s12 + $0x2b8] sm:$0xff]
    %v936 = vld [vmem:[%s12 + $0x2c0] sm:$0xff]
    %v937 = vld [vmem:[%s12 + $0x2c8] sm:$0xff]
    %v938 = vld [vmem:[%s12 + $0x2d0] sm:$0xff]
    %v939 = vld [vmem:[%s12 + $0x2d8] sm:$0xff]
    %v940 = vld [vmem:[%s12 + $0x2e0] sm:$0xff]
    %v941 = vld [vmem:[%s12 + $0x2e8] sm:$0xff]
    %v942 = vld [vmem:[%s12 + $0x2f0] sm:$0xff]
    %v943 = vld [vmem:[%s12 + $0x2f8] sm:$0xff]
    %v944 = vld [vmem:[%s19] sm:$0x3f]
    %v946 = vlaneseq
    %v947 = vshrl.u32 %v946, 7
    %v948 = vsub.s32 0, %v947
    %v949 = vrot.slane %v944, %v948
    %v950 = vlaneseq
    %v951 = vshrl.u32 %v950, 7
    %v952 = vsub.s32 2, %v951
    %v953 = vrot.slane %v944, %v952
    %v954 = vlaneseq
    %v955 = vshrl.u32 %v954, 7
    %v956 = vsub.s32 4, %v955
    %v957 = vrot.slane %v944, %v956
    %v961 = vlaneseq
    %v962 = vshrl.u32 %v961, 7
    %v963 = vsub.s32 0, %v962
    %v964 = vrot.slane %v949, %v963
    %v965 = vlaneseq
    %v966 = vshrl.u32 %v965, 7
    %v967 = vsub.s32 0, %v966
    %v968 = vrot.slane %v953, %v967
    %v969 = vlaneseq
    %v970 = vshrl.u32 %v969, 7
    %v971 = vsub.s32 0, %v970
    %v972 = vrot.slane %v957, %v971
    %973 = vmatprep.subr.mxu0 %v849
    %974 = vmatpush1.msra.mxu0 %v848
    %975 = vmatprep.subr.mxu0 %v852
    %976 = vmatpush1.msra.mxu0 %v851
    %977 = vmatprep.subr.mxu0 %v855
    %978 = vmatpush1.msra.mxu0 %v854
    %979 = vmatprep.subr.mxu0 %v858
    %980 = vmatpush1.msra.mxu0 %v857
    %981 = vmatprep.subr.mxu0 %v861
    %982 = vmatpush1.msra.mxu0 %v860
    %983 = vmatprep.subr.mxu0 %v864
    %984 = vmatpush1.msra.mxu0 %v863
    %985 = vmatprep.subr.mxu0 %v867
    %986 = vmatpush1.msra.mxu0 %v866
    %987 = vmatprep.subr.mxu0 %v870
    %988 = vmatpush1.msra.mxu0 %v869
    %989 = vmatprep.subr.mxu0 %v873
    %990 = vmatpush1.msra.mxu0 %v872
    %991 = vmatprep.subr.mxu0 %v876
    %992 = vmatpush1.msra.mxu0 %v875
    %993 = vmatprep.subr.mxu0 %v879
    %994 = vmatpush1.msra.mxu0 %v878
    %995 = vmatprep.subr.mxu0 %v882
    %996 = vmatpush1.msra.mxu0 %v881
    %997 = vmatprep.subr.mxu0 %v885
    %998 = vmatpush1.msra.mxu0 %v884
    %999 = vmatprep.subr.mxu0 %v888
    %1000 = vmatpush1.msra.mxu0 %v887
    %1001 = vmatprep.subr.mxu0 %v891
    %1002 = vmatpush1.msra.mxu0 %v890
    %1003 = vmatprep.subr.mxu0 %v894
    %1004 = vmatpush1.msra.mxu0 %v893
    %1005 = vmatprep.subr.mxu0 0.0
    %1006 = vmatpush1.msra.mxu0 0.0
    %1007 = vmatprep.subr.mxu0 0.0
    %1008 = vmatpush1.msra.mxu0 0.0
    %1009 = vmatprep.subr.mxu0 0.0
    %1010 = vmatpush1.msra.mxu0 0.0
    %1011 = vmatprep.subr.mxu0 0.0
    %1012 = vmatpush1.msra.mxu0 0.0
    %1013 = vmatprep.subr.mxu0 0.0
    %1014 = vmatpush1.msra.mxu0 0.0
    %1015 = vmatprep.subr.mxu0 0.0
    %1016 = vmatpush1.msra.mxu0 0.0
    %1017 = vmatprep.subr.mxu0 0.0
    %1018 = vmatpush1.msra.mxu0 0.0
    %1019 = vmatprep.subr.mxu0 0.0
    %1020 = vmatpush1.msra.mxu0 0.0
    %1021 = vmatprep.subr.mxu0 0.0
    %1022 = vmatpush1.msra.mxu0 0.0
    %1023 = vmatprep.subr.mxu0 0.0
    %1024 = vmatpush1.msra.mxu0 0.0
    %1025 = vmatprep.subr.mxu0 0.0
    %1026 = vmatpush1.msra.mxu0 0.0
    %1027 = vmatprep.subr.mxu0 0.0
    %1028 = vmatpush1.msra.mxu0 0.0
    %1029 = vmatprep.subr.mxu0 0.0
    %1030 = vmatpush1.msra.mxu0 0.0
    %1031 = vmatprep.subr.mxu0 0.0
    %1032 = vmatpush1.msra.mxu0 0.0
    %1033 = vmatprep.subr.mxu0 0.0
    %1034 = vmatpush1.msra.mxu0 0.0
    %1035 = vmatprep.subr.mxu0 0.0
    %1036 = vmatpush1.msra.mxu0 0.0
    %1037 = vmatprep.mubr.f32.mxu0 0.0
    %1038 = vmatmul.mubr.f32.gmra.mrb[0].mxu0 %v846
    %v1039 = vpop.f32.mrb[0].mxu0
    %v1040 = vadd.f32 %v964, %v1039
    %v1041 = vpop.f32.mrb[0].mxu0
    %v1042 = vadd.f32 %v968, %v1041
    %1043 = vmatprep.mubr.f32.mxu0 0.0
    %1044 = vmatmul.mubr.f32.gmra.mrb[0].mxu0 %v847
    %v1045 = vpop.f32.mrb[0].mxu0
    %v1046 = vadd.f32 %v964, %v1045
    %v1047 = vpop.f32.mrb[0].mxu0
    %v1048 = vadd.f32 %v968, %v1047
    %1049 = vdwg.mxu0
    %1050 = vmatprep.subr.mxu0 0.0
    %1051 = vmatpush1.msra.mxu0 %v850
    %1052 = vmatprep.subr.mxu0 0.0
    %1053 = vmatpush1.msra.mxu0 %v853
    %1054 = vmatprep.subr.mxu0 0.0
    %1055 = vmatpush1.msra.mxu0 %v856
    %1056 = vmatprep.subr.mxu0 0.0
    %1057 = vmatpush1.msra.mxu0 %v859
    %1058 = vmatprep.subr.mxu0 0.0
    %1059 = vmatpush1.msra.mxu0 %v862
    %1060 = vmatprep.subr.mxu0 0.0
    %1061 = vmatpush1.msra.mxu0 %v865
    %1062 = vmatprep.subr.mxu0 0.0
    %1063 = vmatpush1.msra.mxu0 %v868
    %1064 = vmatprep.subr.mxu0 0.0
    %1065 = vmatpush1.msra.mxu0 %v871
    %1066 = vmatprep.subr.mxu0 0.0
    %1067 = vmatpush1.msra.mxu0 %v874
    %1068 = vmatprep.subr.mxu0 0.0
    %1069 = vmatpush1.msra.mxu0 %v877
    %1070 = vmatprep.subr.mxu0 0.0
    %1071 = vmatpush1.msra.mxu0 %v880
    %1072 = vmatprep.subr.mxu0 0.0
    %1073 = vmatpush1.msra.mxu0 %v883
    %1074 = vmatprep.subr.mxu0 0.0
    %1075 = vmatpush1.msra.mxu0 %v886
    %1076 = vmatprep.subr.mxu0 0.0
    %1077 = vmatpush1.msra.mxu0 %v889
    %1078 = vmatprep.subr.mxu0 0.0
    %1079 = vmatpush1.msra.mxu0 %v892
    %1080 = vmatprep.subr.mxu0 0.0
    %1081 = vmatpush1.msra.mxu0 %v895
    %1082 = vmatprep.subr.mxu0 0.0
    %1083 = vmatpush1.msra.mxu0 0.0
    %1084 = vmatprep.subr.mxu0 0.0
    %1085 = vmatpush1.msra.mxu0 0.0
    %1086 = vmatprep.subr.mxu0 0.0
    %1087 = vmatpush1.msra.mxu0 0.0
    %1088 = vmatprep.subr.mxu0 0.0
    %1089 = vmatpush1.msra.mxu0 0.0
    %1090 = vmatprep.subr.mxu0 0.0
    %1091 = vmatpush1.msra.mxu0 0.0
    %1092 = vmatprep.subr.mxu0 0.0
    %1093 = vmatpush1.msra.mxu0 0.0
    %1094 = vmatprep.subr.mxu0 0.0
    %1095 = vmatpush1.msra.mxu0 0.0
    %1096 = vmatprep.subr.mxu0 0.0
    %1097 = vmatpush1.msra.mxu0 0.0
    %1098 = vmatprep.subr.mxu0 0.0
    %1099 = vmatpush1.msra.mxu0 0.0
    %1100 = vmatprep.subr.mxu0 0.0
    %1101 = vmatpush1.msra.mxu0 0.0
    %1102 = vmatprep.subr.mxu0 0.0
    %1103 = vmatpush1.msra.mxu0 0.0
    %1104 = vmatprep.subr.mxu0 0.0
    %1105 = vmatpush1.msra.mxu0 0.0
    %1106 = vmatprep.subr.mxu0 0.0
    %1107 = vmatpush1.msra.mxu0 0.0
    %1108 = vmatprep.subr.mxu0 0.0
    %1109 = vmatpush1.msra.mxu0 0.0
    %1110 = vmatprep.subr.mxu0 0.0
    %1111 = vmatpush1.msra.mxu0 0.0
    %1112 = vmatprep.subr.mxu0 0.0
    %1113 = vmatpush1.msra.mxu0 0.0
    %1114 = vmatprep.mubr.f32.mxu0 0.0
    %1115 = vmatmul.mubr.f32.gmra.mrb[0].mxu0 %v846
    %v1116 = vpop.f32.mrb[0].mxu0
    %v1117 = vadd.f32 %v972, %v1116
    %v1118 = vpop.f32.mrb[0].mxu0
    %1119 = vmatprep.mubr.f32.mxu0 0.0
    %1120 = vmatmul.mubr.f32.gmra.mrb[0].mxu0 %v847
    %v1121 = vpop.f32.mrb[0].mxu0
    %v1122 = vadd.f32 %v972, %v1121
    %v1123 = vpop.f32.mrb[0].mxu0
    %1124 = vdwg.mxu0
    %v1125 = vlaneseq
    %v1126 = vshrl.u32 %v1125, 7
    %v1127 = vsub.s32 1, %v1126
    %v1128 = vrot.slane %v944, %v1127
    %v1129 = vlaneseq
    %v1130 = vshrl.u32 %v1129, 7
    %v1131 = vsub.s32 3, %v1130
    %v1132 = vrot.slane %v944, %v1131
    %v1133 = vlaneseq
    %v1134 = vshrl.u32 %v1133, 7
    %v1135 = vsub.s32 5, %v1134
    %v1136 = vrot.slane %v944, %v1135
    %v1140 = vlaneseq
    %v1141 = vshrl.u32 %v1140, 7
    %v1142 = vsub.s32 1, %v1141
    %v1143 = vrot.slane %v1128, %v1142
    %v1144 = vlaneseq
    %v1145 = vshrl.u32 %v1144, 7
    %v1146 = vsub.s32 1, %v1145
    %v1147 = vrot.slane %v1132, %v1146
    %v1148 = vlaneseq
    %v1149 = vshrl.u32 %v1148, 7
    %v1150 = vsub.s32 1, %v1149
    %v1151 = vrot.slane %v1136, %v1150
    %1152 = vmatprep.subr.mxu0 %v897
    %1153 = vmatpush1.msra.mxu0 %v896
    %1154 = vmatprep.subr.mxu0 %v900
    %1155 = vmatpush1.msra.mxu0 %v899
    %1156 = vmatprep.subr.mxu0 %v903
    %1157 = vmatpush1.msra.mxu0 %v902
    %1158 = vmatprep.subr.mxu0 %v906
    %1159 = vmatpush1.msra.mxu0 %v905
    %1160 = vmatprep.subr.mxu0 %v909
    %1161 = vmatpush1.msra.mxu0 %v908
    %1162 = vmatprep.subr.mxu0 %v912
    %1163 = vmatpush1.msra.mxu0 %v911
    %1164 = vmatprep.subr.mxu0 %v915
    %1165 = vmatpush1.msra.mxu0 %v914
    %1166 = vmatprep.subr.mxu0 %v918
    %1167 = vmatpush1.msra.mxu0 %v917
    %1168 = vmatprep.subr.mxu0 %v921
    %1169 = vmatpush1.msra.mxu0 %v920
    %1170 = vmatprep.subr.mxu0 %v924
    %1171 = vmatpush1.msra.mxu0 %v923
    %1172 = vmatprep.subr.mxu0 %v927
    %1173 = vmatpush1.msra.mxu0 %v926
    %1174 = vmatprep.subr.mxu0 %v930
    %1175 = vmatpush1.msra.mxu0 %v929
    %1176 = vmatprep.subr.mxu0 %v933
    %1177 = vmatpush1.msra.mxu0 %v932
    %1178 = vmatprep.subr.mxu0 %v936
    %1179 = vmatpush1.msra.mxu0 %v935
    %1180 = vmatprep.subr.mxu0 %v939
    %1181 = vmatpush1.msra.mxu0 %v938
    %1182 = vmatprep.subr.mxu0 %v942
    %1183 = vmatpush1.msra.mxu0 %v941
    %1184 = vmatprep.subr.mxu0 0.0
    %1185 = vmatpush1.msra.mxu0 0.0
    %1186 = vmatprep.subr.mxu0 0.0
    %1187 = vmatpush1.msra.mxu0 0.0
    %1188 = vmatprep.subr.mxu0 0.0
    %1189 = vmatpush1.msra.mxu0 0.0
    %1190 = vmatprep.subr.mxu0 0.0
    %1191 = vmatpush1.msra.mxu0 0.0
    %1192 = vmatprep.subr.mxu0 0.0
    %1193 = vmatpush1.msra.mxu0 0.0
    %1194 = vmatprep.subr.mxu0 0.0
    %1195 = vmatpush1.msra.mxu0 0.0
    %1196 = vmatprep.subr.mxu0 0.0
    %1197 = vmatpush1.msra.mxu0 0.0
    %1198 = vmatprep.subr.mxu0 0.0
    %1199 = vmatpush1.msra.mxu0 0.0
    %1200 = vmatprep.subr.mxu0 0.0
    %1201 = vmatpush1.msra.mxu0 0.0
    %1202 = vmatprep.subr.mxu0 0.0
    %1203 = vmatpush1.msra.mxu0 0.0
    %1204 = vmatprep.subr.mxu0 0.0
    %1205 = vmatpush1.msra.mxu0 0.0
    %1206 = vmatprep.subr.mxu0 0.0
    %1207 = vmatpush1.msra.mxu0 0.0
    %1208 = vmatprep.subr.mxu0 0.0
    %1209 = vmatpush1.msra.mxu0 0.0
    %1210 = vmatprep.subr.mxu0 0.0
    %1211 = vmatpush1.msra.mxu0 0.0
    %1212 = vmatprep.subr.mxu0 0.0
    %1213 = vmatpush1.msra.mxu0 0.0
    %1214 = vmatprep.subr.mxu0 0.0
    %1215 = vmatpush1.msra.mxu0 0.0
    %1216 = vmatprep.mubr.f32.mxu0 0.0
    %1217 = vmatmul.mubr.f32.gmra.mrb[0].mxu0 %v204
    %v1218 = vpop.f32.mrb[0].mxu0
    %v1219 = vadd.f32 %v1143, %v1218
    %v1220 = vpop.f32.mrb[0].mxu0
    %v1221 = vadd.f32 %v1147, %v1220
    %1222 = vmatprep.mubr.f32.mxu0 0.0
    %1223 = vmatmul.mubr.f32.gmra.mrb[0].mxu0 %v205
    %v1224 = vpop.f32.mrb[0].mxu0
    %v1225 = vadd.f32 %v1143, %v1224
    %v1226 = vpop.f32.mrb[0].mxu0
    %v1227 = vadd.f32 %v1147, %v1226
    %1228 = vdwg.mxu0
    %1229 = vmatprep.subr.mxu0 0.0
    %1230 = vmatpush1.msra.mxu0 %v898
    %1231 = vmatprep.subr.mxu0 0.0
    %1232 = vmatpush1.msra.mxu0 %v901
    %1233 = vmatprep.subr.mxu0 0.0
    %1234 = vmatpush1.msra.mxu0 %v904
    %1235 = vmatprep.subr.mxu0 0.0
    %1236 = vmatpush1.msra.mxu0 %v907
    %1237 = vmatprep.subr.mxu0 0.0
    %1238 = vmatpush1.msra.mxu0 %v910
    %1239 = vmatprep.subr.mxu0 0.0
    %1240 = vmatpush1.msra.mxu0 %v913
    %1241 = vmatprep.subr.mxu0 0.0
    %1242 = vmatpush1.msra.mxu0 %v916
    %1243 = vmatprep.subr.mxu0 0.0
    %1244 = vmatpush1.msra.mxu0 %v919
    %1245 = vmatprep.subr.mxu0 0.0
    %1246 = vmatpush1.msra.mxu0 %v922
    %1247 = vmatprep.subr.mxu0 0.0
    %1248 = vmatpush1.msra.mxu0 %v925
    %1249 = vmatprep.subr.mxu0 0.0
    %1250 = vmatpush1.msra.mxu0 %v928
    %1251 = vmatprep.subr.mxu0 0.0
    %1252 = vmatpush1.msra.mxu0 %v931
    %1253 = vmatprep.subr.mxu0 0.0
    %1254 = vmatpush1.msra.mxu0 %v934
    %1255 = vmatprep.subr.mxu0 0.0
    %1256 = vmatpush1.msra.mxu0 %v937
    %1257 = vmatprep.subr.mxu0 0.0
    %1258 = vmatpush1.msra.mxu0 %v940
    %1259 = vmatprep.subr.mxu0 0.0
    %1260 = vmatpush1.msra.mxu0 %v943
    %1261 = vmatprep.subr.mxu0 0.0
    %1262 = vmatpush1.msra.mxu0 0.0
    %1263 = vmatprep.subr.mxu0 0.0
    %1264 = vmatpush1.msra.mxu0 0.0
    %1265 = vmatprep.subr.mxu0 0.0
    %1266 = vmatpush1.msra.mxu0 0.0
    %1267 = vmatprep.subr.mxu0 0.0
    %1268 = vmatpush1.msra.mxu0 0.0
    %1269 = vmatprep.subr.mxu0 0.0
    %1270 = vmatpush1.msra.mxu0 0.0
    %1271 = vmatprep.subr.mxu0 0.0
    %1272 = vmatpush1.msra.mxu0 0.0
    %1273 = vmatprep.subr.mxu0 0.0
    %1274 = vmatpush1.msra.mxu0 0.0
    %1275 = vmatprep.subr.mxu0 0.0
    %1276 = vmatpush1.msra.mxu0 0.0
    %1277 = vmatprep.subr.mxu0 0.0
    %1278 = vmatpush1.msra.mxu0 0.0
    %1279 = vmatprep.subr.mxu0 0.0
    %1280 = vmatpush1.msra.mxu0 0.0
    %1281 = vmatprep.subr.mxu0 0.0
    %1282 = vmatpush1.msra.mxu0 0.0
    %1283 = vmatprep.subr.mxu0 0.0
    %1284 = vmatpush1.msra.mxu0 0.0
    %1285 = vmatprep.subr.mxu0 0.0
    %1286 = vmatpush1.msra.mxu0 0.0
    %1287 = vmatprep.subr.mxu0 0.0
    %1288 = vmatpush1.msra.mxu0 0.0
    %1289 = vmatprep.subr.mxu0 0.0
    %1290 = vmatpush1.msra.mxu0 0.0
    %1291 = vmatprep.subr.mxu0 0.0
    %1292 = vmatpush1.msra.mxu0 0.0
    %1293 = vmatprep.mubr.f32.mxu0 0.0
    %1294 = vmatmul.mubr.f32.gmra.mrb[0].mxu0 %v204
    %v1295 = vpop.f32.mrb[0].mxu0
    %v1296 = vadd.f32 %v1151, %v1295
    %v1297 = vpop.f32.mrb[0].mxu0
    %1298 = vmatprep.mubr.f32.mxu0 0.0
    %1299 = vmatmul.mubr.f32.gmra.mrb[0].mxu0 %v205
    %v1300 = vpop.f32.mrb[0].mxu0
    %v1301 = vadd.f32 %v1151, %v1300
    %v1302 = vpop.f32.mrb[0].mxu0
    %1303 = vdwg.mxu0
    %v1304 = vadd.f32 %v1040, %v1219
    %v1305 = vadd.f32 %v1046, %v1225
    %v1306 = vxor.u32 %v1304, 2147483648
    %v1307 = vxor.u32 %v1305, 2147483648
    %v1308 = vmul.f32 %v1306, 1.442695
    %v1309 = vpow.pop %v1308
    %v1310 = vmul.f32 %v1307, 1.442695
    %v1311 = vpow.pop %v1310
    %v1312 = vadd.f32 %v1309, 1.0
    %v1313 = vadd.f32 %v1311, 1.0
    %v1314 = vrcp.pop %v1312
    %v1315 = vmul.f32 1.0, %v1314
    %v1316 = vrcp.pop %v1313
    %v1317 = vmul.f32 1.0, %v1316
    %v1318 = vadd.f32 %v1042, %v1221
    %v1319 = vadd.f32 %v1048, %v1227
    %v1320 = vxor.u32 %v1318, 2147483648
    %v1321 = vxor.u32 %v1319, 2147483648
    %v1322 = vmul.f32 %v1320, 1.442695
    %v1323 = vpow.pop %v1322
    %v1324 = vmul.f32 %v1321, 1.442695
    %v1325 = vpow.pop %v1324
    %v1326 = vadd.f32 %v1323, 1.0
    %v1327 = vadd.f32 %v1325, 1.0
    %v1328 = vrcp.pop %v1326
    %v1329 = vmul.f32 1.0, %v1328
    %v1330 = vrcp.pop %v1327
    %v1331 = vmul.f32 1.0, %v1330
    %v1332 = vmul.f32 %v1315, %v1296
    %v1333 = vmul.f32 %v1317, %v1301
    %v1334 = vadd.f32 %v1117, %v1332
    %v1335 = vadd.f32 %v1122, %v1333
    %v1336 = vtanh.pop %v1334
    %v1337 = vtanh.pop %v1335
    %v1338 = vsub.f32 1.0, %v1329
    %v1339 = vsub.f32 1.0, %v1331
    %v1340 = vmul.f32 %v1338, %v1336
    %v1341 = vmul.f32 %v1339, %v1337
    %v1342 = vmul.f32 %v1329, %v204
    %v1343 = vmul.f32 %v1331, %v205
    %v1344 = vadd.f32 %v1340, %v1342
    %v1345 = vadd.f32 %v1341, %v1343
    %v1346 = vmax.f32 %v1344, 0.0
    %v1347 = vmax.f32 %v1345, 0.0
    %v1348 = vld [vmem:[%s10] sm:$0xff]
    %v1349 = vld [vmem:[%s10 + $0x8] sm:$0xff]
    %v1350 = vld [vmem:[%s10 + $0x10] sm:$0xff]
    %v1351 = vld [vmem:[%s10 + $0x18] sm:$0xff]
    %v1352 = vld [vmem:[%s10 + $0x20] sm:$0xff]
    %v1353 = vld [vmem:[%s10 + $0x28] sm:$0xff]
    %v1354 = vld [vmem:[%s10 + $0x30] sm:$0xff]
    %v1355 = vld [vmem:[%s10 + $0x38] sm:$0xff]
    %v1356 = vld [vmem:[%s10 + $0x40] sm:$0xff]
    %v1357 = vld [vmem:[%s10 + $0x48] sm:$0xff]
    %v1358 = vld [vmem:[%s10 + $0x50] sm:$0xff]
    %v1359 = vld [vmem:[%s10 + $0x58] sm:$0xff]
    %v1360 = vld [vmem:[%s10 + $0x60] sm:$0xff]
    %v1361 = vld [vmem:[%s10 + $0x68] sm:$0xff]
    %v1362 = vld [vmem:[%s10 + $0x70] sm:$0xff]
    %v1363 = vld [vmem:[%s10 + $0x78] sm:$0xff]
    %v1364 = vld [vmem:[%s10 + $0x80] sm:$0xff]
    %v1365 = vld [vmem:[%s10 + $0x88] sm:$0xff]
    %v1366 = vld [vmem:[%s10 + $0x90] sm:$0xff]
    %v1367 = vld [vmem:[%s10 + $0x98] sm:$0xff]
    %v1368 = vld [vmem:[%s10 + $0xa0] sm:$0xff]
    %v1369 = vld [vmem:[%s10 + $0xa8] sm:$0xff]
    %v1370 = vld [vmem:[%s10 + $0xb0] sm:$0xff]
    %v1371 = vld [vmem:[%s10 + $0xb8] sm:$0xff]
    %v1372 = vld [vmem:[%s10 + $0xc0] sm:$0xff]
    %v1373 = vld [vmem:[%s10 + $0xc8] sm:$0xff]
    %v1374 = vld [vmem:[%s10 + $0xd0] sm:$0xff]
    %v1375 = vld [vmem:[%s10 + $0xd8] sm:$0xff]
    %v1376 = vld [vmem:[%s10 + $0xe0] sm:$0xff]
    %v1377 = vld [vmem:[%s10 + $0xe8] sm:$0xff]
    %v1378 = vld [vmem:[%s10 + $0xf0] sm:$0xff]
    %v1379 = vld [vmem:[%s10 + $0xf8] sm:$0xff]
    %1380 = vmatprep.subr.mxu0 %v1349
    %1381 = vmatpush1.msra.mxu0 %v1348
    %1382 = vmatprep.subr.mxu0 %v1351
    %1383 = vmatpush1.msra.mxu0 %v1350
    %1384 = vmatprep.subr.mxu0 %v1353
    %1385 = vmatpush1.msra.mxu0 %v1352
    %1386 = vmatprep.subr.mxu0 %v1355
    %1387 = vmatpush1.msra.mxu0 %v1354
    %1388 = vmatprep.subr.mxu0 %v1357
    %1389 = vmatpush1.msra.mxu0 %v1356
    %1390 = vmatprep.subr.mxu0 %v1359
    %1391 = vmatpush1.msra.mxu0 %v1358
    %1392 = vmatprep.subr.mxu0 %v1361
    %1393 = vmatpush1.msra.mxu0 %v1360
    %1394 = vmatprep.subr.mxu0 %v1363
    %1395 = vmatpush1.msra.mxu0 %v1362
    %1396 = vmatprep.subr.mxu0 %v1365
    %1397 = vmatpush1.msra.mxu0 %v1364
    %1398 = vmatprep.subr.mxu0 %v1367
    %1399 = vmatpush1.msra.mxu0 %v1366
    %1400 = vmatprep.subr.mxu0 %v1369
    %1401 = vmatpush1.msra.mxu0 %v1368
    %1402 = vmatprep.subr.mxu0 %v1371
    %1403 = vmatpush1.msra.mxu0 %v1370
    %1404 = vmatprep.subr.mxu0 %v1373
    %1405 = vmatpush1.msra.mxu0 %v1372
    %1406 = vmatprep.subr.mxu0 %v1375
    %1407 = vmatpush1.msra.mxu0 %v1374
    %1408 = vmatprep.subr.mxu0 %v1377
    %1409 = vmatpush1.msra.mxu0 %v1376
    %1410 = vmatprep.subr.mxu0 %v1379
    %1411 = vmatpush1.msra.mxu0 %v1378
    %1412 = vmatprep.subr.mxu0 0.0
    %1413 = vmatpush1.msra.mxu0 0.0
    %1414 = vmatprep.subr.mxu0 0.0
    %1415 = vmatpush1.msra.mxu0 0.0
    %1416 = vmatprep.subr.mxu0 0.0
    %1417 = vmatpush1.msra.mxu0 0.0
    %1418 = vmatprep.subr.mxu0 0.0
    %1419 = vmatpush1.msra.mxu0 0.0
    %1420 = vmatprep.subr.mxu0 0.0
    %1421 = vmatpush1.msra.mxu0 0.0
    %1422 = vmatprep.subr.mxu0 0.0
    %1423 = vmatpush1.msra.mxu0 0.0
    %1424 = vmatprep.subr.mxu0 0.0
    %1425 = vmatpush1.msra.mxu0 0.0
    %1426 = vmatprep.subr.mxu0 0.0
    %1427 = vmatpush1.msra.mxu0 0.0
    %1428 = vmatprep.subr.mxu0 0.0
    %1429 = vmatpush1.msra.mxu0 0.0
    %1430 = vmatprep.subr.mxu0 0.0
    %1431 = vmatpush1.msra.mxu0 0.0
    %1432 = vmatprep.subr.mxu0 0.0
    %1433 = vmatpush1.msra.mxu0 0.0
    %1434 = vmatprep.subr.mxu0 0.0
    %1435 = vmatpush1.msra.mxu0 0.0
    %1436 = vmatprep.subr.mxu0 0.0
    %1437 = vmatpush1.msra.mxu0 0.0
    %1438 = vmatprep.subr.mxu0 0.0
    %1439 = vmatpush1.msra.mxu0 0.0
    %1440 = vmatprep.subr.mxu0 0.0
    %1441 = vmatpush1.msra.mxu0 0.0
    %1442 = vmatprep.subr.mxu0 0.0
    %1443 = vmatpush1.msra.mxu0 0.0
    %1444 = vmatprep.mubr.f32.mxu0 0.0
    %1445 = vmatmul.mubr.f32.gmra.mrb[0].mxu0 %v1346
    %v1446 = vpop.f32.mrb[0].mxu0
    %v1447 = vadd.f32 0.0, %v1446
    %v1448 = vpop.f32.mrb[0].mxu0
    %v1449 = vadd.f32 0.0, %v1448
    %1450 = vmatprep.mubr.f32.mxu0 0.0
    %1451 = vmatmul.mubr.f32.gmra.mrb[0].mxu0 %v1347
    %v1452 = vpop.f32.mrb[0].mxu0
    %v1453 = vadd.f32 0.0, %v1452
    %v1454 = vpop.f32.mrb[0].mxu0
    %v1455 = vadd.f32 0.0, %v1454
    %1456 = vdwg.mxu0
    %v1458 = vsel %vm296, %v1453, 0
    %v1461 = vsel %vm296, %v1455, 0
    %1463 = vmatprep.subr.mxu0 %v1449
    %1464 = vmatpush1.msra.mxu0 %v1447
    %1465 = vmatprep.subr.mxu0 %v1461
    %1466 = vmatpush1.msra.mxu0 %v1458
    %1467 = vmatprep.subr.mxu0 0.0
    %1468 = vmatpush1.msra.mxu0 0.0
    %1469 = vmatprep.subr.mxu0 0.0
    %1470 = vmatpush1.msra.mxu0 0.0
    %1471 = vmatprep.subr.mxu0 0.0
    %1472 = vmatpush1.msra.mxu0 0.0
    %1473 = vmatprep.subr.mxu0 0.0
    %1474 = vmatpush1.msra.mxu0 0.0
    %1475 = vmatprep.subr.mxu0 0.0
    %1476 = vmatpush1.msra.mxu0 0.0
    %1477 = vmatprep.subr.mxu0 0.0
    %1478 = vmatpush1.msra.mxu0 0.0
    %1479 = vmatprep.subr.mxu0 0.0
    %1480 = vmatpush1.msra.mxu0 0.0
    %1481 = vmatprep.subr.mxu0 0.0
    %1482 = vmatpush1.msra.mxu0 0.0
    %1483 = vmatprep.subr.mxu0 0.0
    %1484 = vmatpush1.msra.mxu0 0.0
    %1485 = vmatprep.subr.mxu0 0.0
    %1486 = vmatpush1.msra.mxu0 0.0
    %1487 = vmatprep.subr.mxu0 0.0
    %1488 = vmatpush1.msra.mxu0 0.0
    %1489 = vmatprep.subr.mxu0 0.0
    %1490 = vmatpush1.msra.mxu0 0.0
    %1491 = vmatprep.subr.mxu0 0.0
    %1492 = vmatpush1.msra.mxu0 0.0
    %1493 = vmatprep.subr.mxu0 0.0
    %1494 = vmatpush1.msra.mxu0 0.0
    %1495 = vmatprep.subr.mxu0 0.0
    %1496 = vmatpush1.msra.mxu0 0.0
    %1497 = vmatprep.subr.mxu0 0.0
    %1498 = vmatpush1.msra.mxu0 0.0
    %1499 = vmatprep.subr.mxu0 0.0
    %1500 = vmatpush1.msra.mxu0 0.0
    %1501 = vmatprep.subr.mxu0 0.0
    %1502 = vmatpush1.msra.mxu0 0.0
    %1503 = vmatprep.subr.mxu0 0.0
    %1504 = vmatpush1.msra.mxu0 0.0
    %1505 = vmatprep.subr.mxu0 0.0
    %1506 = vmatpush1.msra.mxu0 0.0
    %1507 = vmatprep.subr.mxu0 0.0
    %1508 = vmatpush1.msra.mxu0 0.0
    %1509 = vmatprep.subr.mxu0 0.0
    %1510 = vmatpush1.msra.mxu0 0.0
    %1511 = vmatprep.subr.mxu0 0.0
    %1512 = vmatpush1.msra.mxu0 0.0
    %1513 = vmatprep.subr.mxu0 0.0
    %1514 = vmatpush1.msra.mxu0 0.0
    %1515 = vmatprep.subr.mxu0 0.0
    %1516 = vmatpush1.msra.mxu0 0.0
    %1517 = vmatprep.subr.mxu0 0.0
    %1518 = vmatpush1.msra.mxu0 0.0
    %1519 = vmatprep.subr.mxu0 0.0
    %1520 = vmatpush1.msra.mxu0 0.0
    %1521 = vmatprep.subr.mxu0 0.0
    %1522 = vmatpush1.msra.mxu0 0.0
    %1523 = vmatprep.subr.mxu0 0.0
    %1524 = vmatpush1.msra.mxu0 0.0
    %1525 = vmatprep.subr.mxu0 0.0
    %1526 = vmatpush1.msra.mxu0 0.0
    %1527 = vmatprep.mubr.f32.mxu0 0.0
    %1528 = vmatmul.mubr.f32.gmra.mrb[0].mxu0 %v291
    %v1529 = vpop.f32.mrb[0].mxu0
    %v1530 = vadd.f32 0.0, %v1529
    %v1531 = vpop.f32.mrb[0].mxu0
    %v1532 = vadd.f32 0.0, %v1531
    %1533 = vmatprep.mubr.f32.mxu0 0.0
    %1534 = vmatmul.mubr.f32.gmra.mrb[0].mxu0 %v294
    %v1535 = vpop.f32.mrb[0].mxu0
    %v1536 = vadd.f32 0.0, %v1535
    %v1537 = vpop.f32.mrb[0].mxu0
    %v1538 = vadd.f32 0.0, %v1537
    %1539 = vdwg.mxu0
    %1556 = vrot.lane.b32.xlu0 %v90, 127
    %v1557 = vpop.permute.xlu0 %1556
    %1558 = vrot.lane.b32.xlu0 %v91, 127
    %v1559 = vpop.permute.xlu0 %1558
    %1560 = vrot.lane.b32.xlu0 %v92, 127
    %v1561 = vpop.permute.xlu0 %1560
    %1562 = vrot.lane.b32.xlu0 %v93, 127
    %v1563 = vpop.permute.xlu0 %1562
    %1564 = vrot.lane.b32.xlu0 %v94, 127
    %v1565 = vpop.permute.xlu0 %1564
    %1566 = vrot.lane.b32.xlu0 %v95, 127
    %v1567 = vpop.permute.xlu0 %1566
    %1568 = vrot.lane.b32.xlu0 %v96, 127
    %v1569 = vpop.permute.xlu0 %1568
    %1570 = vrot.lane.b32.xlu0 %v97, 127
    %v1571 = vpop.permute.xlu0 %1570
    %1572 = vrot.lane.b32.xlu0 %v98, 127
    %v1573 = vpop.permute.xlu0 %1572
    %1574 = vrot.lane.b32.xlu0 %v99, 127
    %v1575 = vpop.permute.xlu0 %1574
    %1576 = vrot.lane.b32.xlu0 %v100, 127
    %v1577 = vpop.permute.xlu0 %1576
    %1578 = vrot.lane.b32.xlu0 %v101, 127
    %v1579 = vpop.permute.xlu0 %1578
    %1580 = vrot.lane.b32.xlu0 %v102, 127
    %v1581 = vpop.permute.xlu0 %1580
    %1582 = vrot.lane.b32.xlu0 %v103, 127
    %v1583 = vpop.permute.xlu0 %1582
    %1584 = vrot.lane.b32.xlu0 %v104, 127
    %v1585 = vpop.permute.xlu0 %1584
    %1586 = vrot.lane.b32.xlu0 %v105, 127
    %v1587 = vpop.permute.xlu0 %1586
    %1604 = vmatprep.subr.mxu0 0.0
    %1605 = vmatpush1.msra.mxu0 %v1557
    %1606 = vmatprep.subr.mxu0 0.0
    %1607 = vmatpush1.msra.mxu0 %v1559
    %1608 = vmatprep.subr.mxu0 0.0
    %1609 = vmatpush1.msra.mxu0 %v1561
    %1610 = vmatprep.subr.mxu0 0.0
    %1611 = vmatpush1.msra.mxu0 %v1563
    %1612 = vmatprep.subr.mxu0 0.0
    %1613 = vmatpush1.msra.mxu0 %v1565
    %1614 = vmatprep.subr.mxu0 0.0
    %1615 = vmatpush1.msra.mxu0 %v1567
    %1616 = vmatprep.subr.mxu0 0.0
    %1617 = vmatpush1.msra.mxu0 %v1569
    %1618 = vmatprep.subr.mxu0 0.0
    %1619 = vmatpush1.msra.mxu0 %v1571
    %1620 = vmatprep.subr.mxu0 0.0
    %1621 = vmatpush1.msra.mxu0 %v1573
    %1622 = vmatprep.subr.mxu0 0.0
    %1623 = vmatpush1.msra.mxu0 %v1575
    %1624 = vmatprep.subr.mxu0 0.0
    %1625 = vmatpush1.msra.mxu0 %v1577
    %1626 = vmatprep.subr.mxu0 0.0
    %1627 = vmatpush1.msra.mxu0 %v1579
    %1628 = vmatprep.subr.mxu0 0.0
    %1629 = vmatpush1.msra.mxu0 %v1581
    %1630 = vmatprep.subr.mxu0 0.0
    %1631 = vmatpush1.msra.mxu0 %v1583
    %1632 = vmatprep.subr.mxu0 0.0
    %1633 = vmatpush1.msra.mxu0 %v1585
    %1634 = vmatprep.subr.mxu0 0.0
    %1635 = vmatpush1.msra.mxu0 %v1587
    %1636 = vmatprep.subr.mxu0 0.0
    %1637 = vmatpush1.msra.mxu0 0.0
    %1638 = vmatprep.subr.mxu0 0.0
    %1639 = vmatpush1.msra.mxu0 0.0
    %1640 = vmatprep.subr.mxu0 0.0
    %1641 = vmatpush1.msra.mxu0 0.0
    %1642 = vmatprep.subr.mxu0 0.0
    %1643 = vmatpush1.msra.mxu0 0.0
    %1644 = vmatprep.subr.mxu0 0.0
    %1645 = vmatpush1.msra.mxu0 0.0
    %1646 = vmatprep.subr.mxu0 0.0
    %1647 = vmatpush1.msra.mxu0 0.0
    %1648 = vmatprep.subr.mxu0 0.0
    %1649 = vmatpush1.msra.mxu0 0.0
    %1650 = vmatprep.subr.mxu0 0.0
    %1651 = vmatpush1.msra.mxu0 0.0
    %1652 = vmatprep.subr.mxu0 0.0
    %1653 = vmatpush1.msra.mxu0 0.0
    %1654 = vmatprep.subr.mxu0 0.0
    %1655 = vmatpush1.msra.mxu0 0.0
    %1656 = vmatprep.subr.mxu0 0.0
    %1657 = vmatpush1.msra.mxu0 0.0
    %1658 = vmatprep.subr.mxu0 0.0
    %1659 = vmatpush1.msra.mxu0 0.0
    %1660 = vmatprep.subr.mxu0 0.0
    %1661 = vmatpush1.msra.mxu0 0.0
    %1662 = vmatprep.subr.mxu0 0.0
    %1663 = vmatpush1.msra.mxu0 0.0
    %1664 = vmatprep.subr.mxu0 0.0
    %1665 = vmatpush1.msra.mxu0 0.0
    %1666 = vmatprep.subr.mxu0 0.0
    %1667 = vmatpush1.msra.mxu0 0.0
    %1668 = vmatprep.mubr.f32.mxu0 0.0
    %1669 = vmatmul.mubr.f32.gmra.mrb[0].mxu0 %v1346
    %v1670 = vpop.f32.mrb[0].mxu0
    %v1671 = vadd.f32 0.0, %v1670
    %v1672 = vpop.f32.mrb[0].mxu0
    %1673 = vmatprep.mubr.f32.mxu0 0.0
    %1674 = vmatmul.mubr.f32.gmra.mrb[0].mxu0 %v1347
    %v1675 = vpop.f32.mrb[0].mxu0
    %v1676 = vadd.f32 0.0, %v1675
    %v1677 = vpop.f32.mrb[0].mxu0
    %1678 = vdwg.mxu0
    %v1680 = vsel %vm296, %v1676, 0
    %1682 = vmatprep.subr.mxu0 0.0
    %1683 = vmatpush1.msra.mxu0 %v1671
    %1684 = vmatprep.subr.mxu0 0.0
    %1685 = vmatpush1.msra.mxu0 %v1680
    %1686 = vmatprep.subr.mxu0 0.0
    %1687 = vmatpush1.msra.mxu0 0.0
    %1688 = vmatprep.subr.mxu0 0.0
    %1689 = vmatpush1.msra.mxu0 0.0
    %1690 = vmatprep.subr.mxu0 0.0
    %1691 = vmatpush1.msra.mxu0 0.0
    %1692 = vmatprep.subr.mxu0 0.0
    %1693 = vmatpush1.msra.mxu0 0.0
    %1694 = vmatprep.subr.mxu0 0.0
    %1695 = vmatpush1.msra.mxu0 0.0
    %1696 = vmatprep.subr.mxu0 0.0
    %1697 = vmatpush1.msra.mxu0 0.0
    %1698 = vmatprep.subr.mxu0 0.0
    %1699 = vmatpush1.msra.mxu0 0.0
    %1700 = vmatprep.subr.mxu0 0.0
    %1701 = vmatpush1.msra.mxu0 0.0
    %1702 = vmatprep.subr.mxu0 0.0
    %1703 = vmatpush1.msra.mxu0 0.0
    %1704 = vmatprep.subr.mxu0 0.0
    %1705 = vmatpush1.msra.mxu0 0.0
    %1706 = vmatprep.subr.mxu0 0.0
    %1707 = vmatpush1.msra.mxu0 0.0
    %1708 = vmatprep.subr.mxu0 0.0
    %1709 = vmatpush1.msra.mxu0 0.0
    %1710 = vmatprep.subr.mxu0 0.0
    %1711 = vmatpush1.msra.mxu0 0.0
    %1712 = vmatprep.subr.mxu0 0.0
    %1713 = vmatpush1.msra.mxu0 0.0
    %1714 = vmatprep.subr.mxu0 0.0
    %1715 = vmatpush1.msra.mxu0 0.0
    %1716 = vmatprep.subr.mxu0 0.0
    %1717 = vmatpush1.msra.mxu0 0.0
    %1718 = vmatprep.subr.mxu0 0.0
    %1719 = vmatpush1.msra.mxu0 0.0
    %1720 = vmatprep.subr.mxu0 0.0
    %1721 = vmatpush1.msra.mxu0 0.0
    %1722 = vmatprep.subr.mxu0 0.0
    %1723 = vmatpush1.msra.mxu0 0.0
    %1724 = vmatprep.subr.mxu0 0.0
    %1725 = vmatpush1.msra.mxu0 0.0
    %1726 = vmatprep.subr.mxu0 0.0
    %1727 = vmatpush1.msra.mxu0 0.0
    %1728 = vmatprep.subr.mxu0 0.0
    %1729 = vmatpush1.msra.mxu0 0.0
    %1730 = vmatprep.subr.mxu0 0.0
    %1731 = vmatpush1.msra.mxu0 0.0
    %1732 = vmatprep.subr.mxu0 0.0
    %1733 = vmatpush1.msra.mxu0 0.0
    %1734 = vmatprep.subr.mxu0 0.0
    %1735 = vmatpush1.msra.mxu0 0.0
    %1736 = vmatprep.subr.mxu0 0.0
    %1737 = vmatpush1.msra.mxu0 0.0
    %1738 = vmatprep.subr.mxu0 0.0
    %1739 = vmatpush1.msra.mxu0 0.0
    %1740 = vmatprep.subr.mxu0 0.0
    %1741 = vmatpush1.msra.mxu0 0.0
    %1742 = vmatprep.subr.mxu0 0.0
    %1743 = vmatpush1.msra.mxu0 0.0
    %1744 = vmatprep.subr.mxu0 0.0
    %1745 = vmatpush1.msra.mxu0 0.0
    %1746 = vmatprep.mubr.f32.mxu0 0.0
    %1747 = vmatmul.mubr.f32.gmra.mrb[0].mxu0 %v572
    %v1748 = vpop.f32.mrb[0].mxu0
    %v1749 = vadd.f32 %v1532, %v1748
    %v1750 = vpop.f32.mrb[0].mxu0
    %1751 = vmatprep.mubr.f32.mxu0 0.0
    %1752 = vmatmul.mubr.f32.gmra.mrb[0].mxu0 %v575
    %v1753 = vpop.f32.mrb[0].mxu0
    %v1754 = vadd.f32 %v1538, %v1753
    %v1755 = vpop.f32.mrb[0].mxu0
    %1756 = vdwg.mxu0
    %1757 = vrot.lane.b32.xlu0 %v659, 127
    %v1758 = vpop.permute.xlu0 %1757
    %v1760 = vadd.f32 %v1749, %v1758
    %v1761 = vadd.f32 %v1754, %v1758
    %vm1762 = vcmp.gt.f32.partialorder %v1760, 0.0
    %vm1763 = vcmp.gt.f32.partialorder %v1761, 0.0
    %v1764 = vmul.f32 %v1760, 0.01
    %v1765 = vmul.f32 %v1761, 0.01
    %v1766 = vsel %vm1762, %v1760, %v1764
    %v1767 = vsel %vm1763, %v1761, %v1765
    %v1768 = vlaneseq
    %v1769 = vshrl.u32 %v1768, 7
    %v1770 = vsub.s32 3, %v1769
    %v1771 = vrot.slane %v88, %v1770
    %v1772 = vadd.f32 %v1530, %v1771
    %v1773 = vadd.f32 %v1536, %v1771
    %v1774 = vsel %vm675, %v1766, -inf
    %v1775 = vsel %vm675, %v1767, -inf
    %v1776 = vmax.f32 %v1774, %v1775
    %v1777 = vrot.slane %v1776, 4
    %v1778 = vmax.f32 %v1776, %v1777
    %v1779 = vrot.slane %v1778, 2
    %v1780 = vmax.f32 %v1778, %v1779
    %v1781 = vrot.slane %v1780, 1
    %v1782 = vmax.f32 %v1780, %v1781
    %v1783 = vsub.f32 %v1766, %v1782
    %v1784 = vsub.f32 %v1767, %v1782
    %v1785 = vmul.f32 %v1783, 1.442695
    %v1786 = vpow.pop %v1785
    %v1787 = vmul.f32 %v1784, 1.442695
    %v1788 = vpow.pop %v1787
    %1790 = vset.pattern.permute.xlu0 0
    %1791 = vperm.xlu0 %1790, %v1786
    %v1792 = vpop.permute.xlu0 %1791
    %1795 = vset.pattern.permute.xlu0 0
    %1796 = vperm.xlu0 %1795, %v1788
    %v1797 = vpop.permute.xlu0 %1796
    %v1799 = vmul.f32 %v1772, %v1792
    %v1800 = vmul.f32 %v1773, %v1797
    %1801 = vmatprep.subr.mxu0 %v1786
    %1802 = vmatpush1.msra.mxu0 %v1799
    %1803 = vmatprep.subr.mxu0 %v1788
    %1804 = vmatpush1.msra.mxu0 %v1800
    %1805 = vmatprep.subr.mxu0 0.0
    %1806 = vmatpush1.msra.mxu0 0.0
    %1807 = vmatprep.subr.mxu0 0.0
    %1808 = vmatpush1.msra.mxu0 0.0
    %1809 = vmatprep.subr.mxu0 0.0
    %1810 = vmatpush1.msra.mxu0 0.0
    %1811 = vmatprep.subr.mxu0 0.0
    %1812 = vmatpush1.msra.mxu0 0.0
    %1813 = vmatprep.subr.mxu0 0.0
    %1814 = vmatpush1.msra.mxu0 0.0
    %1815 = vmatprep.subr.mxu0 0.0
    %1816 = vmatpush1.msra.mxu0 0.0
    %1817 = vmatprep.subr.mxu0 0.0
    %1818 = vmatpush1.msra.mxu0 0.0
    %1819 = vmatprep.subr.mxu0 0.0
    %1820 = vmatpush1.msra.mxu0 0.0
    %1821 = vmatprep.subr.mxu0 0.0
    %1822 = vmatpush1.msra.mxu0 0.0
    %1823 = vmatprep.subr.mxu0 0.0
    %1824 = vmatpush1.msra.mxu0 0.0
    %1825 = vmatprep.subr.mxu0 0.0
    %1826 = vmatpush1.msra.mxu0 0.0
    %1827 = vmatprep.subr.mxu0 0.0
    %1828 = vmatpush1.msra.mxu0 0.0
    %1829 = vmatprep.subr.mxu0 0.0
    %1830 = vmatpush1.msra.mxu0 0.0
    %1831 = vmatprep.subr.mxu0 0.0
    %1832 = vmatpush1.msra.mxu0 0.0
    %1833 = vmatprep.subr.mxu0 0.0
    %1834 = vmatpush1.msra.mxu0 0.0
    %1835 = vmatprep.subr.mxu0 0.0
    %1836 = vmatpush1.msra.mxu0 0.0
    %1837 = vmatprep.subr.mxu0 0.0
    %1838 = vmatpush1.msra.mxu0 0.0
    %1839 = vmatprep.subr.mxu0 0.0
    %1840 = vmatpush1.msra.mxu0 0.0
    %1841 = vmatprep.subr.mxu0 0.0
    %1842 = vmatpush1.msra.mxu0 0.0
    %1843 = vmatprep.subr.mxu0 0.0
    %1844 = vmatpush1.msra.mxu0 0.0
    %1845 = vmatprep.subr.mxu0 0.0
    %1846 = vmatpush1.msra.mxu0 0.0
    %1847 = vmatprep.subr.mxu0 0.0
    %1848 = vmatpush1.msra.mxu0 0.0
    %1849 = vmatprep.subr.mxu0 0.0
    %1850 = vmatpush1.msra.mxu0 0.0
    %1851 = vmatprep.subr.mxu0 0.0
    %1852 = vmatpush1.msra.mxu0 0.0
    %1853 = vmatprep.subr.mxu0 0.0
    %1854 = vmatpush1.msra.mxu0 0.0
    %1855 = vmatprep.subr.mxu0 0.0
    %1856 = vmatpush1.msra.mxu0 0.0
    %1857 = vmatprep.subr.mxu0 0.0
    %1858 = vmatpush1.msra.mxu0 0.0
    %1859 = vmatprep.subr.mxu0 0.0
    %1860 = vmatpush1.msra.mxu0 0.0
    %1861 = vmatprep.subr.mxu0 0.0
    %1862 = vmatpush1.msra.mxu0 0.0
    %1863 = vmatprep.subr.mxu0 0.0
    %1864 = vmatpush1.msra.mxu0 0.0
    %1865 = vmatprep.mubr.f32.mxu0 0.0
    %1866 = vmatmul.mubr.f32.gmra.mrb[0].mxu0 %v736
    %v1867 = vpop.f32.mrb[0].mxu0
    %v1868 = vadd.f32 0.0, %v1867
    %v1869 = vpop.f32.mrb[0].mxu0
    %v1870 = vadd.f32 0.0, %v1869
    %1871 = vmatprep.mubr.f32.mxu0 0.0
    %1872 = vmatmul.mubr.f32.gmra.mrb[0].mxu0 %v739
    %v1873 = vpop.f32.mrb[0].mxu0
    %v1874 = vadd.f32 0.0, %v1873
    %v1875 = vpop.f32.mrb[0].mxu0
    %v1876 = vadd.f32 0.0, %v1875
    %1877 = vdwg.mxu0
    %vm1878 = vcmp.eq.f32.partialorder %v1870, 0.0
    %vm1879 = vcmp.eq.f32.partialorder %v1876, 0.0
    %v1880 = vsel %vm1878, 1.0, %v1870
    %v1881 = vsel %vm1879, 1.0, %v1876
    %1883 = vset.pattern.permute.xlu0 0
    %1884 = vperm.xlu0 %1883, %v1880
    %v1885 = vpop.permute.xlu0 %1884
    %1888 = vset.pattern.permute.xlu0 0
    %1889 = vperm.xlu0 %1888, %v1881
    %v1890 = vpop.permute.xlu0 %1889
    %v1892 = vrcp.pop %v1885
    %v1893 = vmul.f32 %v1868, %v1892
    %v1894 = vrcp.pop %v1890
    %v1895 = vmul.f32 %v1874, %v1894
    %vm1896 = vcmp.gt.f32.partialorder %v1893, 0.0
    %vm1897 = vcmp.gt.f32.partialorder %v1895, 0.0
    %v1898 = vmin.f32 %v1893, 0.0
    %v1899 = vmin.f32 %v1895, 0.0
    %v1900 = vmul.f32 %v1898, 1.442695
    %v1901 = vpow.pop %v1900
    %v1902 = vmul.f32 %v1899, 1.442695
    %v1903 = vpow.pop %v1902
    %v1904 = vsub.f32 %v1901, 1.0
    %v1905 = vsub.f32 %v1903, 1.0
    %v1906 = vsel %vm1896, %v1893, %v1904
    %v1907 = vsel %vm1897, %v1895, %v1905
    %s1908 = scalar_lea.vmem %s12, 768
    %v1909 = vld [vmem:[%s1908] sm:$0xff]
    %v1910 = vld [vmem:[%s1908 + $0x8] sm:$0xff]
    %v1911 = vld [vmem:[%s1908 + $0x10] sm:$0xff]
    %v1912 = vld [vmem:[%s1908 + $0x18] sm:$0xff]
    %v1913 = vld [vmem:[%s1908 + $0x20] sm:$0xff]
    %v1914 = vld [vmem:[%s1908 + $0x28] sm:$0xff]
    %v1915 = vld [vmem:[%s1908 + $0x30] sm:$0xff]
    %v1916 = vld [vmem:[%s1908 + $0x38] sm:$0xff]
    %v1917 = vld [vmem:[%s1908 + $0x40] sm:$0xff]
    %v1918 = vld [vmem:[%s1908 + $0x48] sm:$0xff]
    %v1919 = vld [vmem:[%s1908 + $0x50] sm:$0xff]
    %v1920 = vld [vmem:[%s1908 + $0x58] sm:$0xff]
    %v1921 = vld [vmem:[%s1908 + $0x60] sm:$0xff]
    %v1922 = vld [vmem:[%s1908 + $0x68] sm:$0xff]
    %v1923 = vld [vmem:[%s1908 + $0x70] sm:$0xff]
    %v1924 = vld [vmem:[%s1908 + $0x78] sm:$0xff]
    %v1925 = vld [vmem:[%s1908 + $0x80] sm:$0xff]
    %v1926 = vld [vmem:[%s1908 + $0x88] sm:$0xff]
    %v1927 = vld [vmem:[%s1908 + $0x90] sm:$0xff]
    %v1928 = vld [vmem:[%s1908 + $0x98] sm:$0xff]
    %v1929 = vld [vmem:[%s1908 + $0xa0] sm:$0xff]
    %v1930 = vld [vmem:[%s1908 + $0xa8] sm:$0xff]
    %v1931 = vld [vmem:[%s1908 + $0xb0] sm:$0xff]
    %v1932 = vld [vmem:[%s1908 + $0xb8] sm:$0xff]
    %v1933 = vld [vmem:[%s1908 + $0xc0] sm:$0xff]
    %v1934 = vld [vmem:[%s1908 + $0xc8] sm:$0xff]
    %v1935 = vld [vmem:[%s1908 + $0xd0] sm:$0xff]
    %v1936 = vld [vmem:[%s1908 + $0xd8] sm:$0xff]
    %v1937 = vld [vmem:[%s1908 + $0xe0] sm:$0xff]
    %v1938 = vld [vmem:[%s1908 + $0xe8] sm:$0xff]
    %v1939 = vld [vmem:[%s1908 + $0xf0] sm:$0xff]
    %v1940 = vld [vmem:[%s1908 + $0xf8] sm:$0xff]
    %v1941 = vld [vmem:[%s1908 + $0x100] sm:$0xff]
    %v1942 = vld [vmem:[%s1908 + $0x108] sm:$0xff]
    %v1943 = vld [vmem:[%s1908 + $0x110] sm:$0xff]
    %v1944 = vld [vmem:[%s1908 + $0x118] sm:$0xff]
    %v1945 = vld [vmem:[%s1908 + $0x120] sm:$0xff]
    %v1946 = vld [vmem:[%s1908 + $0x128] sm:$0xff]
    %v1947 = vld [vmem:[%s1908 + $0x130] sm:$0xff]
    %v1948 = vld [vmem:[%s1908 + $0x138] sm:$0xff]
    %v1949 = vld [vmem:[%s1908 + $0x140] sm:$0xff]
    %v1950 = vld [vmem:[%s1908 + $0x148] sm:$0xff]
    %v1951 = vld [vmem:[%s1908 + $0x150] sm:$0xff]
    %v1952 = vld [vmem:[%s1908 + $0x158] sm:$0xff]
    %v1953 = vld [vmem:[%s1908 + $0x160] sm:$0xff]
    %v1954 = vld [vmem:[%s1908 + $0x168] sm:$0xff]
    %v1955 = vld [vmem:[%s1908 + $0x170] sm:$0xff]
    %v1956 = vld [vmem:[%s1908 + $0x178] sm:$0xff]
    %v1957 = vld [vmem:[%s1908 + $0x180] sm:$0xff]
    %v1958 = vld [vmem:[%s1908 + $0x188] sm:$0xff]
    %v1959 = vld [vmem:[%s1908 + $0x190] sm:$0xff]
    %v1960 = vld [vmem:[%s1908 + $0x198] sm:$0xff]
    %v1961 = vld [vmem:[%s1908 + $0x1a0] sm:$0xff]
    %v1962 = vld [vmem:[%s1908 + $0x1a8] sm:$0xff]
    %v1963 = vld [vmem:[%s1908 + $0x1b0] sm:$0xff]
    %v1964 = vld [vmem:[%s1908 + $0x1b8] sm:$0xff]
    %v1965 = vld [vmem:[%s1908 + $0x1c0] sm:$0xff]
    %v1966 = vld [vmem:[%s1908 + $0x1c8] sm:$0xff]
    %v1967 = vld [vmem:[%s1908 + $0x1d0] sm:$0xff]
    %v1968 = vld [vmem:[%s1908 + $0x1d8] sm:$0xff]
    %v1969 = vld [vmem:[%s1908 + $0x1e0] sm:$0xff]
    %v1970 = vld [vmem:[%s1908 + $0x1e8] sm:$0xff]
    %v1971 = vld [vmem:[%s1908 + $0x1f0] sm:$0xff]
    %v1972 = vld [vmem:[%s1908 + $0x1f8] sm:$0xff]
    %v1973 = vld [vmem:[%s1908 + $0x200] sm:$0xff]
    %v1974 = vld [vmem:[%s1908 + $0x208] sm:$0xff]
    %v1975 = vld [vmem:[%s1908 + $0x210] sm:$0xff]
    %v1976 = vld [vmem:[%s1908 + $0x218] sm:$0xff]
    %v1977 = vld [vmem:[%s1908 + $0x220] sm:$0xff]
    %v1978 = vld [vmem:[%s1908 + $0x228] sm:$0xff]
    %v1979 = vld [vmem:[%s1908 + $0x230] sm:$0xff]
    %v1980 = vld [vmem:[%s1908 + $0x238] sm:$0xff]
    %v1981 = vld [vmem:[%s1908 + $0x240] sm:$0xff]
    %v1982 = vld [vmem:[%s1908 + $0x248] sm:$0xff]
    %v1983 = vld [vmem:[%s1908 + $0x250] sm:$0xff]
    %v1984 = vld [vmem:[%s1908 + $0x258] sm:$0xff]
    %v1985 = vld [vmem:[%s1908 + $0x260] sm:$0xff]
    %v1986 = vld [vmem:[%s1908 + $0x268] sm:$0xff]
    %v1987 = vld [vmem:[%s1908 + $0x270] sm:$0xff]
    %v1988 = vld [vmem:[%s1908 + $0x278] sm:$0xff]
    %v1989 = vld [vmem:[%s1908 + $0x280] sm:$0xff]
    %v1990 = vld [vmem:[%s1908 + $0x288] sm:$0xff]
    %v1991 = vld [vmem:[%s1908 + $0x290] sm:$0xff]
    %v1992 = vld [vmem:[%s1908 + $0x298] sm:$0xff]
    %v1993 = vld [vmem:[%s1908 + $0x2a0] sm:$0xff]
    %v1994 = vld [vmem:[%s1908 + $0x2a8] sm:$0xff]
    %v1995 = vld [vmem:[%s1908 + $0x2b0] sm:$0xff]
    %v1996 = vld [vmem:[%s1908 + $0x2b8] sm:$0xff]
    %v1997 = vld [vmem:[%s1908 + $0x2c0] sm:$0xff]
    %v1998 = vld [vmem:[%s1908 + $0x2c8] sm:$0xff]
    %v1999 = vld [vmem:[%s1908 + $0x2d0] sm:$0xff]
    %v2000 = vld [vmem:[%s1908 + $0x2d8] sm:$0xff]
    %v2001 = vld [vmem:[%s1908 + $0x2e0] sm:$0xff]
    %v2002 = vld [vmem:[%s1908 + $0x2e8] sm:$0xff]
    %v2003 = vld [vmem:[%s1908 + $0x2f0] sm:$0xff]
    %v2004 = vld [vmem:[%s1908 + $0x2f8] sm:$0xff]
    %s2005 = scalar_lea.vmem %s19, 6
    %v2006 = vld [vmem:[%s2005] sm:$0x3f]
    %v2008 = vlaneseq
    %v2009 = vshrl.u32 %v2008, 7
    %v2010 = vsub.s32 0, %v2009
    %v2011 = vrot.slane %v2006, %v2010
    %v2012 = vlaneseq
    %v2013 = vshrl.u32 %v2012, 7
    %v2014 = vsub.s32 2, %v2013
    %v2015 = vrot.slane %v2006, %v2014
    %v2016 = vlaneseq
    %v2017 = vshrl.u32 %v2016, 7
    %v2018 = vsub.s32 4, %v2017
    %v2019 = vrot.slane %v2006, %v2018
    %v2023 = vlaneseq
    %v2024 = vshrl.u32 %v2023, 7
    %v2025 = vsub.s32 0, %v2024
    %v2026 = vrot.slane %v2011, %v2025
    %v2027 = vlaneseq
    %v2028 = vshrl.u32 %v2027, 7
    %v2029 = vsub.s32 0, %v2028
    %v2030 = vrot.slane %v2015, %v2029
    %v2031 = vlaneseq
    %v2032 = vshrl.u32 %v2031, 7
    %v2033 = vsub.s32 0, %v2032
    %v2034 = vrot.slane %v2019, %v2033
    %2035 = vmatprep.subr.mxu0 %v1910
    %2036 = vmatpush1.msra.mxu0 %v1909
    %2037 = vmatprep.subr.mxu0 %v1913
    %2038 = vmatpush1.msra.mxu0 %v1912
    %2039 = vmatprep.subr.mxu0 %v1916
    %2040 = vmatpush1.msra.mxu0 %v1915
    %2041 = vmatprep.subr.mxu0 %v1919
    %2042 = vmatpush1.msra.mxu0 %v1918
    %2043 = vmatprep.subr.mxu0 %v1922
    %2044 = vmatpush1.msra.mxu0 %v1921
    %2045 = vmatprep.subr.mxu0 %v1925
    %2046 = vmatpush1.msra.mxu0 %v1924
    %2047 = vmatprep.subr.mxu0 %v1928
    %2048 = vmatpush1.msra.mxu0 %v1927
    %2049 = vmatprep.subr.mxu0 %v1931
    %2050 = vmatpush1.msra.mxu0 %v1930
    %2051 = vmatprep.subr.mxu0 %v1934
    %2052 = vmatpush1.msra.mxu0 %v1933
    %2053 = vmatprep.subr.mxu0 %v1937
    %2054 = vmatpush1.msra.mxu0 %v1936
    %2055 = vmatprep.subr.mxu0 %v1940
    %2056 = vmatpush1.msra.mxu0 %v1939
    %2057 = vmatprep.subr.mxu0 %v1943
    %2058 = vmatpush1.msra.mxu0 %v1942
    %2059 = vmatprep.subr.mxu0 %v1946
    %2060 = vmatpush1.msra.mxu0 %v1945
    %2061 = vmatprep.subr.mxu0 %v1949
    %2062 = vmatpush1.msra.mxu0 %v1948
    %2063 = vmatprep.subr.mxu0 %v1952
    %2064 = vmatpush1.msra.mxu0 %v1951
    %2065 = vmatprep.subr.mxu0 %v1955
    %2066 = vmatpush1.msra.mxu0 %v1954
    %2067 = vmatprep.subr.mxu0 0.0
    %2068 = vmatpush1.msra.mxu0 0.0
    %2069 = vmatprep.subr.mxu0 0.0
    %2070 = vmatpush1.msra.mxu0 0.0
    %2071 = vmatprep.subr.mxu0 0.0
    %2072 = vmatpush1.msra.mxu0 0.0
    %2073 = vmatprep.subr.mxu0 0.0
    %2074 = vmatpush1.msra.mxu0 0.0
    %2075 = vmatprep.subr.mxu0 0.0
    %2076 = vmatpush1.msra.mxu0 0.0
    %2077 = vmatprep.subr.mxu0 0.0
    %2078 = vmatpush1.msra.mxu0 0.0
    %2079 = vmatprep.subr.mxu0 0.0
    %2080 = vmatpush1.msra.mxu0 0.0
    %2081 = vmatprep.subr.mxu0 0.0
    %2082 = vmatpush1.msra.mxu0 0.0
    %2083 = vmatprep.subr.mxu0 0.0
    %2084 = vmatpush1.msra.mxu0 0.0
    %2085 = vmatprep.subr.mxu0 0.0
    %2086 = vmatpush1.msra.mxu0 0.0
    %2087 = vmatprep.subr.mxu0 0.0
    %2088 = vmatpush1.msra.mxu0 0.0
    %2089 = vmatprep.subr.mxu0 0.0
    %2090 = vmatpush1.msra.mxu0 0.0
    %2091 = vmatprep.subr.mxu0 0.0
    %2092 = vmatpush1.msra.mxu0 0.0
    %2093 = vmatprep.subr.mxu0 0.0
    %2094 = vmatpush1.msra.mxu0 0.0
    %2095 = vmatprep.subr.mxu0 0.0
    %2096 = vmatpush1.msra.mxu0 0.0
    %2097 = vmatprep.subr.mxu0 0.0
    %2098 = vmatpush1.msra.mxu0 0.0
    %2099 = vmatprep.mubr.f32.mxu0 0.0
    %2100 = vmatmul.mubr.f32.gmra.mrb[0].mxu0 %v1906
    %v2101 = vpop.f32.mrb[0].mxu0
    %v2102 = vadd.f32 %v2026, %v2101
    %v2103 = vpop.f32.mrb[0].mxu0
    %v2104 = vadd.f32 %v2030, %v2103
    %2105 = vmatprep.mubr.f32.mxu0 0.0
    %2106 = vmatmul.mubr.f32.gmra.mrb[0].mxu0 %v1907
    %v2107 = vpop.f32.mrb[0].mxu0
    %v2108 = vadd.f32 %v2026, %v2107
    %v2109 = vpop.f32.mrb[0].mxu0
    %v2110 = vadd.f32 %v2030, %v2109
    %2111 = vdwg.mxu0
    %2112 = vmatprep.subr.mxu0 0.0
    %2113 = vmatpush1.msra.mxu0 %v1911
    %2114 = vmatprep.subr.mxu0 0.0
    %2115 = vmatpush1.msra.mxu0 %v1914
    %2116 = vmatprep.subr.mxu0 0.0
    %2117 = vmatpush1.msra.mxu0 %v1917
    %2118 = vmatprep.subr.mxu0 0.0
    %2119 = vmatpush1.msra.mxu0 %v1920
    %2120 = vmatprep.subr.mxu0 0.0
    %2121 = vmatpush1.msra.mxu0 %v1923
    %2122 = vmatprep.subr.mxu0 0.0
    %2123 = vmatpush1.msra.mxu0 %v1926
    %2124 = vmatprep.subr.mxu0 0.0
    %2125 = vmatpush1.msra.mxu0 %v1929
    %2126 = vmatprep.subr.mxu0 0.0
    %2127 = vmatpush1.msra.mxu0 %v1932
    %2128 = vmatprep.subr.mxu0 0.0
    %2129 = vmatpush1.msra.mxu0 %v1935
    %2130 = vmatprep.subr.mxu0 0.0
    %2131 = vmatpush1.msra.mxu0 %v1938
    %2132 = vmatprep.subr.mxu0 0.0
    %2133 = vmatpush1.msra.mxu0 %v1941
    %2134 = vmatprep.subr.mxu0 0.0
    %2135 = vmatpush1.msra.mxu0 %v1944
    %2136 = vmatprep.subr.mxu0 0.0
    %2137 = vmatpush1.msra.mxu0 %v1947
    %2138 = vmatprep.subr.mxu0 0.0
    %2139 = vmatpush1.msra.mxu0 %v1950
    %2140 = vmatprep.subr.mxu0 0.0
    %2141 = vmatpush1.msra.mxu0 %v1953
    %2142 = vmatprep.subr.mxu0 0.0
    %2143 = vmatpush1.msra.mxu0 %v1956
    %2144 = vmatprep.subr.mxu0 0.0
    %2145 = vmatpush1.msra.mxu0 0.0
    %2146 = vmatprep.subr.mxu0 0.0
    %2147 = vmatpush1.msra.mxu0 0.0
    %2148 = vmatprep.subr.mxu0 0.0
    %2149 = vmatpush1.msra.mxu0 0.0
    %2150 = vmatprep.subr.mxu0 0.0
    %2151 = vmatpush1.msra.mxu0 0.0
    %2152 = vmatprep.subr.mxu0 0.0
    %2153 = vmatpush1.msra.mxu0 0.0
    %2154 = vmatprep.subr.mxu0 0.0
    %2155 = vmatpush1.msra.mxu0 0.0
    %2156 = vmatprep.subr.mxu0 0.0
    %2157 = vmatpush1.msra.mxu0 0.0
    %2158 = vmatprep.subr.mxu0 0.0
    %2159 = vmatpush1.msra.mxu0 0.0
    %2160 = vmatprep.subr.mxu0 0.0
    %2161 = vmatpush1.msra.mxu0 0.0
    %2162 = vmatprep.subr.mxu0 0.0
    %2163 = vmatpush1.msra.mxu0 0.0
    %2164 = vmatprep.subr.mxu0 0.0
    %2165 = vmatpush1.msra.mxu0 0.0
    %2166 = vmatprep.subr.mxu0 0.0
    %2167 = vmatpush1.msra.mxu0 0.0
    %2168 = vmatprep.subr.mxu0 0.0
    %2169 = vmatpush1.msra.mxu0 0.0
    %2170 = vmatprep.subr.mxu0 0.0
    %2171 = vmatpush1.msra.mxu0 0.0
    %2172 = vmatprep.subr.mxu0 0.0
    %2173 = vmatpush1.msra.mxu0 0.0
    %2174 = vmatprep.subr.mxu0 0.0
    %2175 = vmatpush1.msra.mxu0 0.0
    %2176 = vmatprep.mubr.f32.mxu0 0.0
    %2177 = vmatmul.mubr.f32.gmra.mrb[0].mxu0 %v1906
    %v2178 = vpop.f32.mrb[0].mxu0
    %v2179 = vadd.f32 %v2034, %v2178
    %v2180 = vpop.f32.mrb[0].mxu0
    %2181 = vmatprep.mubr.f32.mxu0 0.0
    %2182 = vmatmul.mubr.f32.gmra.mrb[0].mxu0 %v1907
    %v2183 = vpop.f32.mrb[0].mxu0
    %v2184 = vadd.f32 %v2034, %v2183
    %v2185 = vpop.f32.mrb[0].mxu0
    %2186 = vdwg.mxu0
    %v2187 = vlaneseq
    %v2188 = vshrl.u32 %v2187, 7
    %v2189 = vsub.s32 1, %v2188
    %v2190 = vrot.slane %v2006, %v2189
    %v2191 = vlaneseq
    %v2192 = vshrl.u32 %v2191, 7
    %v2193 = vsub.s32 3, %v2192
    %v2194 = vrot.slane %v2006, %v2193
    %v2195 = vlaneseq
    %v2196 = vshrl.u32 %v2195, 7
    %v2197 = vsub.s32 5, %v2196
    %v2198 = vrot.slane %v2006, %v2197
    %v2202 = vlaneseq
    %v2203 = vshrl.u32 %v2202, 7
    %v2204 = vsub.s32 1, %v2203
    %v2205 = vrot.slane %v2190, %v2204
    %v2206 = vlaneseq
    %v2207 = vshrl.u32 %v2206, 7
    %v2208 = vsub.s32 1, %v2207
    %v2209 = vrot.slane %v2194, %v2208
    %v2210 = vlaneseq
    %v2211 = vshrl.u32 %v2210, 7
    %v2212 = vsub.s32 1, %v2211
    %v2213 = vrot.slane %v2198, %v2212
    %2214 = vmatprep.subr.mxu0 %v1958
    %2215 = vmatpush1.msra.mxu0 %v1957
    %2216 = vmatprep.subr.mxu0 %v1961
    %2217 = vmatpush1.msra.mxu0 %v1960
    %2218 = vmatprep.subr.mxu0 %v1964
    %2219 = vmatpush1.msra.mxu0 %v1963
    %2220 = vmatprep.subr.mxu0 %v1967
    %2221 = vmatpush1.msra.mxu0 %v1966
    %2222 = vmatprep.subr.mxu0 %v1970
    %2223 = vmatpush1.msra.mxu0 %v1969
    %2224 = vmatprep.subr.mxu0 %v1973
    %2225 = vmatpush1.msra.mxu0 %v1972
    %2226 = vmatprep.subr.mxu0 %v1976
    %2227 = vmatpush1.msra.mxu0 %v1975
    %2228 = vmatprep.subr.mxu0 %v1979
    %2229 = vmatpush1.msra.mxu0 %v1978
    %2230 = vmatprep.subr.mxu0 %v1982
    %2231 = vmatpush1.msra.mxu0 %v1981
    %2232 = vmatprep.subr.mxu0 %v1985
    %2233 = vmatpush1.msra.mxu0 %v1984
    %2234 = vmatprep.subr.mxu0 %v1988
    %2235 = vmatpush1.msra.mxu0 %v1987
    %2236 = vmatprep.subr.mxu0 %v1991
    %2237 = vmatpush1.msra.mxu0 %v1990
    %2238 = vmatprep.subr.mxu0 %v1994
    %2239 = vmatpush1.msra.mxu0 %v1993
    %2240 = vmatprep.subr.mxu0 %v1997
    %2241 = vmatpush1.msra.mxu0 %v1996
    %2242 = vmatprep.subr.mxu0 %v2000
    %2243 = vmatpush1.msra.mxu0 %v1999
    %2244 = vmatprep.subr.mxu0 %v2003
    %2245 = vmatpush1.msra.mxu0 %v2002
    %2246 = vmatprep.subr.mxu0 0.0
    %2247 = vmatpush1.msra.mxu0 0.0
    %2248 = vmatprep.subr.mxu0 0.0
    %2249 = vmatpush1.msra.mxu0 0.0
    %2250 = vmatprep.subr.mxu0 0.0
    %2251 = vmatpush1.msra.mxu0 0.0
    %2252 = vmatprep.subr.mxu0 0.0
    %2253 = vmatpush1.msra.mxu0 0.0
    %2254 = vmatprep.subr.mxu0 0.0
    %2255 = vmatpush1.msra.mxu0 0.0
    %2256 = vmatprep.subr.mxu0 0.0
    %2257 = vmatpush1.msra.mxu0 0.0
    %2258 = vmatprep.subr.mxu0 0.0
    %2259 = vmatpush1.msra.mxu0 0.0
    %2260 = vmatprep.subr.mxu0 0.0
    %2261 = vmatpush1.msra.mxu0 0.0
    %2262 = vmatprep.subr.mxu0 0.0
    %2263 = vmatpush1.msra.mxu0 0.0
    %2264 = vmatprep.subr.mxu0 0.0
    %2265 = vmatpush1.msra.mxu0 0.0
    %2266 = vmatprep.subr.mxu0 0.0
    %2267 = vmatpush1.msra.mxu0 0.0
    %2268 = vmatprep.subr.mxu0 0.0
    %2269 = vmatpush1.msra.mxu0 0.0
    %2270 = vmatprep.subr.mxu0 0.0
    %2271 = vmatpush1.msra.mxu0 0.0
    %2272 = vmatprep.subr.mxu0 0.0
    %2273 = vmatpush1.msra.mxu0 0.0
    %2274 = vmatprep.subr.mxu0 0.0
    %2275 = vmatpush1.msra.mxu0 0.0
    %2276 = vmatprep.subr.mxu0 0.0
    %2277 = vmatpush1.msra.mxu0 0.0
    %2278 = vmatprep.mubr.f32.mxu0 0.0
    %2279 = vmatmul.mubr.f32.gmra.mrb[0].mxu0 %v1346
    %v2280 = vpop.f32.mrb[0].mxu0
    %v2281 = vadd.f32 %v2205, %v2280
    %v2282 = vpop.f32.mrb[0].mxu0
    %v2283 = vadd.f32 %v2209, %v2282
    %2284 = vmatprep.mubr.f32.mxu0 0.0
    %2285 = vmatmul.mubr.f32.gmra.mrb[0].mxu0 %v1347
    %v2286 = vpop.f32.mrb[0].mxu0
    %v2287 = vadd.f32 %v2205, %v2286
    %v2288 = vpop.f32.mrb[0].mxu0
    %v2289 = vadd.f32 %v2209, %v2288
    %2290 = vdwg.mxu0
    %2291 = vmatprep.subr.mxu0 0.0
    %2292 = vmatpush1.msra.mxu0 %v1959
    %2293 = vmatprep.subr.mxu0 0.0
    %2294 = vmatpush1.msra.mxu0 %v1962
    %2295 = vmatprep.subr.mxu0 0.0
    %2296 = vmatpush1.msra.mxu0 %v1965
    %2297 = vmatprep.subr.mxu0 0.0
    %2298 = vmatpush1.msra.mxu0 %v1968
    %2299 = vmatprep.subr.mxu0 0.0
    %2300 = vmatpush1.msra.mxu0 %v1971
    %2301 = vmatprep.subr.mxu0 0.0
    %2302 = vmatpush1.msra.mxu0 %v1974
    %2303 = vmatprep.subr.mxu0 0.0
    %2304 = vmatpush1.msra.mxu0 %v1977
    %2305 = vmatprep.subr.mxu0 0.0
    %2306 = vmatpush1.msra.mxu0 %v1980
    %2307 = vmatprep.subr.mxu0 0.0
    %2308 = vmatpush1.msra.mxu0 %v1983
    %2309 = vmatprep.subr.mxu0 0.0
    %2310 = vmatpush1.msra.mxu0 %v1986
    %2311 = vmatprep.subr.mxu0 0.0
    %2312 = vmatpush1.msra.mxu0 %v1989
    %2313 = vmatprep.subr.mxu0 0.0
    %2314 = vmatpush1.msra.mxu0 %v1992
    %2315 = vmatprep.subr.mxu0 0.0
    %2316 = vmatpush1.msra.mxu0 %v1995
    %2317 = vmatprep.subr.mxu0 0.0
    %2318 = vmatpush1.msra.mxu0 %v1998
    %2319 = vmatprep.subr.mxu0 0.0
    %2320 = vmatpush1.msra.mxu0 %v2001
    %2321 = vmatprep.subr.mxu0 0.0
    %2322 = vmatpush1.msra.mxu0 %v2004
    %2323 = vmatprep.subr.mxu0 0.0
    %2324 = vmatpush1.msra.mxu0 0.0
    %2325 = vmatprep.subr.mxu0 0.0
    %2326 = vmatpush1.msra.mxu0 0.0
    %2327 = vmatprep.subr.mxu0 0.0
    %2328 = vmatpush1.msra.mxu0 0.0
    %2329 = vmatprep.subr.mxu0 0.0
    %2330 = vmatpush1.msra.mxu0 0.0
    %2331 = vmatprep.subr.mxu0 0.0
    %2332 = vmatpush1.msra.mxu0 0.0
    %2333 = vmatprep.subr.mxu0 0.0
    %2334 = vmatpush1.msra.mxu0 0.0
    %2335 = vmatprep.subr.mxu0 0.0
    %2336 = vmatpush1.msra.mxu0 0.0
    %2337 = vmatprep.subr.mxu0 0.0
    %2338 = vmatpush1.msra.mxu0 0.0
    %2339 = vmatprep.subr.mxu0 0.0
    %2340 = vmatpush1.msra.mxu0 0.0
    %2341 = vmatprep.subr.mxu0 0.0
    %2342 = vmatpush1.msra.mxu0 0.0
    %2343 = vmatprep.subr.mxu0 0.0
    %2344 = vmatpush1.msra.mxu0 0.0
    %2345 = vmatprep.subr.mxu0 0.0
    %2346 = vmatpush1.msra.mxu0 0.0
    %2347 = vmatprep.subr.mxu0 0.0
    %2348 = vmatpush1.msra.mxu0 0.0
    %2349 = vmatprep.subr.mxu0 0.0
    %2350 = vmatpush1.msra.mxu0 0.0
    %2351 = vmatprep.subr.mxu0 0.0
    %2352 = vmatpush1.msra.mxu0 0.0
    %2353 = vmatprep.subr.mxu0 0.0
    %2354 = vmatpush1.msra.mxu0 0.0
    %2355 = vmatprep.mubr.f32.mxu0 0.0
    %2356 = vmatmul.mubr.f32.gmra.mrb[0].mxu0 %v1346
    %v2357 = vpop.f32.mrb[0].mxu0
    %v2358 = vadd.f32 %v2213, %v2357
    %v2359 = vpop.f32.mrb[0].mxu0
    %2360 = vmatprep.mubr.f32.mxu0 0.0
    %2361 = vmatmul.mubr.f32.gmra.mrb[0].mxu0 %v1347
    %v2362 = vpop.f32.mrb[0].mxu0
    %v2363 = vadd.f32 %v2213, %v2362
    %v2364 = vpop.f32.mrb[0].mxu0
    %2365 = vdwg.mxu0
    %v2366 = vadd.f32 %v2102, %v2281
    %v2367 = vadd.f32 %v2108, %v2287
    %v2368 = vxor.u32 %v2366, 2147483648
    %v2369 = vxor.u32 %v2367, 2147483648
    %v2370 = vmul.f32 %v2368, 1.442695
    %v2371 = vpow.pop %v2370
    %v2372 = vmul.f32 %v2369, 1.442695
    %v2373 = vpow.pop %v2372
    %v2374 = vadd.f32 %v2371, 1.0
    %v2375 = vadd.f32 %v2373, 1.0
    %v2376 = vrcp.pop %v2374
    %v2377 = vmul.f32 1.0, %v2376
    %v2378 = vrcp.pop %v2375
    %v2379 = vmul.f32 1.0, %v2378
    %v2380 = vadd.f32 %v2104, %v2283
    %v2381 = vadd.f32 %v2110, %v2289
    %v2382 = vxor.u32 %v2380, 2147483648
    %v2383 = vxor.u32 %v2381, 2147483648
    %v2384 = vmul.f32 %v2382, 1.442695
    %v2385 = vpow.pop %v2384
    %v2386 = vmul.f32 %v2383, 1.442695
    %v2387 = vpow.pop %v2386
    %v2388 = vadd.f32 %v2385, 1.0
    %v2389 = vadd.f32 %v2387, 1.0
    %v2390 = vrcp.pop %v2388
    %v2391 = vmul.f32 1.0, %v2390
    %v2392 = vrcp.pop %v2389
    %v2393 = vmul.f32 1.0, %v2392
    %v2394 = vmul.f32 %v2377, %v2358
    %v2395 = vmul.f32 %v2379, %v2363
    %v2396 = vadd.f32 %v2179, %v2394
    %v2397 = vadd.f32 %v2184, %v2395
    %v2398 = vtanh.pop %v2396
    %v2399 = vtanh.pop %v2397
    %v2400 = vsub.f32 1.0, %v2391
    %v2401 = vsub.f32 1.0, %v2393
    %v2402 = vmul.f32 %v2400, %v2398
    %v2403 = vmul.f32 %v2401, %v2399
    %v2404 = vmul.f32 %v2391, %v1346
    %v2405 = vmul.f32 %v2393, %v1347
    %v2406 = vadd.f32 %v2402, %v2404
    %v2407 = vadd.f32 %v2403, %v2405
    %v2408 = vmax.f32 %v2406, 0.0
    %v2409 = vmax.f32 %v2407, 0.0
    %2410 = vxpose.xlu0.b32.start [1/16] %v86, 128
    %2411 = vxpose.xlu0.b32.cont [2/16] %v87, 128
    %2412 = vxpose.xlu0.b32.cont [3/16] 0.0, 128
    %2413 = vxpose.xlu0.b32.cont [4/16] 0.0, 128
    %2414 = vxpose.xlu0.b32.cont [5/16] 0.0, 128
    %2415 = vxpose.xlu0.b32.cont [6/16] 0.0, 128
    %2416 = vxpose.xlu0.b32.cont [7/16] 0.0, 128
    %2417 = vxpose.xlu0.b32.cont [8/16] 0.0, 128
    %2418 = vxpose.xlu0.b32.cont [9/16] 0.0, 128
    %2419 = vxpose.xlu0.b32.cont [10/16] 0.0, 128
    %2420 = vxpose.xlu0.b32.cont [11/16] 0.0, 128
    %2421 = vxpose.xlu0.b32.cont [12/16] 0.0, 128
    %2422 = vxpose.xlu0.b32.cont [13/16] 0.0, 128
    %2423 = vxpose.xlu0.b32.cont [14/16] 0.0, 128
    %2424 = vxpose.xlu0.b32.cont [15/16] 0.0, 128
    %2425 = vxpose.xlu0.b32.end [16/16] 0.0, 128
    %v2426 = vpop.trf.xlu0
    %v2427 = vpop.trf.xlu0
    %v2428 = vpop.trf.xlu0
    %v2429 = vpop.trf.xlu0
    %v2430 = vpop.trf.xlu0
    %v2431 = vpop.trf.xlu0
    %v2432 = vpop.trf.xlu0
    %v2433 = vpop.trf.xlu0
    %v2434 = vpop.trf.xlu0
    %v2435 = vpop.trf.xlu0
    %v2436 = vpop.trf.xlu0
    %v2437 = vpop.trf.xlu0
    %v2438 = vpop.trf.xlu0
    %v2439 = vpop.trf.xlu0
    %v2440 = vpop.trf.xlu0
    %v2441 = vpop.trf.xlu0
    %v2443 = vsel %vm289, %v2426, 0
    %v2446 = vsel %vm296, %v2409, 0
    %2448 = vmatprep.subr.mxu0 0.0
    %2449 = vmatpush1.msra.mxu0 %v2408
    %2450 = vmatprep.subr.mxu0 0.0
    %2451 = vmatpush1.msra.mxu0 %v2446
    %2452 = vmatprep.subr.mxu0 0.0
    %2453 = vmatpush1.msra.mxu0 0.0
    %2454 = vmatprep.subr.mxu0 0.0
    %2455 = vmatpush1.msra.mxu0 0.0
    %2456 = vmatprep.subr.mxu0 0.0
    %2457 = vmatpush1.msra.mxu0 0.0
    %2458 = vmatprep.subr.mxu0 0.0
    %2459 = vmatpush1.msra.mxu0 0.0
    %2460 = vmatprep.subr.mxu0 0.0
    %2461 = vmatpush1.msra.mxu0 0.0
    %2462 = vmatprep.subr.mxu0 0.0
    %2463 = vmatpush1.msra.mxu0 0.0
    %2464 = vmatprep.subr.mxu0 0.0
    %2465 = vmatpush1.msra.mxu0 0.0
    %2466 = vmatprep.subr.mxu0 0.0
    %2467 = vmatpush1.msra.mxu0 0.0
    %2468 = vmatprep.subr.mxu0 0.0
    %2469 = vmatpush1.msra.mxu0 0.0
    %2470 = vmatprep.subr.mxu0 0.0
    %2471 = vmatpush1.msra.mxu0 0.0
    %2472 = vmatprep.subr.mxu0 0.0
    %2473 = vmatpush1.msra.mxu0 0.0
    %2474 = vmatprep.subr.mxu0 0.0
    %2475 = vmatpush1.msra.mxu0 0.0
    %2476 = vmatprep.subr.mxu0 0.0
    %2477 = vmatpush1.msra.mxu0 0.0
    %2478 = vmatprep.subr.mxu0 0.0
    %2479 = vmatpush1.msra.mxu0 0.0
    %2480 = vmatprep.subr.mxu0 0.0
    %2481 = vmatpush1.msra.mxu0 0.0
    %2482 = vmatprep.subr.mxu0 0.0
    %2483 = vmatpush1.msra.mxu0 0.0
    %2484 = vmatprep.subr.mxu0 0.0
    %2485 = vmatpush1.msra.mxu0 0.0
    %2486 = vmatprep.subr.mxu0 0.0
    %2487 = vmatpush1.msra.mxu0 0.0
    %2488 = vmatprep.subr.mxu0 0.0
    %2489 = vmatpush1.msra.mxu0 0.0
    %2490 = vmatprep.subr.mxu0 0.0
    %2491 = vmatpush1.msra.mxu0 0.0
    %2492 = vmatprep.subr.mxu0 0.0
    %2493 = vmatpush1.msra.mxu0 0.0
    %2494 = vmatprep.subr.mxu0 0.0
    %2495 = vmatpush1.msra.mxu0 0.0
    %2496 = vmatprep.subr.mxu0 0.0
    %2497 = vmatpush1.msra.mxu0 0.0
    %2498 = vmatprep.subr.mxu0 0.0
    %2499 = vmatpush1.msra.mxu0 0.0
    %2500 = vmatprep.subr.mxu0 0.0
    %2501 = vmatpush1.msra.mxu0 0.0
    %2502 = vmatprep.subr.mxu0 0.0
    %2503 = vmatpush1.msra.mxu0 0.0
    %2504 = vmatprep.subr.mxu0 0.0
    %2505 = vmatpush1.msra.mxu0 0.0
    %2506 = vmatprep.subr.mxu0 0.0
    %2507 = vmatpush1.msra.mxu0 0.0
    %2508 = vmatprep.subr.mxu0 0.0
    %2509 = vmatpush1.msra.mxu0 0.0
    %2510 = vmatprep.subr.mxu0 0.0
    %2511 = vmatpush1.msra.mxu0 0.0
    %2512 = vmatprep.mubr.f32.mxu0 0.0
    %2513 = vmatmul.mubr.f32.gmra.mrb[0].mxu0 %v2443
    %v2514 = vpop.f32.mrb[0].mxu0
    %v2515 = vadd.f32 0.0, %v2514
    %v2516 = vpop.f32.mrb[0].mxu0
    %2517 = vdwg.mxu0
    %v2518 = vmax.f32 %v2515, 0.0
    %v2519 = vld [vmem:[%s11] sm:$0xff]
    %v2520 = vld [vmem:[%s11 + $0x8] sm:$0xff]
    %v2521 = vld [vmem:[%s11 + $0x10] sm:$0xff]
    %v2522 = vld [vmem:[%s11 + $0x18] sm:$0xff]
    %v2523 = vld [vmem:[%s11 + $0x20] sm:$0xff]
    %v2524 = vld [vmem:[%s11 + $0x28] sm:$0xff]
    %v2525 = vld [vmem:[%s11 + $0x30] sm:$0xff]
    %v2526 = vld [vmem:[%s11 + $0x38] sm:$0xff]
    %v2527 = vld [vmem:[%s11 + $0x40] sm:$0xff]
    %v2528 = vld [vmem:[%s11 + $0x48] sm:$0xff]
    %v2529 = vld [vmem:[%s11 + $0x50] sm:$0xff]
    %v2530 = vld [vmem:[%s11 + $0x58] sm:$0xff]
    %v2531 = vld [vmem:[%s11 + $0x60] sm:$0xff]
    %v2532 = vld [vmem:[%s11 + $0x68] sm:$0xff]
    %v2533 = vld [vmem:[%s11 + $0x70] sm:$0xff]
    %v2534 = vld [vmem:[%s11 + $0x78] sm:$0xff]
    %v2535 = vld [vmem:[%s11 + $0x80] sm:$0xff]
    %v2536 = vld [vmem:[%s11 + $0x88] sm:$0xff]
    %v2537 = vld [vmem:[%s11 + $0x90] sm:$0xff]
    %v2538 = vld [vmem:[%s11 + $0x98] sm:$0xff]
    %v2539 = vld [vmem:[%s11 + $0xa0] sm:$0xff]
    %v2540 = vld [vmem:[%s11 + $0xa8] sm:$0xff]
    %v2541 = vld [vmem:[%s11 + $0xb0] sm:$0xff]
    %v2542 = vld [vmem:[%s11 + $0xb8] sm:$0xff]
    %v2543 = vld [vmem:[%s11 + $0xc0] sm:$0xff]
    %v2544 = vld [vmem:[%s11 + $0xc8] sm:$0xff]
    %v2545 = vld [vmem:[%s11 + $0xd0] sm:$0xff]
    %v2546 = vld [vmem:[%s11 + $0xd8] sm:$0xff]
    %v2547 = vld [vmem:[%s11 + $0xe0] sm:$0xff]
    %v2548 = vld [vmem:[%s11 + $0xe8] sm:$0xff]
    %v2549 = vld [vmem:[%s11 + $0xf0] sm:$0xff]
    %v2550 = vld [vmem:[%s11 + $0xf8] sm:$0xff]
    %2551 = vmatprep.subr.mxu0 %v2520
    %2552 = vmatpush1.msra.mxu0 %v2519
    %2553 = vmatprep.subr.mxu0 %v2522
    %2554 = vmatpush1.msra.mxu0 %v2521
    %2555 = vmatprep.subr.mxu0 %v2524
    %2556 = vmatpush1.msra.mxu0 %v2523
    %2557 = vmatprep.subr.mxu0 %v2526
    %2558 = vmatpush1.msra.mxu0 %v2525
    %2559 = vmatprep.subr.mxu0 %v2528
    %2560 = vmatpush1.msra.mxu0 %v2527
    %2561 = vmatprep.subr.mxu0 %v2530
    %2562 = vmatpush1.msra.mxu0 %v2529
    %2563 = vmatprep.subr.mxu0 %v2532
    %2564 = vmatpush1.msra.mxu0 %v2531
    %2565 = vmatprep.subr.mxu0 %v2534
    %2566 = vmatpush1.msra.mxu0 %v2533
    %2567 = vmatprep.subr.mxu0 %v2536
    %2568 = vmatpush1.msra.mxu0 %v2535
    %2569 = vmatprep.subr.mxu0 %v2538
    %2570 = vmatpush1.msra.mxu0 %v2537
    %2571 = vmatprep.subr.mxu0 %v2540
    %2572 = vmatpush1.msra.mxu0 %v2539
    %2573 = vmatprep.subr.mxu0 %v2542
    %2574 = vmatpush1.msra.mxu0 %v2541
    %2575 = vmatprep.subr.mxu0 %v2544
    %2576 = vmatpush1.msra.mxu0 %v2543
    %2577 = vmatprep.subr.mxu0 %v2546
    %2578 = vmatpush1.msra.mxu0 %v2545
    %2579 = vmatprep.subr.mxu0 %v2548
    %2580 = vmatpush1.msra.mxu0 %v2547
    %2581 = vmatprep.subr.mxu0 %v2550
    %2582 = vmatpush1.msra.mxu0 %v2549
    %2583 = vmatprep.subr.mxu0 0.0
    %2584 = vmatpush1.msra.mxu0 0.0
    %2585 = vmatprep.subr.mxu0 0.0
    %2586 = vmatpush1.msra.mxu0 0.0
    %2587 = vmatprep.subr.mxu0 0.0
    %2588 = vmatpush1.msra.mxu0 0.0
    %2589 = vmatprep.subr.mxu0 0.0
    %2590 = vmatpush1.msra.mxu0 0.0
    %2591 = vmatprep.subr.mxu0 0.0
    %2592 = vmatpush1.msra.mxu0 0.0
    %2593 = vmatprep.subr.mxu0 0.0
    %2594 = vmatpush1.msra.mxu0 0.0
    %2595 = vmatprep.subr.mxu0 0.0
    %2596 = vmatpush1.msra.mxu0 0.0
    %2597 = vmatprep.subr.mxu0 0.0
    %2598 = vmatpush1.msra.mxu0 0.0
    %2599 = vmatprep.subr.mxu0 0.0
    %2600 = vmatpush1.msra.mxu0 0.0
    %2601 = vmatprep.subr.mxu0 0.0
    %2602 = vmatpush1.msra.mxu0 0.0
    %2603 = vmatprep.subr.mxu0 0.0
    %2604 = vmatpush1.msra.mxu0 0.0
    %2605 = vmatprep.subr.mxu0 0.0
    %2606 = vmatpush1.msra.mxu0 0.0
    %2607 = vmatprep.subr.mxu0 0.0
    %2608 = vmatpush1.msra.mxu0 0.0
    %2609 = vmatprep.subr.mxu0 0.0
    %2610 = vmatpush1.msra.mxu0 0.0
    %2611 = vmatprep.subr.mxu0 0.0
    %2612 = vmatpush1.msra.mxu0 0.0
    %2613 = vmatprep.subr.mxu0 0.0
    %2614 = vmatpush1.msra.mxu0 0.0
    %2615 = vmatprep.mubr.f32.mxu0 0.0
    %2616 = vmatmul.mubr.f32.gmra.mrb[0].mxu0 %v2408
    %v2617 = vpop.f32.mrb[0].mxu0
    %v2618 = vadd.f32 0.0, %v2617
    %v2619 = vpop.f32.mrb[0].mxu0
    %v2620 = vadd.f32 0.0, %v2619
    %2621 = vmatprep.mubr.f32.mxu0 0.0
    %2622 = vmatmul.mubr.f32.gmra.mrb[0].mxu0 %v2409
    %v2623 = vpop.f32.mrb[0].mxu0
    %v2624 = vadd.f32 0.0, %v2623
    %v2625 = vpop.f32.mrb[0].mxu0
    %v2626 = vadd.f32 0.0, %v2625
    %2627 = vdwg.mxu0
    %2628 = vrot.lane.b32.xlu0 %v90, 126
    %v2629 = vpop.permute.xlu0 %2628
    %2630 = vrot.lane.b32.xlu0 %v91, 126
    %v2631 = vpop.permute.xlu0 %2630
    %2632 = vrot.lane.b32.xlu0 %v92, 126
    %v2633 = vpop.permute.xlu0 %2632
    %2634 = vrot.lane.b32.xlu0 %v93, 126
    %v2635 = vpop.permute.xlu0 %2634
    %2636 = vrot.lane.b32.xlu0 %v94, 126
    %v2637 = vpop.permute.xlu0 %2636
    %2638 = vrot.lane.b32.xlu0 %v95, 126
    %v2639 = vpop.permute.xlu0 %2638
    %2640 = vrot.lane.b32.xlu0 %v96, 126
    %v2641 = vpop.permute.xlu0 %2640
    %2642 = vrot.lane.b32.xlu0 %v97, 126
    %v2643 = vpop.permute.xlu0 %2642
    %2644 = vrot.lane.b32.xlu0 %v98, 126
    %v2645 = vpop.permute.xlu0 %2644
    %2646 = vrot.lane.b32.xlu0 %v99, 126
    %v2647 = vpop.permute.xlu0 %2646
    %2648 = vrot.lane.b32.xlu0 %v100, 126
    %v2649 = vpop.permute.xlu0 %2648
    %2650 = vrot.lane.b32.xlu0 %v101, 126
    %v2651 = vpop.permute.xlu0 %2650
    %2652 = vrot.lane.b32.xlu0 %v102, 126
    %v2653 = vpop.permute.xlu0 %2652
    %2654 = vrot.lane.b32.xlu0 %v103, 126
    %v2655 = vpop.permute.xlu0 %2654
    %2656 = vrot.lane.b32.xlu0 %v104, 126
    %v2657 = vpop.permute.xlu0 %2656
    %2658 = vrot.lane.b32.xlu0 %v105, 126
    %v2659 = vpop.permute.xlu0 %2658
    %2676 = vmatprep.subr.mxu0 0.0
    %2677 = vmatpush1.msra.mxu0 %v2629
    %2678 = vmatprep.subr.mxu0 0.0
    %2679 = vmatpush1.msra.mxu0 %v2631
    %2680 = vmatprep.subr.mxu0 0.0
    %2681 = vmatpush1.msra.mxu0 %v2633
    %2682 = vmatprep.subr.mxu0 0.0
    %2683 = vmatpush1.msra.mxu0 %v2635
    %2684 = vmatprep.subr.mxu0 0.0
    %2685 = vmatpush1.msra.mxu0 %v2637
    %2686 = vmatprep.subr.mxu0 0.0
    %2687 = vmatpush1.msra.mxu0 %v2639
    %2688 = vmatprep.subr.mxu0 0.0
    %2689 = vmatpush1.msra.mxu0 %v2641
    %2690 = vmatprep.subr.mxu0 0.0
    %2691 = vmatpush1.msra.mxu0 %v2643
    %2692 = vmatprep.subr.mxu0 0.0
    %2693 = vmatpush1.msra.mxu0 %v2645
    %2694 = vmatprep.subr.mxu0 0.0
    %2695 = vmatpush1.msra.mxu0 %v2647
    %2696 = vmatprep.subr.mxu0 0.0
    %2697 = vmatpush1.msra.mxu0 %v2649
    %2698 = vmatprep.subr.mxu0 0.0
    %2699 = vmatpush1.msra.mxu0 %v2651
    %2700 = vmatprep.subr.mxu0 0.0
    %2701 = vmatpush1.msra.mxu0 %v2653
    %2702 = vmatprep.subr.mxu0 0.0
    %2703 = vmatpush1.msra.mxu0 %v2655
    %2704 = vmatprep.subr.mxu0 0.0
    %2705 = vmatpush1.msra.mxu0 %v2657
    %2706 = vmatprep.subr.mxu0 0.0
    %2707 = vmatpush1.msra.mxu0 %v2659
    %2708 = vmatprep.subr.mxu0 0.0
    %2709 = vmatpush1.msra.mxu0 0.0
    %2710 = vmatprep.subr.mxu0 0.0
    %2711 = vmatpush1.msra.mxu0 0.0
    %2712 = vmatprep.subr.mxu0 0.0
    %2713 = vmatpush1.msra.mxu0 0.0
    %2714 = vmatprep.subr.mxu0 0.0
    %2715 = vmatpush1.msra.mxu0 0.0
    %2716 = vmatprep.subr.mxu0 0.0
    %2717 = vmatpush1.msra.mxu0 0.0
    %2718 = vmatprep.subr.mxu0 0.0
    %2719 = vmatpush1.msra.mxu0 0.0
    %2720 = vmatprep.subr.mxu0 0.0
    %2721 = vmatpush1.msra.mxu0 0.0
    %2722 = vmatprep.subr.mxu0 0.0
    %2723 = vmatpush1.msra.mxu0 0.0
    %2724 = vmatprep.subr.mxu0 0.0
    %2725 = vmatpush1.msra.mxu0 0.0
    %2726 = vmatprep.subr.mxu0 0.0
    %2727 = vmatpush1.msra.mxu0 0.0
    %2728 = vmatprep.subr.mxu0 0.0
    %2729 = vmatpush1.msra.mxu0 0.0
    %2730 = vmatprep.subr.mxu0 0.0
    %2731 = vmatpush1.msra.mxu0 0.0
    %2732 = vmatprep.subr.mxu0 0.0
    %2733 = vmatpush1.msra.mxu0 0.0
    %2734 = vmatprep.subr.mxu0 0.0
    %2735 = vmatpush1.msra.mxu0 0.0
    %2736 = vmatprep.subr.mxu0 0.0
    %2737 = vmatpush1.msra.mxu0 0.0
    %2738 = vmatprep.subr.mxu0 0.0
    %2739 = vmatpush1.msra.mxu0 0.0
    %2740 = vmatprep.mubr.f32.mxu0 0.0
    %2741 = vmatmul.mubr.f32.gmra.mrb[0].mxu0 %v2518
    %v2742 = vpop.f32.mrb[0].mxu0
    %v2743 = vadd.f32 0.0, %v2742
    %v2744 = vpop.f32.mrb[0].mxu0
    %2745 = vdwg.mxu0
    %vm2746 = vcmask 15360
    %v2748 = vsel %vm2746, %v86, 0
    %v2751 = vsel %vm2746, %v87, 0
    %v2754 = vsel %vm296, %v2743, 0
    %2756 = vmatprep.subr.mxu0 0.0
    %2757 = vmatpush1.msra.mxu0 %v2754
    %2758 = vmatprep.subr.mxu0 0.0
    %2759 = vmatpush1.msra.mxu0 0.0
    %2760 = vmatprep.subr.mxu0 0.0
    %2761 = vmatpush1.msra.mxu0 0.0
    %2762 = vmatprep.subr.mxu0 0.0
    %2763 = vmatpush1.msra.mxu0 0.0
    %2764 = vmatprep.subr.mxu0 0.0
    %2765 = vmatpush1.msra.mxu0 0.0
    %2766 = vmatprep.subr.mxu0 0.0
    %2767 = vmatpush1.msra.mxu0 0.0
    %2768 = vmatprep.subr.mxu0 0.0
    %2769 = vmatpush1.msra.mxu0 0.0
    %2770 = vmatprep.subr.mxu0 0.0
    %2771 = vmatpush1.msra.mxu0 0.0
    %2772 = vmatprep.subr.mxu0 0.0
    %2773 = vmatpush1.msra.mxu0 0.0
    %2774 = vmatprep.subr.mxu0 0.0
    %2775 = vmatpush1.msra.mxu0 0.0
    %2776 = vmatprep.subr.mxu0 0.0
    %2777 = vmatpush1.msra.mxu0 0.0
    %2778 = vmatprep.subr.mxu0 0.0
    %2779 = vmatpush1.msra.mxu0 0.0
    %2780 = vmatprep.subr.mxu0 0.0
    %2781 = vmatpush1.msra.mxu0 0.0
    %2782 = vmatprep.subr.mxu0 0.0
    %2783 = vmatpush1.msra.mxu0 0.0
    %2784 = vmatprep.subr.mxu0 0.0
    %2785 = vmatpush1.msra.mxu0 0.0
    %2786 = vmatprep.subr.mxu0 0.0
    %2787 = vmatpush1.msra.mxu0 0.0
    %2788 = vmatprep.subr.mxu0 0.0
    %2789 = vmatpush1.msra.mxu0 0.0
    %2790 = vmatprep.subr.mxu0 0.0
    %2791 = vmatpush1.msra.mxu0 0.0
    %2792 = vmatprep.subr.mxu0 0.0
    %2793 = vmatpush1.msra.mxu0 0.0
    %2794 = vmatprep.subr.mxu0 0.0
    %2795 = vmatpush1.msra.mxu0 0.0
    %2796 = vmatprep.subr.mxu0 0.0
    %2797 = vmatpush1.msra.mxu0 0.0
    %2798 = vmatprep.subr.mxu0 0.0
    %2799 = vmatpush1.msra.mxu0 0.0
    %2800 = vmatprep.subr.mxu0 0.0
    %2801 = vmatpush1.msra.mxu0 0.0
    %2802 = vmatprep.subr.mxu0 0.0
    %2803 = vmatpush1.msra.mxu0 0.0
    %2804 = vmatprep.subr.mxu0 0.0
    %2805 = vmatpush1.msra.mxu0 0.0
    %2806 = vmatprep.subr.mxu0 0.0
    %2807 = vmatpush1.msra.mxu0 0.0
    %2808 = vmatprep.subr.mxu0 0.0
    %2809 = vmatpush1.msra.mxu0 0.0
    %2810 = vmatprep.subr.mxu0 0.0
    %2811 = vmatpush1.msra.mxu0 0.0
    %2812 = vmatprep.subr.mxu0 0.0
    %2813 = vmatpush1.msra.mxu0 0.0
    %2814 = vmatprep.subr.mxu0 0.0
    %2815 = vmatpush1.msra.mxu0 0.0
    %2816 = vmatprep.subr.mxu0 0.0
    %2817 = vmatpush1.msra.mxu0 0.0
    %2818 = vmatprep.subr.mxu0 0.0
    %2819 = vmatpush1.msra.mxu0 0.0
    %2820 = vmatprep.mubr.f32.mxu0 0.0
    %2821 = vmatmul.mubr.f32.gmra.mrb[0].mxu0 %v2748
    %v2822 = vpop.f32.mrb[0].mxu0
    %v2823 = vadd.f32 %v2620, %v2822
    %v2824 = vpop.f32.mrb[0].mxu0
    %2825 = vmatprep.mubr.f32.mxu0 0.0
    %2826 = vmatmul.mubr.f32.gmra.mrb[0].mxu0 %v2751
    %v2827 = vpop.f32.mrb[0].mxu0
    %v2828 = vadd.f32 %v2626, %v2827
    %v2829 = vpop.f32.mrb[0].mxu0
    %2830 = vdwg.mxu0
    %2831 = vrot.lane.b32.xlu0 %v659, 126
    %v2832 = vpop.permute.xlu0 %2831
    %v2834 = vadd.f32 %v2823, %v2832
    %v2835 = vadd.f32 %v2828, %v2832
    %vm2836 = vcmp.gt.f32.partialorder %v2834, 0.0
    %vm2837 = vcmp.gt.f32.partialorder %v2835, 0.0
    %v2838 = vmul.f32 %v2834, 0.01
    %v2839 = vmul.f32 %v2835, 0.01
    %v2840 = vsel %vm2836, %v2834, %v2838
    %v2841 = vsel %vm2837, %v2835, %v2839
    %v2842 = vlaneseq
    %v2843 = vshrl.u32 %v2842, 7
    %v2844 = vsub.s32 4, %v2843
    %v2845 = vrot.slane %v88, %v2844
    %v2846 = vadd.f32 %v2618, %v2845
    %v2847 = vadd.f32 %v2624, %v2845
    %v2848 = vsel %vm675, %v2840, -inf
    %vm2849 = vcmask 1024
    %v2850 = vsel %vm2849, %v2841, -inf
    %v2851 = vmax.f32 %v2848, %v2850
    %v2852 = vrot.slane %v2851, 4
    %v2853 = vmax.f32 %v2851, %v2852
    %v2854 = vrot.slane %v2853, 2
    %v2855 = vmax.f32 %v2853, %v2854
    %v2856 = vrot.slane %v2855, 1
    %v2857 = vmax.f32 %v2855, %v2856
    %v2858 = vsub.f32 %v2840, %v2857
    %v2859 = vsub.f32 %v2841, %v2857
    %v2860 = vmul.f32 %v2858, 1.442695
    %v2861 = vpow.pop %v2860
    %v2862 = vmul.f32 %v2859, 1.442695
    %v2863 = vpow.pop %v2862
    %2865 = vset.pattern.permute.xlu0 0
    %2866 = vperm.xlu0 %2865, %v2861
    %v2867 = vpop.permute.xlu0 %2866
    %2870 = vset.pattern.permute.xlu0 0
    %2871 = vperm.xlu0 %2870, %v2863
    %v2872 = vpop.permute.xlu0 %2871
    %v2874 = vmul.f32 %v2846, %v2867
    %v2875 = vmul.f32 %v2847, %v2872
    %v2877 = vsel %vm296, %v2875, 0
    %v2879 = vsel %vm296, %v2863, 0
    %2881 = vmatprep.subr.mxu0 %v2861
    %2882 = vmatpush1.msra.mxu0 %v2874
    %2883 = vmatprep.subr.mxu0 %v2879
    %2884 = vmatpush1.msra.mxu0 %v2877
    %2885 = vmatprep.subr.mxu0 0.0
    %2886 = vmatpush1.msra.mxu0 0.0
    %2887 = vmatprep.subr.mxu0 0.0
    %2888 = vmatpush1.msra.mxu0 0.0
    %2889 = vmatprep.subr.mxu0 0.0
    %2890 = vmatpush1.msra.mxu0 0.0
    %2891 = vmatprep.subr.mxu0 0.0
    %2892 = vmatpush1.msra.mxu0 0.0
    %2893 = vmatprep.subr.mxu0 0.0
    %2894 = vmatpush1.msra.mxu0 0.0
    %2895 = vmatprep.subr.mxu0 0.0
    %2896 = vmatpush1.msra.mxu0 0.0
    %2897 = vmatprep.subr.mxu0 0.0
    %2898 = vmatpush1.msra.mxu0 0.0
    %2899 = vmatprep.subr.mxu0 0.0
    %2900 = vmatpush1.msra.mxu0 0.0
    %2901 = vmatprep.subr.mxu0 0.0
    %2902 = vmatpush1.msra.mxu0 0.0
    %2903 = vmatprep.subr.mxu0 0.0
    %2904 = vmatpush1.msra.mxu0 0.0
    %2905 = vmatprep.subr.mxu0 0.0
    %2906 = vmatpush1.msra.mxu0 0.0
    %2907 = vmatprep.subr.mxu0 0.0
    %2908 = vmatpush1.msra.mxu0 0.0
    %2909 = vmatprep.subr.mxu0 0.0
    %2910 = vmatpush1.msra.mxu0 0.0
    %2911 = vmatprep.subr.mxu0 0.0
    %2912 = vmatpush1.msra.mxu0 0.0
    %2913 = vmatprep.subr.mxu0 0.0
    %2914 = vmatpush1.msra.mxu0 0.0
    %2915 = vmatprep.subr.mxu0 0.0
    %2916 = vmatpush1.msra.mxu0 0.0
    %2917 = vmatprep.subr.mxu0 0.0
    %2918 = vmatpush1.msra.mxu0 0.0
    %2919 = vmatprep.subr.mxu0 0.0
    %2920 = vmatpush1.msra.mxu0 0.0
    %2921 = vmatprep.subr.mxu0 0.0
    %2922 = vmatpush1.msra.mxu0 0.0
    %2923 = vmatprep.subr.mxu0 0.0
    %2924 = vmatpush1.msra.mxu0 0.0
    %2925 = vmatprep.subr.mxu0 0.0
    %2926 = vmatpush1.msra.mxu0 0.0
    %2927 = vmatprep.subr.mxu0 0.0
    %2928 = vmatpush1.msra.mxu0 0.0
    %2929 = vmatprep.subr.mxu0 0.0
    %2930 = vmatpush1.msra.mxu0 0.0
    %2931 = vmatprep.subr.mxu0 0.0
    %2932 = vmatpush1.msra.mxu0 0.0
    %2933 = vmatprep.subr.mxu0 0.0
    %2934 = vmatpush1.msra.mxu0 0.0
    %2935 = vmatprep.subr.mxu0 0.0
    %2936 = vmatpush1.msra.mxu0 0.0
    %2937 = vmatprep.subr.mxu0 0.0
    %2938 = vmatpush1.msra.mxu0 0.0
    %2939 = vmatprep.subr.mxu0 0.0
    %2940 = vmatpush1.msra.mxu0 0.0
    %2941 = vmatprep.subr.mxu0 0.0
    %2942 = vmatpush1.msra.mxu0 0.0
    %2943 = vmatprep.subr.mxu0 0.0
    %2944 = vmatpush1.msra.mxu0 0.0
    %2945 = vmatprep.mubr.f32.mxu0 0.0
    %2946 = vmatmul.mubr.f32.gmra.mrb[0].mxu0 %v2443
    %v2947 = vpop.f32.mrb[0].mxu0
    %v2948 = vadd.f32 0.0, %v2947
    %v2949 = vpop.f32.mrb[0].mxu0
    %v2950 = vadd.f32 0.0, %v2949
    %2951 = vdwg.mxu0
    %vm2952 = vcmp.eq.f32.partialorder %v2950, 0.0
    %v2953 = vsel %vm2952, 1.0, %v2950
    %2955 = vset.pattern.permute.xlu0 0
    %2956 = vperm.xlu0 %2955, %v2953
    %v2957 = vpop.permute.xlu0 %2956
    %v2959 = vrcp.pop %v2957
    %v2960 = vmul.f32 %v2948, %v2959
    %vm2961 = vcmp.gt.f32.partialorder %v2960, 0.0
    %v2962 = vmin.f32 %v2960, 0.0
    %v2963 = vmul.f32 %v2962, 1.442695
    %v2964 = vpow.pop %v2963
    %v2965 = vsub.f32 %v2964, 1.0
    %v2966 = vsel %vm2961, %v2960, %v2965
    %s2967 = scalar_lea.vmem %s12, 1536
    %v2968 = vld [vmem:[%s2967] sm:$0xff]
    %v2969 = vld [vmem:[%s2967 + $0x8] sm:$0xff]
    %v2970 = vld [vmem:[%s2967 + $0x10] sm:$0xff]
    %v2971 = vld [vmem:[%s2967 + $0x18] sm:$0xff]
    %v2972 = vld [vmem:[%s2967 + $0x20] sm:$0xff]
    %v2973 = vld [vmem:[%s2967 + $0x28] sm:$0xff]
    %v2974 = vld [vmem:[%s2967 + $0x30] sm:$0xff]
    %v2975 = vld [vmem:[%s2967 + $0x38] sm:$0xff]
    %v2976 = vld [vmem:[%s2967 + $0x40] sm:$0xff]
    %v2977 = vld [vmem:[%s2967 + $0x48] sm:$0xff]
    %v2978 = vld [vmem:[%s2967 + $0x50] sm:$0xff]
    %v2979 = vld [vmem:[%s2967 + $0x58] sm:$0xff]
    %v2980 = vld [vmem:[%s2967 + $0x60] sm:$0xff]
    %v2981 = vld [vmem:[%s2967 + $0x68] sm:$0xff]
    %v2982 = vld [vmem:[%s2967 + $0x70] sm:$0xff]
    %v2983 = vld [vmem:[%s2967 + $0x78] sm:$0xff]
    %v2984 = vld [vmem:[%s2967 + $0x80] sm:$0xff]
    %v2985 = vld [vmem:[%s2967 + $0x88] sm:$0xff]
    %v2986 = vld [vmem:[%s2967 + $0x90] sm:$0xff]
    %v2987 = vld [vmem:[%s2967 + $0x98] sm:$0xff]
    %v2988 = vld [vmem:[%s2967 + $0xa0] sm:$0xff]
    %v2989 = vld [vmem:[%s2967 + $0xa8] sm:$0xff]
    %v2990 = vld [vmem:[%s2967 + $0xb0] sm:$0xff]
    %v2991 = vld [vmem:[%s2967 + $0xb8] sm:$0xff]
    %v2992 = vld [vmem:[%s2967 + $0xc0] sm:$0xff]
    %v2993 = vld [vmem:[%s2967 + $0xc8] sm:$0xff]
    %v2994 = vld [vmem:[%s2967 + $0xd0] sm:$0xff]
    %v2995 = vld [vmem:[%s2967 + $0xd8] sm:$0xff]
    %v2996 = vld [vmem:[%s2967 + $0xe0] sm:$0xff]
    %v2997 = vld [vmem:[%s2967 + $0xe8] sm:$0xff]
    %v2998 = vld [vmem:[%s2967 + $0xf0] sm:$0xff]
    %v2999 = vld [vmem:[%s2967 + $0xf8] sm:$0xff]
    %v3000 = vld [vmem:[%s2967 + $0x100] sm:$0xff]
    %v3001 = vld [vmem:[%s2967 + $0x108] sm:$0xff]
    %v3002 = vld [vmem:[%s2967 + $0x110] sm:$0xff]
    %v3003 = vld [vmem:[%s2967 + $0x118] sm:$0xff]
    %v3004 = vld [vmem:[%s2967 + $0x120] sm:$0xff]
    %v3005 = vld [vmem:[%s2967 + $0x128] sm:$0xff]
    %v3006 = vld [vmem:[%s2967 + $0x130] sm:$0xff]
    %v3007 = vld [vmem:[%s2967 + $0x138] sm:$0xff]
    %v3008 = vld [vmem:[%s2967 + $0x140] sm:$0xff]
    %v3009 = vld [vmem:[%s2967 + $0x148] sm:$0xff]
    %v3010 = vld [vmem:[%s2967 + $0x150] sm:$0xff]
    %v3011 = vld [vmem:[%s2967 + $0x158] sm:$0xff]
    %v3012 = vld [vmem:[%s2967 + $0x160] sm:$0xff]
    %v3013 = vld [vmem:[%s2967 + $0x168] sm:$0xff]
    %v3014 = vld [vmem:[%s2967 + $0x170] sm:$0xff]
    %v3015 = vld [vmem:[%s2967 + $0x178] sm:$0xff]
    %v3016 = vld [vmem:[%s2967 + $0x180] sm:$0xff]
    %v3017 = vld [vmem:[%s2967 + $0x188] sm:$0xff]
    %v3018 = vld [vmem:[%s2967 + $0x190] sm:$0xff]
    %v3019 = vld [vmem:[%s2967 + $0x198] sm:$0xff]
    %v3020 = vld [vmem:[%s2967 + $0x1a0] sm:$0xff]
    %v3021 = vld [vmem:[%s2967 + $0x1a8] sm:$0xff]
    %v3022 = vld [vmem:[%s2967 + $0x1b0] sm:$0xff]
    %v3023 = vld [vmem:[%s2967 + $0x1b8] sm:$0xff]
    %v3024 = vld [vmem:[%s2967 + $0x1c0] sm:$0xff]
    %v3025 = vld [vmem:[%s2967 + $0x1c8] sm:$0xff]
    %v3026 = vld [vmem:[%s2967 + $0x1d0] sm:$0xff]
    %v3027 = vld [vmem:[%s2967 + $0x1d8] sm:$0xff]
    %v3028 = vld [vmem:[%s2967 + $0x1e0] sm:$0xff]
    %v3029 = vld [vmem:[%s2967 + $0x1e8] sm:$0xff]
    %v3030 = vld [vmem:[%s2967 + $0x1f0] sm:$0xff]
    %v3031 = vld [vmem:[%s2967 + $0x1f8] sm:$0xff]
    %v3032 = vld [vmem:[%s2967 + $0x200] sm:$0xff]
    %v3033 = vld [vmem:[%s2967 + $0x208] sm:$0xff]
    %v3034 = vld [vmem:[%s2967 + $0x210] sm:$0xff]
    %v3035 = vld [vmem:[%s2967 + $0x218] sm:$0xff]
    %v3036 = vld [vmem:[%s2967 + $0x220] sm:$0xff]
    %v3037 = vld [vmem:[%s2967 + $0x228] sm:$0xff]
    %v3038 = vld [vmem:[%s2967 + $0x230] sm:$0xff]
    %v3039 = vld [vmem:[%s2967 + $0x238] sm:$0xff]
    %v3040 = vld [vmem:[%s2967 + $0x240] sm:$0xff]
    %v3041 = vld [vmem:[%s2967 + $0x248] sm:$0xff]
    %v3042 = vld [vmem:[%s2967 + $0x250] sm:$0xff]
    %v3043 = vld [vmem:[%s2967 + $0x258] sm:$0xff]
    %v3044 = vld [vmem:[%s2967 + $0x260] sm:$0xff]
    %v3045 = vld [vmem:[%s2967 + $0x268] sm:$0xff]
    %v3046 = vld [vmem:[%s2967 + $0x270] sm:$0xff]
    %v3047 = vld [vmem:[%s2967 + $0x278] sm:$0xff]
    %v3048 = vld [vmem:[%s2967 + $0x280] sm:$0xff]
    %v3049 = vld [vmem:[%s2967 + $0x288] sm:$0xff]
    %v3050 = vld [vmem:[%s2967 + $0x290] sm:$0xff]
    %v3051 = vld [vmem:[%s2967 + $0x298] sm:$0xff]
    %v3052 = vld [vmem:[%s2967 + $0x2a0] sm:$0xff]
    %v3053 = vld [vmem:[%s2967 + $0x2a8] sm:$0xff]
    %v3054 = vld [vmem:[%s2967 + $0x2b0] sm:$0xff]
    %v3055 = vld [vmem:[%s2967 + $0x2b8] sm:$0xff]
    %v3056 = vld [vmem:[%s2967 + $0x2c0] sm:$0xff]
    %v3057 = vld [vmem:[%s2967 + $0x2c8] sm:$0xff]
    %v3058 = vld [vmem:[%s2967 + $0x2d0] sm:$0xff]
    %v3059 = vld [vmem:[%s2967 + $0x2d8] sm:$0xff]
    %v3060 = vld [vmem:[%s2967 + $0x2e0] sm:$0xff]
    %v3061 = vld [vmem:[%s2967 + $0x2e8] sm:$0xff]
    %v3062 = vld [vmem:[%s2967 + $0x2f0] sm:$0xff]
    %v3063 = vld [vmem:[%s2967 + $0x2f8] sm:$0xff]
    %s3064 = scalar_lea.vmem %s19, 12
    %v3065 = vld [vmem:[%s3064] sm:$0x3f]
    %v3067 = vlaneseq
    %v3068 = vshrl.u32 %v3067, 7
    %v3069 = vsub.s32 0, %v3068
    %v3070 = vrot.slane %v3065, %v3069
    %v3071 = vlaneseq
    %v3072 = vshrl.u32 %v3071, 7
    %v3073 = vsub.s32 2, %v3072
    %v3074 = vrot.slane %v3065, %v3073
    %v3075 = vlaneseq
    %v3076 = vshrl.u32 %v3075, 7
    %v3077 = vsub.s32 4, %v3076
    %v3078 = vrot.slane %v3065, %v3077
    %v3082 = vlaneseq
    %v3083 = vshrl.u32 %v3082, 7
    %v3084 = vsub.s32 0, %v3083
    %v3085 = vrot.slane %v3070, %v3084
    %v3086 = vlaneseq
    %v3087 = vshrl.u32 %v3086, 7
    %v3088 = vsub.s32 0, %v3087
    %v3089 = vrot.slane %v3074, %v3088
    %v3090 = vlaneseq
    %v3091 = vshrl.u32 %v3090, 7
    %v3092 = vsub.s32 0, %v3091
    %v3093 = vrot.slane %v3078, %v3092
    %3094 = vmatprep.subr.mxu0 %v2969
    %3095 = vmatpush1.msra.mxu0 %v2968
    %3096 = vmatprep.subr.mxu0 %v2972
    %3097 = vmatpush1.msra.mxu0 %v2971
    %3098 = vmatprep.subr.mxu0 %v2975
    %3099 = vmatpush1.msra.mxu0 %v2974
    %3100 = vmatprep.subr.mxu0 %v2978
    %3101 = vmatpush1.msra.mxu0 %v2977
    %3102 = vmatprep.subr.mxu0 %v2981
    %3103 = vmatpush1.msra.mxu0 %v2980
    %3104 = vmatprep.subr.mxu0 %v2984
    %3105 = vmatpush1.msra.mxu0 %v2983
    %3106 = vmatprep.subr.mxu0 %v2987
    %3107 = vmatpush1.msra.mxu0 %v2986
    %3108 = vmatprep.subr.mxu0 %v2990
    %3109 = vmatpush1.msra.mxu0 %v2989
    %3110 = vmatprep.subr.mxu0 %v2993
    %3111 = vmatpush1.msra.mxu0 %v2992
    %3112 = vmatprep.subr.mxu0 %v2996
    %3113 = vmatpush1.msra.mxu0 %v2995
    %3114 = vmatprep.subr.mxu0 %v2999
    %3115 = vmatpush1.msra.mxu0 %v2998
    %3116 = vmatprep.subr.mxu0 %v3002
    %3117 = vmatpush1.msra.mxu0 %v3001
    %3118 = vmatprep.subr.mxu0 %v3005
    %3119 = vmatpush1.msra.mxu0 %v3004
    %3120 = vmatprep.subr.mxu0 %v3008
    %3121 = vmatpush1.msra.mxu0 %v3007
    %3122 = vmatprep.subr.mxu0 %v3011
    %3123 = vmatpush1.msra.mxu0 %v3010
    %3124 = vmatprep.subr.mxu0 %v3014
    %3125 = vmatpush1.msra.mxu0 %v3013
    %3126 = vmatprep.subr.mxu0 0.0
    %3127 = vmatpush1.msra.mxu0 0.0
    %3128 = vmatprep.subr.mxu0 0.0
    %3129 = vmatpush1.msra.mxu0 0.0
    %3130 = vmatprep.subr.mxu0 0.0
    %3131 = vmatpush1.msra.mxu0 0.0
    %3132 = vmatprep.subr.mxu0 0.0
    %3133 = vmatpush1.msra.mxu0 0.0
    %3134 = vmatprep.subr.mxu0 0.0
    %3135 = vmatpush1.msra.mxu0 0.0
    %3136 = vmatprep.subr.mxu0 0.0
    %3137 = vmatpush1.msra.mxu0 0.0
    %3138 = vmatprep.subr.mxu0 0.0
    %3139 = vmatpush1.msra.mxu0 0.0
    %3140 = vmatprep.subr.mxu0 0.0
    %3141 = vmatpush1.msra.mxu0 0.0
    %3142 = vmatprep.subr.mxu0 0.0
    %3143 = vmatpush1.msra.mxu0 0.0
    %3144 = vmatprep.subr.mxu0 0.0
    %3145 = vmatpush1.msra.mxu0 0.0
    %3146 = vmatprep.subr.mxu0 0.0
    %3147 = vmatpush1.msra.mxu0 0.0
    %3148 = vmatprep.subr.mxu0 0.0
    %3149 = vmatpush1.msra.mxu0 0.0
    %3150 = vmatprep.subr.mxu0 0.0
    %3151 = vmatpush1.msra.mxu0 0.0
    %3152 = vmatprep.subr.mxu0 0.0
    %3153 = vmatpush1.msra.mxu0 0.0
    %3154 = vmatprep.subr.mxu0 0.0
    %3155 = vmatpush1.msra.mxu0 0.0
    %3156 = vmatprep.subr.mxu0 0.0
    %3157 = vmatpush1.msra.mxu0 0.0
    %3158 = vmatprep.mubr.f32.mxu0 0.0
    %3159 = vmatmul.mubr.f32.gmra.mrb[0].mxu0 %v2966
    %v3160 = vpop.f32.mrb[0].mxu0
    %v3161 = vadd.f32 %v3085, %v3160
    %v3162 = vpop.f32.mrb[0].mxu0
    %v3163 = vadd.f32 %v3089, %v3162
    %3164 = vdwg.mxu0
    %3165 = vmatprep.subr.mxu0 0.0
    %3166 = vmatpush1.msra.mxu0 %v2970
    %3167 = vmatprep.subr.mxu0 0.0
    %3168 = vmatpush1.msra.mxu0 %v2973
    %3169 = vmatprep.subr.mxu0 0.0
    %3170 = vmatpush1.msra.mxu0 %v2976
    %3171 = vmatprep.subr.mxu0 0.0
    %3172 = vmatpush1.msra.mxu0 %v2979
    %3173 = vmatprep.subr.mxu0 0.0
    %3174 = vmatpush1.msra.mxu0 %v2982
    %3175 = vmatprep.subr.mxu0 0.0
    %3176 = vmatpush1.msra.mxu0 %v2985
    %3177 = vmatprep.subr.mxu0 0.0
    %3178 = vmatpush1.msra.mxu0 %v2988
    %3179 = vmatprep.subr.mxu0 0.0
    %3180 = vmatpush1.msra.mxu0 %v2991
    %3181 = vmatprep.subr.mxu0 0.0
    %3182 = vmatpush1.msra.mxu0 %v2994
    %3183 = vmatprep.subr.mxu0 0.0
    %3184 = vmatpush1.msra.mxu0 %v2997
    %3185 = vmatprep.subr.mxu0 0.0
    %3186 = vmatpush1.msra.mxu0 %v3000
    %3187 = vmatprep.subr.mxu0 0.0
    %3188 = vmatpush1.msra.mxu0 %v3003
    %3189 = vmatprep.subr.mxu0 0.0
    %3190 = vmatpush1.msra.mxu0 %v3006
    %3191 = vmatprep.subr.mxu0 0.0
    %3192 = vmatpush1.msra.mxu0 %v3009
    %3193 = vmatprep.subr.mxu0 0.0
    %3194 = vmatpush1.msra.mxu0 %v3012
    %3195 = vmatprep.subr.mxu0 0.0
    %3196 = vmatpush1.msra.mxu0 %v3015
    %3197 = vmatprep.subr.mxu0 0.0
    %3198 = vmatpush1.msra.mxu0 0.0
    %3199 = vmatprep.subr.mxu0 0.0
    %3200 = vmatpush1.msra.mxu0 0.0
    %3201 = vmatprep.subr.mxu0 0.0
    %3202 = vmatpush1.msra.mxu0 0.0
    %3203 = vmatprep.subr.mxu0 0.0
    %3204 = vmatpush1.msra.mxu0 0.0
    %3205 = vmatprep.subr.mxu0 0.0
    %3206 = vmatpush1.msra.mxu0 0.0
    %3207 = vmatprep.subr.mxu0 0.0
    %3208 = vmatpush1.msra.mxu0 0.0
    %3209 = vmatprep.subr.mxu0 0.0
    %3210 = vmatpush1.msra.mxu0 0.0
    %3211 = vmatprep.subr.mxu0 0.0
    %3212 = vmatpush1.msra.mxu0 0.0
    %3213 = vmatprep.subr.mxu0 0.0
    %3214 = vmatpush1.msra.mxu0 0.0
    %3215 = vmatprep.subr.mxu0 0.0
    %3216 = vmatpush1.msra.mxu0 0.0
    %3217 = vmatprep.subr.mxu0 0.0
    %3218 = vmatpush1.msra.mxu0 0.0
    %3219 = vmatprep.subr.mxu0 0.0
    %3220 = vmatpush1.msra.mxu0 0.0
    %3221 = vmatprep.subr.mxu0 0.0
    %3222 = vmatpush1.msra.mxu0 0.0
    %3223 = vmatprep.subr.mxu0 0.0
    %3224 = vmatpush1.msra.mxu0 0.0
    %3225 = vmatprep.subr.mxu0 0.0
    %3226 = vmatpush1.msra.mxu0 0.0
    %3227 = vmatprep.subr.mxu0 0.0
    %3228 = vmatpush1.msra.mxu0 0.0
    %3229 = vmatprep.mubr.f32.mxu0 0.0
    %3230 = vmatmul.mubr.f32.gmra.mrb[0].mxu0 %v2966
    %v3231 = vpop.f32.mrb[0].mxu0
    %v3232 = vadd.f32 %v3093, %v3231
    %v3233 = vpop.f32.mrb[0].mxu0
    %3234 = vdwg.mxu0
    %v3235 = vlaneseq
    %v3236 = vshrl.u32 %v3235, 7
    %v3237 = vsub.s32 1, %v3236
    %v3238 = vrot.slane %v3065, %v3237
    %v3239 = vlaneseq
    %v3240 = vshrl.u32 %v3239, 7
    %v3241 = vsub.s32 3, %v3240
    %v3242 = vrot.slane %v3065, %v3241
    %v3243 = vlaneseq
    %v3244 = vshrl.u32 %v3243, 7
    %v3245 = vsub.s32 5, %v3244
    %v3246 = vrot.slane %v3065, %v3245
    %v3250 = vlaneseq
    %v3251 = vshrl.u32 %v3250, 7
    %v3252 = vsub.s32 1, %v3251
    %v3253 = vrot.slane %v3238, %v3252
    %v3254 = vlaneseq
    %v3255 = vshrl.u32 %v3254, 7
    %v3256 = vsub.s32 1, %v3255
    %v3257 = vrot.slane %v3242, %v3256
    %v3258 = vlaneseq
    %v3259 = vshrl.u32 %v3258, 7
    %v3260 = vsub.s32 1, %v3259
    %v3261 = vrot.slane %v3246, %v3260
    %3262 = vmatprep.subr.mxu0 %v3017
    %3263 = vmatpush1.msra.mxu0 %v3016
    %3264 = vmatprep.subr.mxu0 %v3020
    %3265 = vmatpush1.msra.mxu0 %v3019
    %3266 = vmatprep.subr.mxu0 %v3023
    %3267 = vmatpush1.msra.mxu0 %v3022
    %3268 = vmatprep.subr.mxu0 %v3026
    %3269 = vmatpush1.msra.mxu0 %v3025
    %3270 = vmatprep.subr.mxu0 %v3029
    %3271 = vmatpush1.msra.mxu0 %v3028
    %3272 = vmatprep.subr.mxu0 %v3032
    %3273 = vmatpush1.msra.mxu0 %v3031
    %3274 = vmatprep.subr.mxu0 %v3035
    %3275 = vmatpush1.msra.mxu0 %v3034
    %3276 = vmatprep.subr.mxu0 %v3038
    %3277 = vmatpush1.msra.mxu0 %v3037
    %3278 = vmatprep.subr.mxu0 %v3041
    %3279 = vmatpush1.msra.mxu0 %v3040
    %3280 = vmatprep.subr.mxu0 %v3044
    %3281 = vmatpush1.msra.mxu0 %v3043
    %3282 = vmatprep.subr.mxu0 %v3047
    %3283 = vmatpush1.msra.mxu0 %v3046
    %3284 = vmatprep.subr.mxu0 %v3050
    %3285 = vmatpush1.msra.mxu0 %v3049
    %3286 = vmatprep.subr.mxu0 %v3053
    %3287 = vmatpush1.msra.mxu0 %v3052
    %3288 = vmatprep.subr.mxu0 %v3056
    %3289 = vmatpush1.msra.mxu0 %v3055
    %3290 = vmatprep.subr.mxu0 %v3059
    %3291 = vmatpush1.msra.mxu0 %v3058
    %3292 = vmatprep.subr.mxu0 %v3062
    %3293 = vmatpush1.msra.mxu0 %v3061
    %3294 = vmatprep.subr.mxu0 0.0
    %3295 = vmatpush1.msra.mxu0 0.0
    %3296 = vmatprep.subr.mxu0 0.0
    %3297 = vmatpush1.msra.mxu0 0.0
    %3298 = vmatprep.subr.mxu0 0.0
    %3299 = vmatpush1.msra.mxu0 0.0
    %3300 = vmatprep.subr.mxu0 0.0
    %3301 = vmatpush1.msra.mxu0 0.0
    %3302 = vmatprep.subr.mxu0 0.0
    %3303 = vmatpush1.msra.mxu0 0.0
    %3304 = vmatprep.subr.mxu0 0.0
    %3305 = vmatpush1.msra.mxu0 0.0
    %3306 = vmatprep.subr.mxu0 0.0
    %3307 = vmatpush1.msra.mxu0 0.0
    %3308 = vmatprep.subr.mxu0 0.0
    %3309 = vmatpush1.msra.mxu0 0.0
    %3310 = vmatprep.subr.mxu0 0.0
    %3311 = vmatpush1.msra.mxu0 0.0
    %3312 = vmatprep.subr.mxu0 0.0
    %3313 = vmatpush1.msra.mxu0 0.0
    %3314 = vmatprep.subr.mxu0 0.0
    %3315 = vmatpush1.msra.mxu0 0.0
    %3316 = vmatprep.subr.mxu0 0.0
    %3317 = vmatpush1.msra.mxu0 0.0
    %3318 = vmatprep.subr.mxu0 0.0
    %3319 = vmatpush1.msra.mxu0 0.0
    %3320 = vmatprep.subr.mxu0 0.0
    %3321 = vmatpush1.msra.mxu0 0.0
    %3322 = vmatprep.subr.mxu0 0.0
    %3323 = vmatpush1.msra.mxu0 0.0
    %3324 = vmatprep.subr.mxu0 0.0
    %3325 = vmatpush1.msra.mxu0 0.0
    %3326 = vmatprep.mubr.f32.mxu0 0.0
    %3327 = vmatmul.mubr.f32.gmra.mrb[0].mxu0 %v2515
    %v3328 = vpop.f32.mrb[0].mxu0
    %v3329 = vadd.f32 %v3253, %v3328
    %v3330 = vpop.f32.mrb[0].mxu0
    %v3331 = vadd.f32 %v3257, %v3330
    %3332 = vdwg.mxu0
    %3333 = vmatprep.subr.mxu0 0.0
    %3334 = vmatpush1.msra.mxu0 %v3018
    %3335 = vmatprep.subr.mxu0 0.0
    %3336 = vmatpush1.msra.mxu0 %v3021
    %3337 = vmatprep.subr.mxu0 0.0
    %3338 = vmatpush1.msra.mxu0 %v3024
    %3339 = vmatprep.subr.mxu0 0.0
    %3340 = vmatpush1.msra.mxu0 %v3027
    %3341 = vmatprep.subr.mxu0 0.0
    %3342 = vmatpush1.msra.mxu0 %v3030
    %3343 = vmatprep.subr.mxu0 0.0
    %3344 = vmatpush1.msra.mxu0 %v3033
    %3345 = vmatprep.subr.mxu0 0.0
    %3346 = vmatpush1.msra.mxu0 %v3036
    %3347 = vmatprep.subr.mxu0 0.0
    %3348 = vmatpush1.msra.mxu0 %v3039
    %3349 = vmatprep.subr.mxu0 0.0
    %3350 = vmatpush1.msra.mxu0 %v3042
    %3351 = vmatprep.subr.mxu0 0.0
    %3352 = vmatpush1.msra.mxu0 %v3045
    %3353 = vmatprep.subr.mxu0 0.0
    %3354 = vmatpush1.msra.mxu0 %v3048
    %3355 = vmatprep.subr.mxu0 0.0
    %3356 = vmatpush1.msra.mxu0 %v3051
    %3357 = vmatprep.subr.mxu0 0.0
    %3358 = vmatpush1.msra.mxu0 %v3054
    %3359 = vmatprep.subr.mxu0 0.0
    %3360 = vmatpush1.msra.mxu0 %v3057
    %3361 = vmatprep.subr.mxu0 0.0
    %3362 = vmatpush1.msra.mxu0 %v3060
    %3363 = vmatprep.subr.mxu0 0.0
    %3364 = vmatpush1.msra.mxu0 %v3063
    %3365 = vmatprep.subr.mxu0 0.0
    %3366 = vmatpush1.msra.mxu0 0.0
    %3367 = vmatprep.subr.mxu0 0.0
    %3368 = vmatpush1.msra.mxu0 0.0
    %3369 = vmatprep.subr.mxu0 0.0
    %3370 = vmatpush1.msra.mxu0 0.0
    %3371 = vmatprep.subr.mxu0 0.0
    %3372 = vmatpush1.msra.mxu0 0.0
    %3373 = vmatprep.subr.mxu0 0.0
    %3374 = vmatpush1.msra.mxu0 0.0
    %3375 = vmatprep.subr.mxu0 0.0
    %3376 = vmatpush1.msra.mxu0 0.0
    %3377 = vmatprep.subr.mxu0 0.0
    %3378 = vmatpush1.msra.mxu0 0.0
    %3379 = vmatprep.subr.mxu0 0.0
    %3380 = vmatpush1.msra.mxu0 0.0
    %3381 = vmatprep.subr.mxu0 0.0
    %3382 = vmatpush1.msra.mxu0 0.0
    %3383 = vmatprep.subr.mxu0 0.0
    %3384 = vmatpush1.msra.mxu0 0.0
    %3385 = vmatprep.subr.mxu0 0.0
    %3386 = vmatpush1.msra.mxu0 0.0
    %3387 = vmatprep.subr.mxu0 0.0
    %3388 = vmatpush1.msra.mxu0 0.0
    %3389 = vmatprep.subr.mxu0 0.0
    %3390 = vmatpush1.msra.mxu0 0.0
    %3391 = vmatprep.subr.mxu0 0.0
    %3392 = vmatpush1.msra.mxu0 0.0
    %3393 = vmatprep.subr.mxu0 0.0
    %3394 = vmatpush1.msra.mxu0 0.0
    %3395 = vmatprep.subr.mxu0 0.0
    %3396 = vmatpush1.msra.mxu0 0.0
    %3397 = vmatprep.mubr.f32.mxu0 0.0
    %3398 = vmatmul.mubr.f32.gmra.mrb[0].mxu0 %v2515
    %v3399 = vpop.f32.mrb[0].mxu0
    %v3400 = vadd.f32 %v3261, %v3399
    %v3401 = vpop.f32.mrb[0].mxu0
    %3402 = vdwg.mxu0
    %v3403 = vadd.f32 %v3161, %v3329
    %v3404 = vxor.u32 %v3403, 2147483648
    %v3405 = vmul.f32 %v3404, 1.442695
    %v3406 = vpow.pop %v3405
    %v3407 = vadd.f32 %v3406, 1.0
    %v3408 = vrcp.pop %v3407
    %v3409 = vmul.f32 1.0, %v3408
    %v3410 = vadd.f32 %v3163, %v3331
    %v3411 = vxor.u32 %v3410, 2147483648
    %v3412 = vmul.f32 %v3411, 1.442695
    %v3413 = vpow.pop %v3412
    %v3414 = vadd.f32 %v3413, 1.0
    %v3415 = vrcp.pop %v3414
    %v3416 = vmul.f32 1.0, %v3415
    %v3417 = vmul.f32 %v3409, %v3400
    %v3418 = vadd.f32 %v3232, %v3417
    %v3419 = vtanh.pop %v3418
    %v3420 = vsub.f32 1.0, %v3416
    %v3421 = vmul.f32 %v3420, %v3419
    %v3422 = vmul.f32 %v3416, %v2515
    %v3423 = vadd.f32 %v3421, %v3422
    %v3424 = vmax.f32 %v3423, 0.0
    %s3425 = scalar_lea.vmem %s11, 256
    %v3426 = vld [vmem:[%s3425] sm:$0xff]
    %v3427 = vld [vmem:[%s3425 + $0x8] sm:$0xff]
    %v3428 = vld [vmem:[%s3425 + $0x10] sm:$0xff]
    %v3429 = vld [vmem:[%s3425 + $0x18] sm:$0xff]
    %v3430 = vld [vmem:[%s3425 + $0x20] sm:$0xff]
    %v3431 = vld [vmem:[%s3425 + $0x28] sm:$0xff]
    %v3432 = vld [vmem:[%s3425 + $0x30] sm:$0xff]
    %v3433 = vld [vmem:[%s3425 + $0x38] sm:$0xff]
    %v3434 = vld [vmem:[%s3425 + $0x40] sm:$0xff]
    %v3435 = vld [vmem:[%s3425 + $0x48] sm:$0xff]
    %v3436 = vld [vmem:[%s3425 + $0x50] sm:$0xff]
    %v3437 = vld [vmem:[%s3425 + $0x58] sm:$0xff]
    %v3438 = vld [vmem:[%s3425 + $0x60] sm:$0xff]
    %v3439 = vld [vmem:[%s3425 + $0x68] sm:$0xff]
    %v3440 = vld [vmem:[%s3425 + $0x70] sm:$0xff]
    %v3441 = vld [vmem:[%s3425 + $0x78] sm:$0xff]
    %v3442 = vld [vmem:[%s3425 + $0x80] sm:$0xff]
    %v3443 = vld [vmem:[%s3425 + $0x88] sm:$0xff]
    %v3444 = vld [vmem:[%s3425 + $0x90] sm:$0xff]
    %v3445 = vld [vmem:[%s3425 + $0x98] sm:$0xff]
    %v3446 = vld [vmem:[%s3425 + $0xa0] sm:$0xff]
    %v3447 = vld [vmem:[%s3425 + $0xa8] sm:$0xff]
    %v3448 = vld [vmem:[%s3425 + $0xb0] sm:$0xff]
    %v3449 = vld [vmem:[%s3425 + $0xb8] sm:$0xff]
    %v3450 = vld [vmem:[%s3425 + $0xc0] sm:$0xff]
    %v3451 = vld [vmem:[%s3425 + $0xc8] sm:$0xff]
    %v3452 = vld [vmem:[%s3425 + $0xd0] sm:$0xff]
    %v3453 = vld [vmem:[%s3425 + $0xd8] sm:$0xff]
    %v3454 = vld [vmem:[%s3425 + $0xe0] sm:$0xff]
    %v3455 = vld [vmem:[%s3425 + $0xe8] sm:$0xff]
    %v3456 = vld [vmem:[%s3425 + $0xf0] sm:$0xff]
    %v3457 = vld [vmem:[%s3425 + $0xf8] sm:$0xff]
    %3458 = vmatprep.subr.mxu0 %v3427
    %3459 = vmatpush1.msra.mxu0 %v3426
    %3460 = vmatprep.subr.mxu0 %v3429
    %3461 = vmatpush1.msra.mxu0 %v3428
    %3462 = vmatprep.subr.mxu0 %v3431
    %3463 = vmatpush1.msra.mxu0 %v3430
    %3464 = vmatprep.subr.mxu0 %v3433
    %3465 = vmatpush1.msra.mxu0 %v3432
    %3466 = vmatprep.subr.mxu0 %v3435
    %3467 = vmatpush1.msra.mxu0 %v3434
    %3468 = vmatprep.subr.mxu0 %v3437
    %3469 = vmatpush1.msra.mxu0 %v3436
    %3470 = vmatprep.subr.mxu0 %v3439
    %3471 = vmatpush1.msra.mxu0 %v3438
    %3472 = vmatprep.subr.mxu0 %v3441
    %3473 = vmatpush1.msra.mxu0 %v3440
    %3474 = vmatprep.subr.mxu0 %v3443
    %3475 = vmatpush1.msra.mxu0 %v3442
    %3476 = vmatprep.subr.mxu0 %v3445
    %3477 = vmatpush1.msra.mxu0 %v3444
    %3478 = vmatprep.subr.mxu0 %v3447
    %3479 = vmatpush1.msra.mxu0 %v3446
    %3480 = vmatprep.subr.mxu0 %v3449
    %3481 = vmatpush1.msra.mxu0 %v3448
    %3482 = vmatprep.subr.mxu0 %v3451
    %3483 = vmatpush1.msra.mxu0 %v3450
    %3484 = vmatprep.subr.mxu0 %v3453
    %3485 = vmatpush1.msra.mxu0 %v3452
    %3486 = vmatprep.subr.mxu0 %v3455
    %3487 = vmatpush1.msra.mxu0 %v3454
    %3488 = vmatprep.subr.mxu0 %v3457
    %3489 = vmatpush1.msra.mxu0 %v3456
    %3490 = vmatprep.subr.mxu0 0.0
    %3491 = vmatpush1.msra.mxu0 0.0
    %3492 = vmatprep.subr.mxu0 0.0
    %3493 = vmatpush1.msra.mxu0 0.0
    %3494 = vmatprep.subr.mxu0 0.0
    %3495 = vmatpush1.msra.mxu0 0.0
    %3496 = vmatprep.subr.mxu0 0.0
    %3497 = vmatpush1.msra.mxu0 0.0
    %3498 = vmatprep.subr.mxu0 0.0
    %3499 = vmatpush1.msra.mxu0 0.0
    %3500 = vmatprep.subr.mxu0 0.0
    %3501 = vmatpush1.msra.mxu0 0.0
    %3502 = vmatprep.subr.mxu0 0.0
    %3503 = vmatpush1.msra.mxu0 0.0
    %3504 = vmatprep.subr.mxu0 0.0
    %3505 = vmatpush1.msra.mxu0 0.0
    %3506 = vmatprep.subr.mxu0 0.0
    %3507 = vmatpush1.msra.mxu0 0.0
    %3508 = vmatprep.subr.mxu0 0.0
    %3509 = vmatpush1.msra.mxu0 0.0
    %3510 = vmatprep.subr.mxu0 0.0
    %3511 = vmatpush1.msra.mxu0 0.0
    %3512 = vmatprep.subr.mxu0 0.0
    %3513 = vmatpush1.msra.mxu0 0.0
    %3514 = vmatprep.subr.mxu0 0.0
    %3515 = vmatpush1.msra.mxu0 0.0
    %3516 = vmatprep.subr.mxu0 0.0
    %3517 = vmatpush1.msra.mxu0 0.0
    %3518 = vmatprep.subr.mxu0 0.0
    %3519 = vmatpush1.msra.mxu0 0.0
    %3520 = vmatprep.subr.mxu0 0.0
    %3521 = vmatpush1.msra.mxu0 0.0
    %3522 = vmatprep.mubr.f32.mxu0 0.0
    %3523 = vmatmul.mubr.f32.gmra.mrb[0].mxu0 %v2408
    %v3524 = vpop.f32.mrb[0].mxu0
    %v3525 = vadd.f32 0.0, %v3524
    %v3526 = vpop.f32.mrb[0].mxu0
    %v3527 = vadd.f32 0.0, %v3526
    %3528 = vmatprep.mubr.f32.mxu0 0.0
    %3529 = vmatmul.mubr.f32.gmra.mrb[0].mxu0 %v2409
    %v3530 = vpop.f32.mrb[0].mxu0
    %v3531 = vadd.f32 0.0, %v3530
    %v3532 = vpop.f32.mrb[0].mxu0
    %v3533 = vadd.f32 0.0, %v3532
    %3534 = vdwg.mxu0
    %3535 = vrot.lane.b32.xlu0 %v90, 125
    %v3536 = vpop.permute.xlu0 %3535
    %3537 = vrot.lane.b32.xlu0 %v91, 125
    %v3538 = vpop.permute.xlu0 %3537
    %3539 = vrot.lane.b32.xlu0 %v92, 125
    %v3540 = vpop.permute.xlu0 %3539
    %3541 = vrot.lane.b32.xlu0 %v93, 125
    %v3542 = vpop.permute.xlu0 %3541
    %3543 = vrot.lane.b32.xlu0 %v94, 125
    %v3544 = vpop.permute.xlu0 %3543
    %3545 = vrot.lane.b32.xlu0 %v95, 125
    %v3546 = vpop.permute.xlu0 %3545
    %3547 = vrot.lane.b32.xlu0 %v96, 125
    %v3548 = vpop.permute.xlu0 %3547
    %3549 = vrot.lane.b32.xlu0 %v97, 125
    %v3550 = vpop.permute.xlu0 %3549
    %3551 = vrot.lane.b32.xlu0 %v98, 125
    %v3552 = vpop.permute.xlu0 %3551
    %3553 = vrot.lane.b32.xlu0 %v99, 125
    %v3554 = vpop.permute.xlu0 %3553
    %3555 = vrot.lane.b32.xlu0 %v100, 125
    %v3556 = vpop.permute.xlu0 %3555
    %3557 = vrot.lane.b32.xlu0 %v101, 125
    %v3558 = vpop.permute.xlu0 %3557
    %3559 = vrot.lane.b32.xlu0 %v102, 125
    %v3560 = vpop.permute.xlu0 %3559
    %3561 = vrot.lane.b32.xlu0 %v103, 125
    %v3562 = vpop.permute.xlu0 %3561
    %3563 = vrot.lane.b32.xlu0 %v104, 125
    %v3564 = vpop.permute.xlu0 %3563
    %3565 = vrot.lane.b32.xlu0 %v105, 125
    %v3566 = vpop.permute.xlu0 %3565
    %3583 = vmatprep.subr.mxu0 0.0
    %3584 = vmatpush1.msra.mxu0 %v3536
    %3585 = vmatprep.subr.mxu0 0.0
    %3586 = vmatpush1.msra.mxu0 %v3538
    %3587 = vmatprep.subr.mxu0 0.0
    %3588 = vmatpush1.msra.mxu0 %v3540
    %3589 = vmatprep.subr.mxu0 0.0
    %3590 = vmatpush1.msra.mxu0 %v3542
    %3591 = vmatprep.subr.mxu0 0.0
    %3592 = vmatpush1.msra.mxu0 %v3544
    %3593 = vmatprep.subr.mxu0 0.0
    %3594 = vmatpush1.msra.mxu0 %v3546
    %3595 = vmatprep.subr.mxu0 0.0
    %3596 = vmatpush1.msra.mxu0 %v3548
    %3597 = vmatprep.subr.mxu0 0.0
    %3598 = vmatpush1.msra.mxu0 %v3550
    %3599 = vmatprep.subr.mxu0 0.0
    %3600 = vmatpush1.msra.mxu0 %v3552
    %3601 = vmatprep.subr.mxu0 0.0
    %3602 = vmatpush1.msra.mxu0 %v3554
    %3603 = vmatprep.subr.mxu0 0.0
    %3604 = vmatpush1.msra.mxu0 %v3556
    %3605 = vmatprep.subr.mxu0 0.0
    %3606 = vmatpush1.msra.mxu0 %v3558
    %3607 = vmatprep.subr.mxu0 0.0
    %3608 = vmatpush1.msra.mxu0 %v3560
    %3609 = vmatprep.subr.mxu0 0.0
    %3610 = vmatpush1.msra.mxu0 %v3562
    %3611 = vmatprep.subr.mxu0 0.0
    %3612 = vmatpush1.msra.mxu0 %v3564
    %3613 = vmatprep.subr.mxu0 0.0
    %3614 = vmatpush1.msra.mxu0 %v3566
    %3615 = vmatprep.subr.mxu0 0.0
    %3616 = vmatpush1.msra.mxu0 0.0
    %3617 = vmatprep.subr.mxu0 0.0
    %3618 = vmatpush1.msra.mxu0 0.0
    %3619 = vmatprep.subr.mxu0 0.0
    %3620 = vmatpush1.msra.mxu0 0.0
    %3621 = vmatprep.subr.mxu0 0.0
    %3622 = vmatpush1.msra.mxu0 0.0
    %3623 = vmatprep.subr.mxu0 0.0
    %3624 = vmatpush1.msra.mxu0 0.0
    %3625 = vmatprep.subr.mxu0 0.0
    %3626 = vmatpush1.msra.mxu0 0.0
    %3627 = vmatprep.subr.mxu0 0.0
    %3628 = vmatpush1.msra.mxu0 0.0
    %3629 = vmatprep.subr.mxu0 0.0
    %3630 = vmatpush1.msra.mxu0 0.0
    %3631 = vmatprep.subr.mxu0 0.0
    %3632 = vmatpush1.msra.mxu0 0.0
    %3633 = vmatprep.subr.mxu0 0.0
    %3634 = vmatpush1.msra.mxu0 0.0
    %3635 = vmatprep.subr.mxu0 0.0
    %3636 = vmatpush1.msra.mxu0 0.0
    %3637 = vmatprep.subr.mxu0 0.0
    %3638 = vmatpush1.msra.mxu0 0.0
    %3639 = vmatprep.subr.mxu0 0.0
    %3640 = vmatpush1.msra.mxu0 0.0
    %3641 = vmatprep.subr.mxu0 0.0
    %3642 = vmatpush1.msra.mxu0 0.0
    %3643 = vmatprep.subr.mxu0 0.0
    %3644 = vmatpush1.msra.mxu0 0.0
    %3645 = vmatprep.subr.mxu0 0.0
    %3646 = vmatpush1.msra.mxu0 0.0
    %3647 = vmatprep.mubr.f32.mxu0 0.0
    %3648 = vmatmul.mubr.f32.gmra.mrb[0].mxu0 %v3424
    %v3649 = vpop.f32.mrb[0].mxu0
    %v3650 = vadd.f32 0.0, %v3649
    %v3651 = vpop.f32.mrb[0].mxu0
    %3652 = vdwg.mxu0
    %v3654 = vsel %vm296, %v3650, 0
    %3656 = vmatprep.subr.mxu0 0.0
    %3657 = vmatpush1.msra.mxu0 %v3654
    %3658 = vmatprep.subr.mxu0 0.0
    %3659 = vmatpush1.msra.mxu0 0.0
    %3660 = vmatprep.subr.mxu0 0.0
    %3661 = vmatpush1.msra.mxu0 0.0
    %3662 = vmatprep.subr.mxu0 0.0
    %3663 = vmatpush1.msra.mxu0 0.0
    %3664 = vmatprep.subr.mxu0 0.0
    %3665 = vmatpush1.msra.mxu0 0.0
    %3666 = vmatprep.subr.mxu0 0.0
    %3667 = vmatpush1.msra.mxu0 0.0
    %3668 = vmatprep.subr.mxu0 0.0
    %3669 = vmatpush1.msra.mxu0 0.0
    %3670 = vmatprep.subr.mxu0 0.0
    %3671 = vmatpush1.msra.mxu0 0.0
    %3672 = vmatprep.subr.mxu0 0.0
    %3673 = vmatpush1.msra.mxu0 0.0
    %3674 = vmatprep.subr.mxu0 0.0
    %3675 = vmatpush1.msra.mxu0 0.0
    %3676 = vmatprep.subr.mxu0 0.0
    %3677 = vmatpush1.msra.mxu0 0.0
    %3678 = vmatprep.subr.mxu0 0.0
    %3679 = vmatpush1.msra.mxu0 0.0
    %3680 = vmatprep.subr.mxu0 0.0
    %3681 = vmatpush1.msra.mxu0 0.0
    %3682 = vmatprep.subr.mxu0 0.0
    %3683 = vmatpush1.msra.mxu0 0.0
    %3684 = vmatprep.subr.mxu0 0.0
    %3685 = vmatpush1.msra.mxu0 0.0
    %3686 = vmatprep.subr.mxu0 0.0
    %3687 = vmatpush1.msra.mxu0 0.0
    %3688 = vmatprep.subr.mxu0 0.0
    %3689 = vmatpush1.msra.mxu0 0.0
    %3690 = vmatprep.subr.mxu0 0.0
    %3691 = vmatpush1.msra.mxu0 0.0
    %3692 = vmatprep.subr.mxu0 0.0
    %3693 = vmatpush1.msra.mxu0 0.0
    %3694 = vmatprep.subr.mxu0 0.0
    %3695 = vmatpush1.msra.mxu0 0.0
    %3696 = vmatprep.subr.mxu0 0.0
    %3697 = vmatpush1.msra.mxu0 0.0
    %3698 = vmatprep.subr.mxu0 0.0
    %3699 = vmatpush1.msra.mxu0 0.0
    %3700 = vmatprep.subr.mxu0 0.0
    %3701 = vmatpush1.msra.mxu0 0.0
    %3702 = vmatprep.subr.mxu0 0.0
    %3703 = vmatpush1.msra.mxu0 0.0
    %3704 = vmatprep.subr.mxu0 0.0
    %3705 = vmatpush1.msra.mxu0 0.0
    %3706 = vmatprep.subr.mxu0 0.0
    %3707 = vmatpush1.msra.mxu0 0.0
    %3708 = vmatprep.subr.mxu0 0.0
    %3709 = vmatpush1.msra.mxu0 0.0
    %3710 = vmatprep.subr.mxu0 0.0
    %3711 = vmatpush1.msra.mxu0 0.0
    %3712 = vmatprep.subr.mxu0 0.0
    %3713 = vmatpush1.msra.mxu0 0.0
    %3714 = vmatprep.subr.mxu0 0.0
    %3715 = vmatpush1.msra.mxu0 0.0
    %3716 = vmatprep.subr.mxu0 0.0
    %3717 = vmatpush1.msra.mxu0 0.0
    %3718 = vmatprep.subr.mxu0 0.0
    %3719 = vmatpush1.msra.mxu0 0.0
    %3720 = vmatprep.mubr.f32.mxu0 0.0
    %3721 = vmatmul.mubr.f32.gmra.mrb[0].mxu0 %v2748
    %v3722 = vpop.f32.mrb[0].mxu0
    %v3723 = vadd.f32 %v3527, %v3722
    %v3724 = vpop.f32.mrb[0].mxu0
    %3725 = vmatprep.mubr.f32.mxu0 0.0
    %3726 = vmatmul.mubr.f32.gmra.mrb[0].mxu0 %v2751
    %v3727 = vpop.f32.mrb[0].mxu0
    %v3728 = vadd.f32 %v3533, %v3727
    %v3729 = vpop.f32.mrb[0].mxu0
    %3730 = vdwg.mxu0
    %3731 = vrot.lane.b32.xlu0 %v659, 125
    %v3732 = vpop.permute.xlu0 %3731
    %v3734 = vadd.f32 %v3723, %v3732
    %v3735 = vadd.f32 %v3728, %v3732
    %vm3736 = vcmp.gt.f32.partialorder %v3734, 0.0
    %vm3737 = vcmp.gt.f32.partialorder %v3735, 0.0
    %v3738 = vmul.f32 %v3734, 0.01
    %v3739 = vmul.f32 %v3735, 0.01
    %v3740 = vsel %vm3736, %v3734, %v3738
    %v3741 = vsel %vm3737, %v3735, %v3739
    %v3742 = vlaneseq
    %v3743 = vshrl.u32 %v3742, 7
    %v3744 = vsub.s32 5, %v3743
    %v3745 = vrot.slane %v88, %v3744
    %v3746 = vadd.f32 %v3525, %v3745
    %v3747 = vadd.f32 %v3531, %v3745
    %v3748 = vsel %vm675, %v3740, -inf
    %v3749 = vsel %vm2849, %v3741, -inf
    %v3750 = vmax.f32 %v3748, %v3749
    %v3751 = vrot.slane %v3750, 4
    %v3752 = vmax.f32 %v3750, %v3751
    %v3753 = vrot.slane %v3752, 2
    %v3754 = vmax.f32 %v3752, %v3753
    %v3755 = vrot.slane %v3754, 1
    %v3756 = vmax.f32 %v3754, %v3755
    %v3757 = vsub.f32 %v3740, %v3756
    %v3758 = vsub.f32 %v3741, %v3756
    %v3759 = vmul.f32 %v3757, 1.442695
    %v3760 = vpow.pop %v3759
    %v3761 = vmul.f32 %v3758, 1.442695
    %v3762 = vpow.pop %v3761
    %3764 = vset.pattern.permute.xlu0 0
    %3765 = vperm.xlu0 %3764, %v3760
    %v3766 = vpop.permute.xlu0 %3765
    %3769 = vset.pattern.permute.xlu0 0
    %3770 = vperm.xlu0 %3769, %v3762
    %v3771 = vpop.permute.xlu0 %3770
    %v3773 = vmul.f32 %v3746, %v3766
    %v3774 = vmul.f32 %v3747, %v3771
    %v3776 = vsel %vm296, %v3774, 0
    %v3778 = vsel %vm296, %v3762, 0
    %3780 = vmatprep.subr.mxu0 %v3760
    %3781 = vmatpush1.msra.mxu0 %v3773
    %3782 = vmatprep.subr.mxu0 %v3778
    %3783 = vmatpush1.msra.mxu0 %v3776
    %3784 = vmatprep.subr.mxu0 0.0
    %3785 = vmatpush1.msra.mxu0 0.0
    %3786 = vmatprep.subr.mxu0 0.0
    %3787 = vmatpush1.msra.mxu0 0.0
    %3788 = vmatprep.subr.mxu0 0.0
    %3789 = vmatpush1.msra.mxu0 0.0
    %3790 = vmatprep.subr.mxu0 0.0
    %3791 = vmatpush1.msra.mxu0 0.0
    %3792 = vmatprep.subr.mxu0 0.0
    %3793 = vmatpush1.msra.mxu0 0.0
    %3794 = vmatprep.subr.mxu0 0.0
    %3795 = vmatpush1.msra.mxu0 0.0
    %3796 = vmatprep.subr.mxu0 0.0
    %3797 = vmatpush1.msra.mxu0 0.0
    %3798 = vmatprep.subr.mxu0 0.0
    %3799 = vmatpush1.msra.mxu0 0.0
    %3800 = vmatprep.subr.mxu0 0.0
    %3801 = vmatpush1.msra.mxu0 0.0
    %3802 = vmatprep.subr.mxu0 0.0
    %3803 = vmatpush1.msra.mxu0 0.0
    %3804 = vmatprep.subr.mxu0 0.0
    %3805 = vmatpush1.msra.mxu0 0.0
    %3806 = vmatprep.subr.mxu0 0.0
    %3807 = vmatpush1.msra.mxu0 0.0
    %3808 = vmatprep.subr.mxu0 0.0
    %3809 = vmatpush1.msra.mxu0 0.0
    %3810 = vmatprep.subr.mxu0 0.0
    %3811 = vmatpush1.msra.mxu0 0.0
    %3812 = vmatprep.subr.mxu0 0.0
    %3813 = vmatpush1.msra.mxu0 0.0
    %3814 = vmatprep.subr.mxu0 0.0
    %3815 = vmatpush1.msra.mxu0 0.0
    %3816 = vmatprep.subr.mxu0 0.0
    %3817 = vmatpush1.msra.mxu0 0.0
    %3818 = vmatprep.subr.mxu0 0.0
    %3819 = vmatpush1.msra.mxu0 0.0
    %3820 = vmatprep.subr.mxu0 0.0
    %3821 = vmatpush1.msra.mxu0 0.0
    %3822 = vmatprep.subr.mxu0 0.0
    %3823 = vmatpush1.msra.mxu0 0.0
    %3824 = vmatprep.subr.mxu0 0.0
    %3825 = vmatpush1.msra.mxu0 0.0
    %3826 = vmatprep.subr.mxu0 0.0
    %3827 = vmatpush1.msra.mxu0 0.0
    %3828 = vmatprep.subr.mxu0 0.0
    %3829 = vmatpush1.msra.mxu0 0.0
    %3830 = vmatprep.subr.mxu0 0.0
    %3831 = vmatpush1.msra.mxu0 0.0
    %3832 = vmatprep.subr.mxu0 0.0
    %3833 = vmatpush1.msra.mxu0 0.0
    %3834 = vmatprep.subr.mxu0 0.0
    %3835 = vmatpush1.msra.mxu0 0.0
    %3836 = vmatprep.subr.mxu0 0.0
    %3837 = vmatpush1.msra.mxu0 0.0
    %3838 = vmatprep.subr.mxu0 0.0
    %3839 = vmatpush1.msra.mxu0 0.0
    %3840 = vmatprep.subr.mxu0 0.0
    %3841 = vmatpush1.msra.mxu0 0.0
    %3842 = vmatprep.subr.mxu0 0.0
    %3843 = vmatpush1.msra.mxu0 0.0
    %3844 = vmatprep.mubr.f32.mxu0 0.0
    %3845 = vmatmul.mubr.f32.gmra.mrb[0].mxu0 %v2443
    %v3846 = vpop.f32.mrb[0].mxu0
    %v3847 = vadd.f32 0.0, %v3846
    %v3848 = vpop.f32.mrb[0].mxu0
    %v3849 = vadd.f32 0.0, %v3848
    %3850 = vdwg.mxu0
    %vm3851 = vcmp.eq.f32.partialorder %v3849, 0.0
    %v3852 = vsel %vm3851, 1.0, %v3849
    %3854 = vset.pattern.permute.xlu0 0
    %3855 = vperm.xlu0 %3854, %v3852
    %v3856 = vpop.permute.xlu0 %3855
    %v3858 = vrcp.pop %v3856
    %v3859 = vmul.f32 %v3847, %v3858
    %vm3860 = vcmp.gt.f32.partialorder %v3859, 0.0
    %v3861 = vmin.f32 %v3859, 0.0
    %v3862 = vmul.f32 %v3861, 1.442695
    %v3863 = vpow.pop %v3862
    %v3864 = vsub.f32 %v3863, 1.0
    %v3865 = vsel %vm3860, %v3859, %v3864
    %s3866 = scalar_lea.vmem %s12, 2304
    %v3867 = vld [vmem:[%s3866] sm:$0xff]
    %v3868 = vld [vmem:[%s3866 + $0x8] sm:$0xff]
    %v3869 = vld [vmem:[%s3866 + $0x10] sm:$0xff]
    %v3870 = vld [vmem:[%s3866 + $0x18] sm:$0xff]
    %v3871 = vld [vmem:[%s3866 + $0x20] sm:$0xff]
    %v3872 = vld [vmem:[%s3866 + $0x28] sm:$0xff]
    %v3873 = vld [vmem:[%s3866 + $0x30] sm:$0xff]
    %v3874 = vld [vmem:[%s3866 + $0x38] sm:$0xff]
    %v3875 = vld [vmem:[%s3866 + $0x40] sm:$0xff]
    %v3876 = vld [vmem:[%s3866 + $0x48] sm:$0xff]
    %v3877 = vld [vmem:[%s3866 + $0x50] sm:$0xff]
    %v3878 = vld [vmem:[%s3866 + $0x58] sm:$0xff]
    %v3879 = vld [vmem:[%s3866 + $0x60] sm:$0xff]
    %v3880 = vld [vmem:[%s3866 + $0x68] sm:$0xff]
    %v3881 = vld [vmem:[%s3866 + $0x70] sm:$0xff]
    %v3882 = vld [vmem:[%s3866 + $0x78] sm:$0xff]
    %v3883 = vld [vmem:[%s3866 + $0x80] sm:$0xff]
    %v3884 = vld [vmem:[%s3866 + $0x88] sm:$0xff]
    %v3885 = vld [vmem:[%s3866 + $0x90] sm:$0xff]
    %v3886 = vld [vmem:[%s3866 + $0x98] sm:$0xff]
    %v3887 = vld [vmem:[%s3866 + $0xa0] sm:$0xff]
    %v3888 = vld [vmem:[%s3866 + $0xa8] sm:$0xff]
    %v3889 = vld [vmem:[%s3866 + $0xb0] sm:$0xff]
    %v3890 = vld [vmem:[%s3866 + $0xb8] sm:$0xff]
    %v3891 = vld [vmem:[%s3866 + $0xc0] sm:$0xff]
    %v3892 = vld [vmem:[%s3866 + $0xc8] sm:$0xff]
    %v3893 = vld [vmem:[%s3866 + $0xd0] sm:$0xff]
    %v3894 = vld [vmem:[%s3866 + $0xd8] sm:$0xff]
    %v3895 = vld [vmem:[%s3866 + $0xe0] sm:$0xff]
    %v3896 = vld [vmem:[%s3866 + $0xe8] sm:$0xff]
    %v3897 = vld [vmem:[%s3866 + $0xf0] sm:$0xff]
    %v3898 = vld [vmem:[%s3866 + $0xf8] sm:$0xff]
    %v3899 = vld [vmem:[%s3866 + $0x100] sm:$0xff]
    %v3900 = vld [vmem:[%s3866 + $0x108] sm:$0xff]
    %v3901 = vld [vmem:[%s3866 + $0x110] sm:$0xff]
    %v3902 = vld [vmem:[%s3866 + $0x118] sm:$0xff]
    %v3903 = vld [vmem:[%s3866 + $0x120] sm:$0xff]
    %v3904 = vld [vmem:[%s3866 + $0x128] sm:$0xff]
    %v3905 = vld [vmem:[%s3866 + $0x130] sm:$0xff]
    %v3906 = vld [vmem:[%s3866 + $0x138] sm:$0xff]
    %v3907 = vld [vmem:[%s3866 + $0x140] sm:$0xff]
    %v3908 = vld [vmem:[%s3866 + $0x148] sm:$0xff]
    %v3909 = vld [vmem:[%s3866 + $0x150] sm:$0xff]
    %v3910 = vld [vmem:[%s3866 + $0x158] sm:$0xff]
    %v3911 = vld [vmem:[%s3866 + $0x160] sm:$0xff]
    %v3912 = vld [vmem:[%s3866 + $0x168] sm:$0xff]
    %v3913 = vld [vmem:[%s3866 + $0x170] sm:$0xff]
    %v3914 = vld [vmem:[%s3866 + $0x178] sm:$0xff]
    %v3915 = vld [vmem:[%s3866 + $0x180] sm:$0xff]
    %v3916 = vld [vmem:[%s3866 + $0x188] sm:$0xff]
    %v3917 = vld [vmem:[%s3866 + $0x190] sm:$0xff]
    %v3918 = vld [vmem:[%s3866 + $0x198] sm:$0xff]
    %v3919 = vld [vmem:[%s3866 + $0x1a0] sm:$0xff]
    %v3920 = vld [vmem:[%s3866 + $0x1a8] sm:$0xff]
    %v3921 = vld [vmem:[%s3866 + $0x1b0] sm:$0xff]
    %v3922 = vld [vmem:[%s3866 + $0x1b8] sm:$0xff]
    %v3923 = vld [vmem:[%s3866 + $0x1c0] sm:$0xff]
    %v3924 = vld [vmem:[%s3866 + $0x1c8] sm:$0xff]
    %v3925 = vld [vmem:[%s3866 + $0x1d0] sm:$0xff]
    %v3926 = vld [vmem:[%s3866 + $0x1d8] sm:$0xff]
    %v3927 = vld [vmem:[%s3866 + $0x1e0] sm:$0xff]
    %v3928 = vld [vmem:[%s3866 + $0x1e8] sm:$0xff]
    %v3929 = vld [vmem:[%s3866 + $0x1f0] sm:$0xff]
    %v3930 = vld [vmem:[%s3866 + $0x1f8] sm:$0xff]
    %v3931 = vld [vmem:[%s3866 + $0x200] sm:$0xff]
    %v3932 = vld [vmem:[%s3866 + $0x208] sm:$0xff]
    %v3933 = vld [vmem:[%s3866 + $0x210] sm:$0xff]
    %v3934 = vld [vmem:[%s3866 + $0x218] sm:$0xff]
    %v3935 = vld [vmem:[%s3866 + $0x220] sm:$0xff]
    %v3936 = vld [vmem:[%s3866 + $0x228] sm:$0xff]
    %v3937 = vld [vmem:[%s3866 + $0x230] sm:$0xff]
    %v3938 = vld [vmem:[%s3866 + $0x238] sm:$0xff]
    %v3939 = vld [vmem:[%s3866 + $0x240] sm:$0xff]
    %v3940 = vld [vmem:[%s3866 + $0x248] sm:$0xff]
    %v3941 = vld [vmem:[%s3866 + $0x250] sm:$0xff]
    %v3942 = vld [vmem:[%s3866 + $0x258] sm:$0xff]
    %v3943 = vld [vmem:[%s3866 + $0x260] sm:$0xff]
    %v3944 = vld [vmem:[%s3866 + $0x268] sm:$0xff]
    %v3945 = vld [vmem:[%s3866 + $0x270] sm:$0xff]
    %v3946 = vld [vmem:[%s3866 + $0x278] sm:$0xff]
    %v3947 = vld [vmem:[%s3866 + $0x280] sm:$0xff]
    %v3948 = vld [vmem:[%s3866 + $0x288] sm:$0xff]
    %v3949 = vld [vmem:[%s3866 + $0x290] sm:$0xff]
    %v3950 = vld [vmem:[%s3866 + $0x298] sm:$0xff]
    %v3951 = vld [vmem:[%s3866 + $0x2a0] sm:$0xff]
    %v3952 = vld [vmem:[%s3866 + $0x2a8] sm:$0xff]
    %v3953 = vld [vmem:[%s3866 + $0x2b0] sm:$0xff]
    %v3954 = vld [vmem:[%s3866 + $0x2b8] sm:$0xff]
    %v3955 = vld [vmem:[%s3866 + $0x2c0] sm:$0xff]
    %v3956 = vld [vmem:[%s3866 + $0x2c8] sm:$0xff]
    %v3957 = vld [vmem:[%s3866 + $0x2d0] sm:$0xff]
    %v3958 = vld [vmem:[%s3866 + $0x2d8] sm:$0xff]
    %v3959 = vld [vmem:[%s3866 + $0x2e0] sm:$0xff]
    %v3960 = vld [vmem:[%s3866 + $0x2e8] sm:$0xff]
    %v3961 = vld [vmem:[%s3866 + $0x2f0] sm:$0xff]
    %v3962 = vld [vmem:[%s3866 + $0x2f8] sm:$0xff]
    %s3963 = scalar_lea.vmem %s19, 18
    %v3964 = vld [vmem:[%s3963] sm:$0x3f]
    %v3966 = vlaneseq
    %v3967 = vshrl.u32 %v3966, 7
    %v3968 = vsub.s32 0, %v3967
    %v3969 = vrot.slane %v3964, %v3968
    %v3970 = vlaneseq
    %v3971 = vshrl.u32 %v3970, 7
    %v3972 = vsub.s32 2, %v3971
    %v3973 = vrot.slane %v3964, %v3972
    %v3974 = vlaneseq
    %v3975 = vshrl.u32 %v3974, 7
    %v3976 = vsub.s32 4, %v3975
    %v3977 = vrot.slane %v3964, %v3976
    %v3981 = vlaneseq
    %v3982 = vshrl.u32 %v3981, 7
    %v3983 = vsub.s32 0, %v3982
    %v3984 = vrot.slane %v3969, %v3983
    %v3985 = vlaneseq
    %v3986 = vshrl.u32 %v3985, 7
    %v3987 = vsub.s32 0, %v3986
    %v3988 = vrot.slane %v3973, %v3987
    %v3989 = vlaneseq
    %v3990 = vshrl.u32 %v3989, 7
    %v3991 = vsub.s32 0, %v3990
    %v3992 = vrot.slane %v3977, %v3991
    %3993 = vmatprep.subr.mxu0 %v3868
    %3994 = vmatpush1.msra.mxu0 %v3867
    %3995 = vmatprep.subr.mxu0 %v3871
    %3996 = vmatpush1.msra.mxu0 %v3870
    %3997 = vmatprep.subr.mxu0 %v3874
    %3998 = vmatpush1.msra.mxu0 %v3873
    %3999 = vmatprep.subr.mxu0 %v3877
    %4000 = vmatpush1.msra.mxu0 %v3876
    %4001 = vmatprep.subr.mxu0 %v3880
    %4002 = vmatpush1.msra.mxu0 %v3879
    %4003 = vmatprep.subr.mxu0 %v3883
    %4004 = vmatpush1.msra.mxu0 %v3882
    %4005 = vmatprep.subr.mxu0 %v3886
    %4006 = vmatpush1.msra.mxu0 %v3885
    %4007 = vmatprep.subr.mxu0 %v3889
    %4008 = vmatpush1.msra.mxu0 %v3888
    %4009 = vmatprep.subr.mxu0 %v3892
    %4010 = vmatpush1.msra.mxu0 %v3891
    %4011 = vmatprep.subr.mxu0 %v3895
    %4012 = vmatpush1.msra.mxu0 %v3894
    %4013 = vmatprep.subr.mxu0 %v3898
    %4014 = vmatpush1.msra.mxu0 %v3897
    %4015 = vmatprep.subr.mxu0 %v3901
    %4016 = vmatpush1.msra.mxu0 %v3900
    %4017 = vmatprep.subr.mxu0 %v3904
    %4018 = vmatpush1.msra.mxu0 %v3903
    %4019 = vmatprep.subr.mxu0 %v3907
    %4020 = vmatpush1.msra.mxu0 %v3906
    %4021 = vmatprep.subr.mxu0 %v3910
    %4022 = vmatpush1.msra.mxu0 %v3909
    %4023 = vmatprep.subr.mxu0 %v3913
    %4024 = vmatpush1.msra.mxu0 %v3912
    %4025 = vmatprep.subr.mxu0 0.0
    %4026 = vmatpush1.msra.mxu0 0.0
    %4027 = vmatprep.subr.mxu0 0.0
    %4028 = vmatpush1.msra.mxu0 0.0
    %4029 = vmatprep.subr.mxu0 0.0
    %4030 = vmatpush1.msra.mxu0 0.0
    %4031 = vmatprep.subr.mxu0 0.0
    %4032 = vmatpush1.msra.mxu0 0.0
    %4033 = vmatprep.subr.mxu0 0.0
    %4034 = vmatpush1.msra.mxu0 0.0
    %4035 = vmatprep.subr.mxu0 0.0
    %4036 = vmatpush1.msra.mxu0 0.0
    %4037 = vmatprep.subr.mxu0 0.0
    %4038 = vmatpush1.msra.mxu0 0.0
    %4039 = vmatprep.subr.mxu0 0.0
    %4040 = vmatpush1.msra.mxu0 0.0
    %4041 = vmatprep.subr.mxu0 0.0
    %4042 = vmatpush1.msra.mxu0 0.0
    %4043 = vmatprep.subr.mxu0 0.0
    %4044 = vmatpush1.msra.mxu0 0.0
    %4045 = vmatprep.subr.mxu0 0.0
    %4046 = vmatpush1.msra.mxu0 0.0
    %4047 = vmatprep.subr.mxu0 0.0
    %4048 = vmatpush1.msra.mxu0 0.0
    %4049 = vmatprep.subr.mxu0 0.0
    %4050 = vmatpush1.msra.mxu0 0.0
    %4051 = vmatprep.subr.mxu0 0.0
    %4052 = vmatpush1.msra.mxu0 0.0
    %4053 = vmatprep.subr.mxu0 0.0
    %4054 = vmatpush1.msra.mxu0 0.0
    %4055 = vmatprep.subr.mxu0 0.0
    %4056 = vmatpush1.msra.mxu0 0.0
    %4057 = vmatprep.mubr.f32.mxu0 0.0
    %4058 = vmatmul.mubr.f32.gmra.mrb[0].mxu0 %v3865
    %v4059 = vpop.f32.mrb[0].mxu0
    %v4060 = vadd.f32 %v3984, %v4059
    %v4061 = vpop.f32.mrb[0].mxu0
    %v4062 = vadd.f32 %v3988, %v4061
    %4063 = vdwg.mxu0
    %4064 = vmatprep.subr.mxu0 0.0
    %4065 = vmatpush1.msra.mxu0 %v3869
    %4066 = vmatprep.subr.mxu0 0.0
    %4067 = vmatpush1.msra.mxu0 %v3872
    %4068 = vmatprep.subr.mxu0 0.0
    %4069 = vmatpush1.msra.mxu0 %v3875
    %4070 = vmatprep.subr.mxu0 0.0
    %4071 = vmatpush1.msra.mxu0 %v3878
    %4072 = vmatprep.subr.mxu0 0.0
    %4073 = vmatpush1.msra.mxu0 %v3881
    %4074 = vmatprep.subr.mxu0 0.0
    %4075 = vmatpush1.msra.mxu0 %v3884
    %4076 = vmatprep.subr.mxu0 0.0
    %4077 = vmatpush1.msra.mxu0 %v3887
    %4078 = vmatprep.subr.mxu0 0.0
    %4079 = vmatpush1.msra.mxu0 %v3890
    %4080 = vmatprep.subr.mxu0 0.0
    %4081 = vmatpush1.msra.mxu0 %v3893
    %4082 = vmatprep.subr.mxu0 0.0
    %4083 = vmatpush1.msra.mxu0 %v3896
    %4084 = vmatprep.subr.mxu0 0.0
    %4085 = vmatpush1.msra.mxu0 %v3899
    %4086 = vmatprep.subr.mxu0 0.0
    %4087 = vmatpush1.msra.mxu0 %v3902
    %4088 = vmatprep.subr.mxu0 0.0
    %4089 = vmatpush1.msra.mxu0 %v3905
    %4090 = vmatprep.subr.mxu0 0.0
    %4091 = vmatpush1.msra.mxu0 %v3908
    %4092 = vmatprep.subr.mxu0 0.0
    %4093 = vmatpush1.msra.mxu0 %v3911
    %4094 = vmatprep.subr.mxu0 0.0
    %4095 = vmatpush1.msra.mxu0 %v3914
    %4096 = vmatprep.subr.mxu0 0.0
    %4097 = vmatpush1.msra.mxu0 0.0
    %4098 = vmatprep.subr.mxu0 0.0
    %4099 = vmatpush1.msra.mxu0 0.0
    %4100 = vmatprep.subr.mxu0 0.0
    %4101 = vmatpush1.msra.mxu0 0.0
    %4102 = vmatprep.subr.mxu0 0.0
    %4103 = vmatpush1.msra.mxu0 0.0
    %4104 = vmatprep.subr.mxu0 0.0
    %4105 = vmatpush1.msra.mxu0 0.0
    %4106 = vmatprep.subr.mxu0 0.0
    %4107 = vmatpush1.msra.mxu0 0.0
    %4108 = vmatprep.subr.mxu0 0.0
    %4109 = vmatpush1.msra.mxu0 0.0
    %4110 = vmatprep.subr.mxu0 0.0
    %4111 = vmatpush1.msra.mxu0 0.0
    %4112 = vmatprep.subr.mxu0 0.0
    %4113 = vmatpush1.msra.mxu0 0.0
    %4114 = vmatprep.subr.mxu0 0.0
    %4115 = vmatpush1.msra.mxu0 0.0
    %4116 = vmatprep.subr.mxu0 0.0
    %4117 = vmatpush1.msra.mxu0 0.0
    %4118 = vmatprep.subr.mxu0 0.0
    %4119 = vmatpush1.msra.mxu0 0.0
    %4120 = vmatprep.subr.mxu0 0.0
    %4121 = vmatpush1.msra.mxu0 0.0
    %4122 = vmatprep.subr.mxu0 0.0
    %4123 = vmatpush1.msra.mxu0 0.0
    %4124 = vmatprep.subr.mxu0 0.0
    %4125 = vmatpush1.msra.mxu0 0.0
    %4126 = vmatprep.subr.mxu0 0.0
    %4127 = vmatpush1.msra.mxu0 0.0
    %4128 = vmatprep.mubr.f32.mxu0 0.0
    %4129 = vmatmul.mubr.f32.gmra.mrb[0].mxu0 %v3865
    %v4130 = vpop.f32.mrb[0].mxu0
    %v4131 = vadd.f32 %v3992, %v4130
    %v4132 = vpop.f32.mrb[0].mxu0
    %4133 = vdwg.mxu0
    %v4134 = vlaneseq
    %v4135 = vshrl.u32 %v4134, 7
    %v4136 = vsub.s32 1, %v4135
    %v4137 = vrot.slane %v3964, %v4136
    %v4138 = vlaneseq
    %v4139 = vshrl.u32 %v4138, 7
    %v4140 = vsub.s32 3, %v4139
    %v4141 = vrot.slane %v3964, %v4140
    %v4142 = vlaneseq
    %v4143 = vshrl.u32 %v4142, 7
    %v4144 = vsub.s32 5, %v4143
    %v4145 = vrot.slane %v3964, %v4144
    %v4149 = vlaneseq
    %v4150 = vshrl.u32 %v4149, 7
    %v4151 = vsub.s32 1, %v4150
    %v4152 = vrot.slane %v4137, %v4151
    %v4153 = vlaneseq
    %v4154 = vshrl.u32 %v4153, 7
    %v4155 = vsub.s32 1, %v4154
    %v4156 = vrot.slane %v4141, %v4155
    %v4157 = vlaneseq
    %v4158 = vshrl.u32 %v4157, 7
    %v4159 = vsub.s32 1, %v4158
    %v4160 = vrot.slane %v4145, %v4159
    %4161 = vmatprep.subr.mxu0 %v3916
    %4162 = vmatpush1.msra.mxu0 %v3915
    %4163 = vmatprep.subr.mxu0 %v3919
    %4164 = vmatpush1.msra.mxu0 %v3918
    %4165 = vmatprep.subr.mxu0 %v3922
    %4166 = vmatpush1.msra.mxu0 %v3921
    %4167 = vmatprep.subr.mxu0 %v3925
    %4168 = vmatpush1.msra.mxu0 %v3924
    %4169 = vmatprep.subr.mxu0 %v3928
    %4170 = vmatpush1.msra.mxu0 %v3927
    %4171 = vmatprep.subr.mxu0 %v3931
    %4172 = vmatpush1.msra.mxu0 %v3930
    %4173 = vmatprep.subr.mxu0 %v3934
    %4174 = vmatpush1.msra.mxu0 %v3933
    %4175 = vmatprep.subr.mxu0 %v3937
    %4176 = vmatpush1.msra.mxu0 %v3936
    %4177 = vmatprep.subr.mxu0 %v3940
    %4178 = vmatpush1.msra.mxu0 %v3939
    %4179 = vmatprep.subr.mxu0 %v3943
    %4180 = vmatpush1.msra.mxu0 %v3942
    %4181 = vmatprep.subr.mxu0 %v3946
    %4182 = vmatpush1.msra.mxu0 %v3945
    %4183 = vmatprep.subr.mxu0 %v3949
    %4184 = vmatpush1.msra.mxu0 %v3948
    %4185 = vmatprep.subr.mxu0 %v3952
    %4186 = vmatpush1.msra.mxu0 %v3951
    %4187 = vmatprep.subr.mxu0 %v3955
    %4188 = vmatpush1.msra.mxu0 %v3954
    %4189 = vmatprep.subr.mxu0 %v3958
    %4190 = vmatpush1.msra.mxu0 %v3957
    %4191 = vmatprep.subr.mxu0 %v3961
    %4192 = vmatpush1.msra.mxu0 %v3960
    %4193 = vmatprep.subr.mxu0 0.0
    %4194 = vmatpush1.msra.mxu0 0.0
    %4195 = vmatprep.subr.mxu0 0.0
    %4196 = vmatpush1.msra.mxu0 0.0
    %4197 = vmatprep.subr.mxu0 0.0
    %4198 = vmatpush1.msra.mxu0 0.0
    %4199 = vmatprep.subr.mxu0 0.0
    %4200 = vmatpush1.msra.mxu0 0.0
    %4201 = vmatprep.subr.mxu0 0.0
    %4202 = vmatpush1.msra.mxu0 0.0
    %4203 = vmatprep.subr.mxu0 0.0
    %4204 = vmatpush1.msra.mxu0 0.0
    %4205 = vmatprep.subr.mxu0 0.0
    %4206 = vmatpush1.msra.mxu0 0.0
    %4207 = vmatprep.subr.mxu0 0.0
    %4208 = vmatpush1.msra.mxu0 0.0
    %4209 = vmatprep.subr.mxu0 0.0
    %4210 = vmatpush1.msra.mxu0 0.0
    %4211 = vmatprep.subr.mxu0 0.0
    %4212 = vmatpush1.msra.mxu0 0.0
    %4213 = vmatprep.subr.mxu0 0.0
    %4214 = vmatpush1.msra.mxu0 0.0
    %4215 = vmatprep.subr.mxu0 0.0
    %4216 = vmatpush1.msra.mxu0 0.0
    %4217 = vmatprep.subr.mxu0 0.0
    %4218 = vmatpush1.msra.mxu0 0.0
    %4219 = vmatprep.subr.mxu0 0.0
    %4220 = vmatpush1.msra.mxu0 0.0
    %4221 = vmatprep.subr.mxu0 0.0
    %4222 = vmatpush1.msra.mxu0 0.0
    %4223 = vmatprep.subr.mxu0 0.0
    %4224 = vmatpush1.msra.mxu0 0.0
    %4225 = vmatprep.mubr.f32.mxu0 0.0
    %4226 = vmatmul.mubr.f32.gmra.mrb[0].mxu0 %v3423
    %v4227 = vpop.f32.mrb[0].mxu0
    %v4228 = vadd.f32 %v4152, %v4227
    %v4229 = vpop.f32.mrb[0].mxu0
    %v4230 = vadd.f32 %v4156, %v4229
    %4231 = vdwg.mxu0
    %4232 = vmatprep.subr.mxu0 0.0
    %4233 = vmatpush1.msra.mxu0 %v3917
    %4234 = vmatprep.subr.mxu0 0.0
    %4235 = vmatpush1.msra.mxu0 %v3920
    %4236 = vmatprep.subr.mxu0 0.0
    %4237 = vmatpush1.msra.mxu0 %v3923
    %4238 = vmatprep.subr.mxu0 0.0
    %4239 = vmatpush1.msra.mxu0 %v3926
    %4240 = vmatprep.subr.mxu0 0.0
    %4241 = vmatpush1.msra.mxu0 %v3929
    %4242 = vmatprep.subr.mxu0 0.0
    %4243 = vmatpush1.msra.mxu0 %v3932
    %4244 = vmatprep.subr.mxu0 0.0
    %4245 = vmatpush1.msra.mxu0 %v3935
    %4246 = vmatprep.subr.mxu0 0.0
    %4247 = vmatpush1.msra.mxu0 %v3938
    %4248 = vmatprep.subr.mxu0 0.0
    %4249 = vmatpush1.msra.mxu0 %v3941
    %4250 = vmatprep.subr.mxu0 0.0
    %4251 = vmatpush1.msra.mxu0 %v3944
    %4252 = vmatprep.subr.mxu0 0.0
    %4253 = vmatpush1.msra.mxu0 %v3947
    %4254 = vmatprep.subr.mxu0 0.0
    %4255 = vmatpush1.msra.mxu0 %v3950
    %4256 = vmatprep.subr.mxu0 0.0
    %4257 = vmatpush1.msra.mxu0 %v3953
    %4258 = vmatprep.subr.mxu0 0.0
    %4259 = vmatpush1.msra.mxu0 %v3956
    %4260 = vmatprep.subr.mxu0 0.0
    %4261 = vmatpush1.msra.mxu0 %v3959
    %4262 = vmatprep.subr.mxu0 0.0
    %4263 = vmatpush1.msra.mxu0 %v3962
    %4264 = vmatprep.subr.mxu0 0.0
    %4265 = vmatpush1.msra.mxu0 0.0
    %4266 = vmatprep.subr.mxu0 0.0
    %4267 = vmatpush1.msra.mxu0 0.0
    %4268 = vmatprep.subr.mxu0 0.0
    %4269 = vmatpush1.msra.mxu0 0.0
    %4270 = vmatprep.subr.mxu0 0.0
    %4271 = vmatpush1.msra.mxu0 0.0
    %4272 = vmatprep.subr.mxu0 0.0
    %4273 = vmatpush1.msra.mxu0 0.0
    %4274 = vmatprep.subr.mxu0 0.0
    %4275 = vmatpush1.msra.mxu0 0.0
    %4276 = vmatprep.subr.mxu0 0.0
    %4277 = vmatpush1.msra.mxu0 0.0
    %4278 = vmatprep.subr.mxu0 0.0
    %4279 = vmatpush1.msra.mxu0 0.0
    %4280 = vmatprep.subr.mxu0 0.0
    %4281 = vmatpush1.msra.mxu0 0.0
    %4282 = vmatprep.subr.mxu0 0.0
    %4283 = vmatpush1.msra.mxu0 0.0
    %4284 = vmatprep.subr.mxu0 0.0
    %4285 = vmatpush1.msra.mxu0 0.0
    %4286 = vmatprep.subr.mxu0 0.0
    %4287 = vmatpush1.msra.mxu0 0.0
    %4288 = vmatprep.subr.mxu0 0.0
    %4289 = vmatpush1.msra.mxu0 0.0
    %4290 = vmatprep.subr.mxu0 0.0
    %4291 = vmatpush1.msra.mxu0 0.0
    %4292 = vmatprep.subr.mxu0 0.0
    %4293 = vmatpush1.msra.mxu0 0.0
    %4294 = vmatprep.subr.mxu0 0.0
    %4295 = vmatpush1.msra.mxu0 0.0
    %4296 = vmatprep.mubr.f32.mxu0 0.0
    %4297 = vmatmul.mubr.f32.gmra.mrb[0].mxu0 %v3423
    %v4298 = vpop.f32.mrb[0].mxu0
    %v4299 = vadd.f32 %v4160, %v4298
    %v4300 = vpop.f32.mrb[0].mxu0
    %4301 = vdwg.mxu0
    %v4302 = vadd.f32 %v4060, %v4228
    %v4303 = vxor.u32 %v4302, 2147483648
    %v4304 = vmul.f32 %v4303, 1.442695
    %v4305 = vpow.pop %v4304
    %v4306 = vadd.f32 %v4305, 1.0
    %v4307 = vrcp.pop %v4306
    %v4308 = vmul.f32 1.0, %v4307
    %v4309 = vadd.f32 %v4062, %v4230
    %v4310 = vxor.u32 %v4309, 2147483648
    %v4311 = vmul.f32 %v4310, 1.442695
    %v4312 = vpow.pop %v4311
    %v4313 = vadd.f32 %v4312, 1.0
    %v4314 = vrcp.pop %v4313
    %v4315 = vmul.f32 1.0, %v4314
    %v4316 = vmul.f32 %v4308, %v4299
    %v4317 = vadd.f32 %v4131, %v4316
    %v4318 = vtanh.pop %v4317
    %v4319 = vsub.f32 1.0, %v4315
    %v4320 = vmul.f32 %v4319, %v4318
    %v4321 = vmul.f32 %v4315, %v3423
    %v4322 = vadd.f32 %v4320, %v4321
    %v4323 = vld [vmem:[%s5] sm:$0x3]
    %v4324 = vld [vmem:[%s13] sm:$0xff]
    %v4325 = vld [vmem:[%s13 + $0x8] sm:$0xff]
    %v4326 = vld [vmem:[%s13 + $0x10] sm:$0xff]
    %v4327 = vld [vmem:[%s13 + $0x18] sm:$0xff]
    %v4328 = vlaneseq
    %v4329 = vshrl.u32 %v4328, 7
    %v4330 = vsub.s32 6, %v4329
    %v4331 = vrot.slane %v88, %v4330
    %vm4332 = vcmask 261120
    %v4334 = vsel %vm4332, %v4323, 0
    %4336 = vmatprep.subr.mxu0 0.0
    %4337 = vmatpush1.msra.mxu0 %v4324
    %4338 = vmatprep.subr.mxu0 0.0
    %4339 = vmatpush1.msra.mxu0 %v4325
    %4340 = vmatprep.subr.mxu0 0.0
    %4341 = vmatpush1.msra.mxu0 %v4326
    %4342 = vmatprep.subr.mxu0 0.0
    %4343 = vmatpush1.msra.mxu0 %v4327
    %4344 = vmatprep.subr.mxu0 0.0
    %4345 = vmatpush1.msra.mxu0 0.0
    %4346 = vmatprep.subr.mxu0 0.0
    %4347 = vmatpush1.msra.mxu0 0.0
    %4348 = vmatprep.subr.mxu0 0.0
    %4349 = vmatpush1.msra.mxu0 0.0
    %4350 = vmatprep.subr.mxu0 0.0
    %4351 = vmatpush1.msra.mxu0 0.0
    %4352 = vmatprep.subr.mxu0 0.0
    %4353 = vmatpush1.msra.mxu0 0.0
    %4354 = vmatprep.subr.mxu0 0.0
    %4355 = vmatpush1.msra.mxu0 0.0
    %4356 = vmatprep.subr.mxu0 0.0
    %4357 = vmatpush1.msra.mxu0 0.0
    %4358 = vmatprep.subr.mxu0 0.0
    %4359 = vmatpush1.msra.mxu0 0.0
    %4360 = vmatprep.subr.mxu0 0.0
    %4361 = vmatpush1.msra.mxu0 0.0
    %4362 = vmatprep.subr.mxu0 0.0
    %4363 = vmatpush1.msra.mxu0 0.0
    %4364 = vmatprep.subr.mxu0 0.0
    %4365 = vmatpush1.msra.mxu0 0.0
    %4366 = vmatprep.subr.mxu0 0.0
    %4367 = vmatpush1.msra.mxu0 0.0
    %4368 = vmatprep.subr.mxu0 0.0
    %4369 = vmatpush1.msra.mxu0 0.0
    %4370 = vmatprep.subr.mxu0 0.0
    %4371 = vmatpush1.msra.mxu0 0.0
    %4372 = vmatprep.subr.mxu0 0.0
    %4373 = vmatpush1.msra.mxu0 0.0
    %4374 = vmatprep.subr.mxu0 0.0
    %4375 = vmatpush1.msra.mxu0 0.0
    %4376 = vmatprep.subr.mxu0 0.0
    %4377 = vmatpush1.msra.mxu0 0.0
    %4378 = vmatprep.subr.mxu0 0.0
    %4379 = vmatpush1.msra.mxu0 0.0
    %4380 = vmatprep.subr.mxu0 0.0
    %4381 = vmatpush1.msra.mxu0 0.0
    %4382 = vmatprep.subr.mxu0 0.0
    %4383 = vmatpush1.msra.mxu0 0.0
    %4384 = vmatprep.subr.mxu0 0.0
    %4385 = vmatpush1.msra.mxu0 0.0
    %4386 = vmatprep.subr.mxu0 0.0
    %4387 = vmatpush1.msra.mxu0 0.0
    %4388 = vmatprep.subr.mxu0 0.0
    %4389 = vmatpush1.msra.mxu0 0.0
    %4390 = vmatprep.subr.mxu0 0.0
    %4391 = vmatpush1.msra.mxu0 0.0
    %4392 = vmatprep.subr.mxu0 0.0
    %4393 = vmatpush1.msra.mxu0 0.0
    %4394 = vmatprep.subr.mxu0 0.0
    %4395 = vmatpush1.msra.mxu0 0.0
    %4396 = vmatprep.subr.mxu0 0.0
    %4397 = vmatpush1.msra.mxu0 0.0
    %4398 = vmatprep.subr.mxu0 0.0
    %4399 = vmatpush1.msra.mxu0 0.0
    %4400 = vmatprep.mubr.f32.mxu0 0.0
    %4401 = vmatmul.mubr.f32.gmra.mrb[0].mxu0 %v4334
    %v4402 = vpop.f32.mrb[0].mxu0
    %v4403 = vadd.f32 %v4331, %v4402
    %v4404 = vpop.f32.mrb[0].mxu0
    %4405 = vdwg.mxu0
    %v4406 = vmax.f32 %v4403, 0.0
    %v4407 = vld [vmem:[%s14] sm:$0xff]
    %v4408 = vld [vmem:[%s14 + $0x8] sm:$0xff]
    %v4409 = vld [vmem:[%s14 + $0x10] sm:$0xff]
    %v4410 = vld [vmem:[%s14 + $0x18] sm:$0xff]
    %v4411 = vld [vmem:[%s14 + $0x20] sm:$0xff]
    %v4412 = vld [vmem:[%s14 + $0x28] sm:$0xff]
    %v4413 = vld [vmem:[%s14 + $0x30] sm:$0xff]
    %v4414 = vld [vmem:[%s14 + $0x38] sm:$0xff]
    %v4415 = vld [vmem:[%s14 + $0x40] sm:$0xff]
    %v4416 = vld [vmem:[%s14 + $0x48] sm:$0xff]
    %v4417 = vld [vmem:[%s14 + $0x50] sm:$0xff]
    %v4418 = vld [vmem:[%s14 + $0x58] sm:$0xff]
    %v4419 = vld [vmem:[%s14 + $0x60] sm:$0xff]
    %v4420 = vld [vmem:[%s14 + $0x68] sm:$0xff]
    %v4421 = vld [vmem:[%s14 + $0x70] sm:$0xff]
    %v4422 = vld [vmem:[%s14 + $0x78] sm:$0xff]
    %v4423 = vlaneseq
    %v4424 = vshrl.u32 %v4423, 7
    %v4425 = vsub.s32 7, %v4424
    %v4426 = vrot.slane %v88, %v4425
    %4427 = vmatprep.subr.mxu0 0.0
    %4428 = vmatpush1.msra.mxu0 %v4407
    %4429 = vmatprep.subr.mxu0 0.0
    %4430 = vmatpush1.msra.mxu0 %v4408
    %4431 = vmatprep.subr.mxu0 0.0
    %4432 = vmatpush1.msra.mxu0 %v4409
    %4433 = vmatprep.subr.mxu0 0.0
    %4434 = vmatpush1.msra.mxu0 %v4410
    %4435 = vmatprep.subr.mxu0 0.0
    %4436 = vmatpush1.msra.mxu0 %v4411
    %4437 = vmatprep.subr.mxu0 0.0
    %4438 = vmatpush1.msra.mxu0 %v4412
    %4439 = vmatprep.subr.mxu0 0.0
    %4440 = vmatpush1.msra.mxu0 %v4413
    %4441 = vmatprep.subr.mxu0 0.0
    %4442 = vmatpush1.msra.mxu0 %v4414
    %4443 = vmatprep.subr.mxu0 0.0
    %4444 = vmatpush1.msra.mxu0 %v4415
    %4445 = vmatprep.subr.mxu0 0.0
    %4446 = vmatpush1.msra.mxu0 %v4416
    %4447 = vmatprep.subr.mxu0 0.0
    %4448 = vmatpush1.msra.mxu0 %v4417
    %4449 = vmatprep.subr.mxu0 0.0
    %4450 = vmatpush1.msra.mxu0 %v4418
    %4451 = vmatprep.subr.mxu0 0.0
    %4452 = vmatpush1.msra.mxu0 %v4419
    %4453 = vmatprep.subr.mxu0 0.0
    %4454 = vmatpush1.msra.mxu0 %v4420
    %4455 = vmatprep.subr.mxu0 0.0
    %4456 = vmatpush1.msra.mxu0 %v4421
    %4457 = vmatprep.subr.mxu0 0.0
    %4458 = vmatpush1.msra.mxu0 %v4422
    %4459 = vmatprep.subr.mxu0 0.0
    %4460 = vmatpush1.msra.mxu0 0.0
    %4461 = vmatprep.subr.mxu0 0.0
    %4462 = vmatpush1.msra.mxu0 0.0
    %4463 = vmatprep.subr.mxu0 0.0
    %4464 = vmatpush1.msra.mxu0 0.0
    %4465 = vmatprep.subr.mxu0 0.0
    %4466 = vmatpush1.msra.mxu0 0.0
    %4467 = vmatprep.subr.mxu0 0.0
    %4468 = vmatpush1.msra.mxu0 0.0
    %4469 = vmatprep.subr.mxu0 0.0
    %4470 = vmatpush1.msra.mxu0 0.0
    %4471 = vmatprep.subr.mxu0 0.0
    %4472 = vmatpush1.msra.mxu0 0.0
    %4473 = vmatprep.subr.mxu0 0.0
    %4474 = vmatpush1.msra.mxu0 0.0
    %4475 = vmatprep.subr.mxu0 0.0
    %4476 = vmatpush1.msra.mxu0 0.0
    %4477 = vmatprep.subr.mxu0 0.0
    %4478 = vmatpush1.msra.mxu0 0.0
    %4479 = vmatprep.subr.mxu0 0.0
    %4480 = vmatpush1.msra.mxu0 0.0
    %4481 = vmatprep.subr.mxu0 0.0
    %4482 = vmatpush1.msra.mxu0 0.0
    %4483 = vmatprep.subr.mxu0 0.0
    %4484 = vmatpush1.msra.mxu0 0.0
    %4485 = vmatprep.subr.mxu0 0.0
    %4486 = vmatpush1.msra.mxu0 0.0
    %4487 = vmatprep.subr.mxu0 0.0
    %4488 = vmatpush1.msra.mxu0 0.0
    %4489 = vmatprep.subr.mxu0 0.0
    %4490 = vmatpush1.msra.mxu0 0.0
    %4491 = vmatprep.mubr.f32.mxu0 0.0
    %4492 = vmatmul.mubr.f32.gmra.mrb[0].mxu0 %v4406
    %v4493 = vpop.f32.mrb[0].mxu0
    %v4494 = vadd.f32 %v4426, %v4493
    %v4495 = vpop.f32.mrb[0].mxu0
    %4496 = vdwg.mxu0
    %v4497 = vmax.f32 %v4494, 0.0
    %v4498 = vld [vmem:[%s15] sm:$0xff]
    %v4499 = vld [vmem:[%s15 + $0x8] sm:$0xff]
    %v4500 = vld [vmem:[%s15 + $0x10] sm:$0xff]
    %v4501 = vld [vmem:[%s15 + $0x18] sm:$0xff]
    %v4502 = vld [vmem:[%s15 + $0x20] sm:$0xff]
    %v4503 = vld [vmem:[%s15 + $0x28] sm:$0xff]
    %v4504 = vld [vmem:[%s15 + $0x30] sm:$0xff]
    %v4505 = vld [vmem:[%s15 + $0x38] sm:$0xff]
    %v4506 = vld [vmem:[%s15 + $0x40] sm:$0xff]
    %v4507 = vld [vmem:[%s15 + $0x48] sm:$0xff]
    %v4508 = vld [vmem:[%s15 + $0x50] sm:$0xff]
    %v4509 = vld [vmem:[%s15 + $0x58] sm:$0xff]
    %v4510 = vld [vmem:[%s15 + $0x60] sm:$0xff]
    %v4511 = vld [vmem:[%s15 + $0x68] sm:$0xff]
    %v4512 = vld [vmem:[%s15 + $0x70] sm:$0xff]
    %v4513 = vld [vmem:[%s15 + $0x78] sm:$0xff]
    %v4514 = vld [vmem:[%s15 + $0x80] sm:$0xff]
    %v4515 = vld [vmem:[%s15 + $0x88] sm:$0xff]
    %v4516 = vld [vmem:[%s15 + $0x90] sm:$0xff]
    %v4517 = vld [vmem:[%s15 + $0x98] sm:$0xff]
    %v4518 = vld [vmem:[%s15 + $0xa0] sm:$0xff]
    %v4519 = vld [vmem:[%s15 + $0xa8] sm:$0xff]
    %v4520 = vld [vmem:[%s15 + $0xb0] sm:$0xff]
    %v4521 = vld [vmem:[%s15 + $0xb8] sm:$0xff]
    %v4522 = vld [vmem:[%s15 + $0xc0] sm:$0xff]
    %v4523 = vld [vmem:[%s15 + $0xc8] sm:$0xff]
    %v4524 = vld [vmem:[%s15 + $0xd0] sm:$0xff]
    %v4525 = vld [vmem:[%s15 + $0xd8] sm:$0xff]
    %v4526 = vld [vmem:[%s15 + $0xe0] sm:$0xff]
    %v4527 = vld [vmem:[%s15 + $0xe8] sm:$0xff]
    %v4528 = vld [vmem:[%s15 + $0xf0] sm:$0xff]
    %v4529 = vld [vmem:[%s15 + $0xf8] sm:$0xff]
    %4530 = vmatprep.subr.mxu0 0.0
    %4531 = vmatpush1.msra.mxu0 %v4514
    %4532 = vmatprep.subr.mxu0 0.0
    %4533 = vmatpush1.msra.mxu0 %v4515
    %4534 = vmatprep.subr.mxu0 0.0
    %4535 = vmatpush1.msra.mxu0 %v4516
    %4536 = vmatprep.subr.mxu0 0.0
    %4537 = vmatpush1.msra.mxu0 %v4517
    %4538 = vmatprep.subr.mxu0 0.0
    %4539 = vmatpush1.msra.mxu0 %v4518
    %4540 = vmatprep.subr.mxu0 0.0
    %4541 = vmatpush1.msra.mxu0 %v4519
    %4542 = vmatprep.subr.mxu0 0.0
    %4543 = vmatpush1.msra.mxu0 %v4520
    %4544 = vmatprep.subr.mxu0 0.0
    %4545 = vmatpush1.msra.mxu0 %v4521
    %4546 = vmatprep.subr.mxu0 0.0
    %4547 = vmatpush1.msra.mxu0 %v4522
    %4548 = vmatprep.subr.mxu0 0.0
    %4549 = vmatpush1.msra.mxu0 %v4523
    %4550 = vmatprep.subr.mxu0 0.0
    %4551 = vmatpush1.msra.mxu0 %v4524
    %4552 = vmatprep.subr.mxu0 0.0
    %4553 = vmatpush1.msra.mxu0 %v4525
    %4554 = vmatprep.subr.mxu0 0.0
    %4555 = vmatpush1.msra.mxu0 %v4526
    %4556 = vmatprep.subr.mxu0 0.0
    %4557 = vmatpush1.msra.mxu0 %v4527
    %4558 = vmatprep.subr.mxu0 0.0
    %4559 = vmatpush1.msra.mxu0 %v4528
    %4560 = vmatprep.subr.mxu0 0.0
    %4561 = vmatpush1.msra.mxu0 %v4529
    %4562 = vmatprep.subr.mxu0 0.0
    %4563 = vmatpush1.msra.mxu0 0.0
    %4564 = vmatprep.subr.mxu0 0.0
    %4565 = vmatpush1.msra.mxu0 0.0
    %4566 = vmatprep.subr.mxu0 0.0
    %4567 = vmatpush1.msra.mxu0 0.0
    %4568 = vmatprep.subr.mxu0 0.0
    %4569 = vmatpush1.msra.mxu0 0.0
    %4570 = vmatprep.subr.mxu0 0.0
    %4571 = vmatpush1.msra.mxu0 0.0
    %4572 = vmatprep.subr.mxu0 0.0
    %4573 = vmatpush1.msra.mxu0 0.0
    %4574 = vmatprep.subr.mxu0 0.0
    %4575 = vmatpush1.msra.mxu0 0.0
    %4576 = vmatprep.subr.mxu0 0.0
    %4577 = vmatpush1.msra.mxu0 0.0
    %4578 = vmatprep.subr.mxu0 0.0
    %4579 = vmatpush1.msra.mxu0 0.0
    %4580 = vmatprep.subr.mxu0 0.0
    %4581 = vmatpush1.msra.mxu0 0.0
    %4582 = vmatprep.subr.mxu0 0.0
    %4583 = vmatpush1.msra.mxu0 0.0
    %4584 = vmatprep.subr.mxu0 0.0
    %4585 = vmatpush1.msra.mxu0 0.0
    %4586 = vmatprep.subr.mxu0 0.0
    %4587 = vmatpush1.msra.mxu0 0.0
    %4588 = vmatprep.subr.mxu0 0.0
    %4589 = vmatpush1.msra.mxu0 0.0
    %4590 = vmatprep.subr.mxu0 0.0
    %4591 = vmatpush1.msra.mxu0 0.0
    %4592 = vmatprep.subr.mxu0 0.0
    %4593 = vmatpush1.msra.mxu0 0.0
    %4594 = vmatprep.mubr.f32.mxu0 0.0
    %4595 = vmatmul.mubr.f32.gmra.mrb[0].mxu0 %v4497
    %v4596 = vpop.f32.mrb[0].mxu0
    %v4597 = vadd.f32 0.0, %v4596
    %v4598 = vpop.f32.mrb[0].mxu0
    %4599 = vdwg.mxu0
    %4600 = vmatprep.subr.mxu0 0.0
    %4601 = vmatpush1.msra.mxu0 %v4498
    %4602 = vmatprep.subr.mxu0 0.0
    %4603 = vmatpush1.msra.mxu0 %v4499
    %4604 = vmatprep.subr.mxu0 0.0
    %4605 = vmatpush1.msra.mxu0 %v4500
    %4606 = vmatprep.subr.mxu0 0.0
    %4607 = vmatpush1.msra.mxu0 %v4501
    %4608 = vmatprep.subr.mxu0 0.0
    %4609 = vmatpush1.msra.mxu0 %v4502
    %4610 = vmatprep.subr.mxu0 0.0
    %4611 = vmatpush1.msra.mxu0 %v4503
    %4612 = vmatprep.subr.mxu0 0.0
    %4613 = vmatpush1.msra.mxu0 %v4504
    %4614 = vmatprep.subr.mxu0 0.0
    %4615 = vmatpush1.msra.mxu0 %v4505
    %4616 = vmatprep.subr.mxu0 0.0
    %4617 = vmatpush1.msra.mxu0 %v4506
    %4618 = vmatprep.subr.mxu0 0.0
    %4619 = vmatpush1.msra.mxu0 %v4507
    %4620 = vmatprep.subr.mxu0 0.0
    %4621 = vmatpush1.msra.mxu0 %v4508
    %4622 = vmatprep.subr.mxu0 0.0
    %4623 = vmatpush1.msra.mxu0 %v4509
    %4624 = vmatprep.subr.mxu0 0.0
    %4625 = vmatpush1.msra.mxu0 %v4510
    %4626 = vmatprep.subr.mxu0 0.0
    %4627 = vmatpush1.msra.mxu0 %v4511
    %4628 = vmatprep.subr.mxu0 0.0
    %4629 = vmatpush1.msra.mxu0 %v4512
    %4630 = vmatprep.subr.mxu0 0.0
    %4631 = vmatpush1.msra.mxu0 %v4513
    %4632 = vmatprep.subr.mxu0 0.0
    %4633 = vmatpush1.msra.mxu0 0.0
    %4634 = vmatprep.subr.mxu0 0.0
    %4635 = vmatpush1.msra.mxu0 0.0
    %4636 = vmatprep.subr.mxu0 0.0
    %4637 = vmatpush1.msra.mxu0 0.0
    %4638 = vmatprep.subr.mxu0 0.0
    %4639 = vmatpush1.msra.mxu0 0.0
    %4640 = vmatprep.subr.mxu0 0.0
    %4641 = vmatpush1.msra.mxu0 0.0
    %4642 = vmatprep.subr.mxu0 0.0
    %4643 = vmatpush1.msra.mxu0 0.0
    %4644 = vmatprep.subr.mxu0 0.0
    %4645 = vmatpush1.msra.mxu0 0.0
    %4646 = vmatprep.subr.mxu0 0.0
    %4647 = vmatpush1.msra.mxu0 0.0
    %4648 = vmatprep.subr.mxu0 0.0
    %4649 = vmatpush1.msra.mxu0 0.0
    %4650 = vmatprep.subr.mxu0 0.0
    %4651 = vmatpush1.msra.mxu0 0.0
    %4652 = vmatprep.subr.mxu0 0.0
    %4653 = vmatpush1.msra.mxu0 0.0
    %4654 = vmatprep.subr.mxu0 0.0
    %4655 = vmatpush1.msra.mxu0 0.0
    %4656 = vmatprep.subr.mxu0 0.0
    %4657 = vmatpush1.msra.mxu0 0.0
    %4658 = vmatprep.subr.mxu0 0.0
    %4659 = vmatpush1.msra.mxu0 0.0
    %4660 = vmatprep.subr.mxu0 0.0
    %4661 = vmatpush1.msra.mxu0 0.0
    %4662 = vmatprep.subr.mxu0 0.0
    %4663 = vmatpush1.msra.mxu0 0.0
    %4664 = vmatprep.mubr.f32.mxu0 0.0
    %4665 = vmatmul.mubr.f32.gmra.mrb[0].mxu0 %v4322
    %v4666 = vpop.f32.mrb[0].mxu0
    %v4667 = vadd.f32 %v4597, %v4666
    %v4668 = vpop.f32.mrb[0].mxu0
    %4669 = vdwg.mxu0
    %v4670 = vld [vmem:[%s20] sm:$0x1]
    %v4672 = vlaneseq
    %v4673 = vshrl.u32 %v4672, 7
    %v4674 = vsub.s32 0, %v4673
    %v4675 = vrot.slane %v4670, %v4674
    %v4677 = vadd.f32 %v4667, %v4675
    %v4678 = vmax.f32 %v4677, 0.0
    %v4679 = vld [vmem:[%s16] sm:$0xff]
    %v4680 = vld [vmem:[%s16 + $0x8] sm:$0xff]
    %v4681 = vld [vmem:[%s16 + $0x10] sm:$0xff]
    %v4682 = vld [vmem:[%s16 + $0x18] sm:$0xff]
    %v4683 = vld [vmem:[%s16 + $0x20] sm:$0xff]
    %v4684 = vld [vmem:[%s16 + $0x28] sm:$0xff]
    %v4685 = vld [vmem:[%s16 + $0x30] sm:$0xff]
    %v4686 = vld [vmem:[%s16 + $0x38] sm:$0xff]
    %v4687 = vld [vmem:[%s21] sm:$0x1]
    %v4689 = vlaneseq
    %v4690 = vshrl.u32 %v4689, 7
    %v4691 = vsub.s32 0, %v4690
    %v4692 = vrot.slane %v4687, %v4691
    %vm4694 = vcmask 523264
    %v4696 = vsel %vm4694, %v4678, 0
    %4698 = vmatprep.subr.mxu0 0.0
    %4699 = vmatpush1.msra.mxu0 %v4679
    %4700 = vmatprep.subr.mxu0 0.0
    %4701 = vmatpush1.msra.mxu0 %v4680
    %4702 = vmatprep.subr.mxu0 0.0
    %4703 = vmatpush1.msra.mxu0 %v4681
    %4704 = vmatprep.subr.mxu0 0.0
    %4705 = vmatpush1.msra.mxu0 %v4682
    %4706 = vmatprep.subr.mxu0 0.0
    %4707 = vmatpush1.msra.mxu0 %v4683
    %4708 = vmatprep.subr.mxu0 0.0
    %4709 = vmatpush1.msra.mxu0 %v4684
    %4710 = vmatprep.subr.mxu0 0.0
    %4711 = vmatpush1.msra.mxu0 %v4685
    %4712 = vmatprep.subr.mxu0 0.0
    %4713 = vmatpush1.msra.mxu0 %v4686
    %4714 = vmatprep.subr.mxu0 0.0
    %4715 = vmatpush1.msra.mxu0 0.0
    %4716 = vmatprep.subr.mxu0 0.0
    %4717 = vmatpush1.msra.mxu0 0.0
    %4718 = vmatprep.subr.mxu0 0.0
    %4719 = vmatpush1.msra.mxu0 0.0
    %4720 = vmatprep.subr.mxu0 0.0
    %4721 = vmatpush1.msra.mxu0 0.0
    %4722 = vmatprep.subr.mxu0 0.0
    %4723 = vmatpush1.msra.mxu0 0.0
    %4724 = vmatprep.subr.mxu0 0.0
    %4725 = vmatpush1.msra.mxu0 0.0
    %4726 = vmatprep.subr.mxu0 0.0
    %4727 = vmatpush1.msra.mxu0 0.0
    %4728 = vmatprep.subr.mxu0 0.0
    %4729 = vmatpush1.msra.mxu0 0.0
    %4730 = vmatprep.subr.mxu0 0.0
    %4731 = vmatpush1.msra.mxu0 0.0
    %4732 = vmatprep.subr.mxu0 0.0
    %4733 = vmatpush1.msra.mxu0 0.0
    %4734 = vmatprep.subr.mxu0 0.0
    %4735 = vmatpush1.msra.mxu0 0.0
    %4736 = vmatprep.subr.mxu0 0.0
    %4737 = vmatpush1.msra.mxu0 0.0
    %4738 = vmatprep.subr.mxu0 0.0
    %4739 = vmatpush1.msra.mxu0 0.0
    %4740 = vmatprep.subr.mxu0 0.0
    %4741 = vmatpush1.msra.mxu0 0.0
    %4742 = vmatprep.subr.mxu0 0.0
    %4743 = vmatpush1.msra.mxu0 0.0
    %4744 = vmatprep.subr.mxu0 0.0
    %4745 = vmatpush1.msra.mxu0 0.0
    %4746 = vmatprep.subr.mxu0 0.0
    %4747 = vmatpush1.msra.mxu0 0.0
    %4748 = vmatprep.subr.mxu0 0.0
    %4749 = vmatpush1.msra.mxu0 0.0
    %4750 = vmatprep.subr.mxu0 0.0
    %4751 = vmatpush1.msra.mxu0 0.0
    %4752 = vmatprep.subr.mxu0 0.0
    %4753 = vmatpush1.msra.mxu0 0.0
    %4754 = vmatprep.subr.mxu0 0.0
    %4755 = vmatpush1.msra.mxu0 0.0
    %4756 = vmatprep.subr.mxu0 0.0
    %4757 = vmatpush1.msra.mxu0 0.0
    %4758 = vmatprep.subr.mxu0 0.0
    %4759 = vmatpush1.msra.mxu0 0.0
    %4760 = vmatprep.subr.mxu0 0.0
    %4761 = vmatpush1.msra.mxu0 0.0
    %4762 = vmatprep.mubr.f32.mxu0 0.0
    %4763 = vmatmul.mubr.f32.gmra.mrb[0].mxu0 %v4696
    %v4764 = vpop.f32.mrb[0].mxu0
    %v4765 = vadd.f32 %v4692, %v4764
    %v4766 = vpop.f32.mrb[0].mxu0
    %4767 = vdwg.mxu0
    %vm4768 = vcmask 82944
    %4769 = vst.msk [vmem:[#allocation2] sm:$0x3] %vm4768, %v4765
    // Predicated region
    $region90: #{bioact_forward.1} parent=1 // pred_check
      _
    $region91: #{bioact_forward.1} parent=1 // pred_check_branch
      %4771 = sbr.rel (0) target = $region93
    $region92: #{bioact_forward.1} parent=1 // pred_region
      %s4773 = ssub.s32 32, 32
      %4774 = vsyncadd [#allocation3], %s4773
      %s4776 = sshll.u32 [#allocation2], 4
      %s4777 = int_to_ptr.vmem [resolvable:$true] %s4776
      %4779 = dma.vmem_to_hbm [thread:$0]  %s4777, 32, %s22, [#allocation3]
    $region93: #{bioact_forward.1} parent=1 // pred_fallthru
      _
    // Predicated region
    $region94: #{bioact_forward.1} parent=1 // pred_check
      _
    $region95: #{bioact_forward.1} parent=1 // pred_check_branch
      %4781 = sbr.rel (0) target = $region97
    $region96: #{bioact_forward.1} parent=1 // pred_region
      %4782 = dma.done [#allocation3], 32
    $region97: #{bioact_forward.1} parent=1 // pred_fallthru
      _
    %4783 = vsyncpa [#allocation3], 1

</llo_original>
